<compile_context>
chip_gen: v6e
topology: v6e:2x2x1
jax: 0.10.0
libtpu: 0.0.40
codegen_flags: <defaults>
</compile_context>

<pallas_src>
import functools

import numpy as np
import jax
import jax.numpy as jnp
from jax.experimental import pallas as pl
from jax.experimental.pallas import tpu as pltpu


def _downblock_kernel(a_ref, mask_ref, w1_ref, s1_ref, b1_ref, w2_ref, s2_ref, b2_ref,
                      o_ref, y1_ref, *, Wp, G):
    """One batch-block per grid step.

    a_ref   : (1, Rg, Cin)    bf16 pooled rows, zero conv-padding + G guard rows each end
    mask_ref: (Rblk, 1)       f32  1.0 at interior (valid) rows, 0.0 at padding rows
    w1_ref  : (9*Cin, Cout)   bf16 dense conv1 taps, row block t = (dy*3+dx)
    s1_ref  : (1, Cout)       f32  BN1 scale (eval mode)
    b1_ref  : (1, Cout)       f32  BN1 bias
    w2_ref  : (9*Cout, Cout_p) bf16 dense conv2 taps, output columns zero-padded to Cout_p
    s2_ref  : (1, Cout_p)     f32
    b2_ref  : (1, Cout_p)     f32
    o_ref   : (1, Rblk, Cout_p) f32 outputs at all padded positions (wrapper slices)
    y1_ref  : (Rg, Cout)      bf16 persistent scratch: conv1 output with guard rows
    """
    Rblk = o_ref.shape[1]
    Cin = a_ref.shape[2]
    Cout = w1_ref.shape[1]
    Cout_p = o_ref.shape[2]
    row_stride = Wp + 2
    taps = [(dy, dx) for dy in range(3) for dx in range(3)]

    # Guard rows of the conv1-output scratch only feed halo outputs that the wrapper
    # discards, but keep them defined (tiny stores, no per-step activation copies).
    y1_ref[0:G, :] = jnp.zeros((G, Cout), y1_ref.dtype)
    y1_ref[G + Rblk:G + Rblk + G, :] = jnp.zeros((G, Cout), y1_ref.dtype)

    mask = mask_ref[...]  # (Rblk, 1) f32

    # ---- conv1 (3x3, pad=1): 9 accumulating dots, M=Rblk, K=Cin, dense weights ----
    acc1 = jnp.zeros((Rblk, Cout), jnp.float32)
    for t, (dy, dx) in enumerate(taps):
        off = G + (dy - 1) * row_stride + (dx - 1)
        acc1 = acc1 + jnp.dot(a_ref[0, off:off + Rblk, :],
                              w1_ref[t * Cin:(t + 1) * Cin, :],
                              preferred_element_type=jnp.float32)

    # BN(eval) + ReLU epilogue in f32; re-zero the conv-padding rows (required for
    # conv2's zero padding); store bf16 into the guarded scratch for conv2.
    y1 = jnp.maximum(acc1 * s1_ref[...] + b1_ref[...], 0.0) * mask
    y1_ref[G:G + Rblk, :] = y1.astype(y1_ref.dtype)

    # ---- conv2 (3x3, pad=1): 9 accumulating dots, M=Rblk, K=Cout, N=Cout_p lanes ----
    acc2 = jnp.zeros((Rblk, Cout_p), jnp.float32)
    for t, (dy, dx) in enumerate(taps):
        off = G + (dy - 1) * row_stride + (dx - 1)
        acc2 = acc2 + jnp.dot(y1_ref[off:off + Rblk, :],
                              w2_ref[t * Cout:(t + 1) * Cout, :],
                              preferred_element_type=jnp.float32)

    # Lane-dense store (Cout_p is a multiple of 128); padded columns are exactly 0.
    o_ref[0] = jnp.maximum(acc2 * s2_ref[...] + b2_ref[...], 0.0)


def _pool_to_bf16_nhwc(x_nchw):
    """NCHW f32 -> 2x2 average pool -> NHWC bf16 (shared by kernel wrapper + reference)."""
    N, Cin, H, W = x_nchw.shape
    x = jnp.transpose(x_nchw, (0, 2, 3, 1)).astype(jnp.float32)
    xp = x.reshape(N, H // 2, 2, W // 2, 2, Cin).mean(axis=(2, 4))
    return xp.astype(jnp.bfloat16)


def downblock_pallas(x_nchw, w1, scale1, bias1, w2, scale2, bias2):
    """x_nchw: (N, Cin, H, W) f32 -> (N, Cout, H//2, W//2) f32."""
    N, Cin, H, W = x_nchw.shape
    assert H % 2 == 0 and W % 2 == 0, "AvgPool2d(2) path requires even H and W"
    Cout = w1.shape[-1]
    Hp, Wp = H // 2, W // 2
    Cout_p = ((Cout + 127) // 128) * 128          # lane-dense output width

    rows_per_img = (Hp + 2) * (Wp + 2)
    # Batch-block size: target a few hundred matmul rows per grid step (fills the MXU
    # M dimension and amortises per-step overhead) while keeping the grid usable.
    NB = 1
    for cand in range(1, N + 1):
        if N % cand == 0 and cand * rows_per_img <= max(512, rows_per_img):
            NB = cand
    num_blocks = N // NB
    Rblk = NB * rows_per_img
    G = ((Wp + 3 + 7) // 8) * 8                   # guard rows (>= Wp+3), sublane-aligned
    Rg = Rblk + 2 * G

    # Wrapper layout pass (single read of x, 8x-smaller bf16 write): NCHW -> NHWC ->
    # 2x2 avg-pool -> zero conv-padding -> flat (batch, hy, wx) rows with guard rows.
    xp = jnp.pad(_pool_to_bf16_nhwc(x_nchw), ((0, 0), (1, 1), (1, 1), (0, 0)))
    a = xp.reshape(num_blocks, Rblk, Cin)
    a = jnp.pad(a, ((0, 0), (G, G), (0, 0)))      # (num_blocks, Rg, Cin) bf16

    # Dense per-tap weights in bf16; BN scale/bias stay in the f32 epilogue.
    w1b = jnp.asarray(w1, jnp.bfloat16).reshape(9 * Cin, Cout)
    w2b = jnp.pad(jnp.asarray(w2, jnp.bfloat16),
                  ((0, 0), (0, 0), (0, 0), (0, Cout_p - Cout))).reshape(9 * Cout, Cout_p)
    s1v = jnp.asarray(scale1, jnp.float32).reshape(1, Cout)
    b1v = jnp.asarray(bias1, jnp.float32).reshape(1, Cout)
    s2v = jnp.pad(jnp.asarray(scale2, jnp.float32), (0, Cout_p - Cout)).reshape(1, Cout_p)
    b2v = jnp.pad(jnp.asarray(bias2, jnp.float32), (0, Cout_p - Cout)).reshape(1, Cout_p)

    # Interior mask over the padded positions of one batch block (grid-invariant).
    m = np.zeros((Hp + 2, Wp + 2), np.float32)
    m[1:Hp + 1, 1:Wp + 1] = 1.0
    mask = jnp.asarray(np.tile(m.reshape(1, -1), (NB, 1)).reshape(Rblk, 1))

    flops = int(2 * 9 * Rblk * (Cin * Cout + Cout * Cout_p) * num_blocks)
    bytes_accessed = int(a.size * 2 + mask.size * 4 + w1b.size * 2 + w2b.size * 2
                         + (s1v.size + b1v.size + s2v.size + b2v.size) * 4
                         + num_blocks * Rblk * Cout_p * 4)

    kernel = functools.partial(_downblock_kernel, Wp=Wp, G=G)

    out = pl.pallas_call(
        kernel,
        out_shape=jax.ShapeDtypeStruct((num_blocks, Rblk, Cout_p), jnp.float32),
        grid_spec=pltpu.PrefetchScalarGridSpec(
            num_scalar_prefetch=0,
            grid=(num_blocks,),
            in_specs=[
                pl.BlockSpec((1, Rg, Cin), lambda b: (b, 0, 0)),
                pl.BlockSpec((Rblk, 1), lambda b: (0, 0)),
                pl.BlockSpec((9 * Cin, Cout), lambda b: (0, 0)),
                pl.BlockSpec((1, Cout), lambda b: (0, 0)),
                pl.BlockSpec((1, Cout), lambda b: (0, 0)),
                pl.BlockSpec((9 * Cout, Cout_p), lambda b: (0, 0)),
                pl.BlockSpec((1, Cout_p), lambda b: (0, 0)),
                pl.BlockSpec((1, Cout_p), lambda b: (0, 0)),
            ],
            out_specs=pl.BlockSpec((1, Rblk, Cout_p), lambda b: (b, 0, 0)),
            scratch_shapes=[pltpu.VMEM((Rg, Cout), jnp.bfloat16)],
        ),
        compiler_params=pltpu.CompilerParams(
            dimension_semantics=("parallel",),
            vmem_limit_bytes=32 * 1024 * 1024,
        ),
        cost_estimate=pl.CostEstimate(flops=flops, transcendentals=0,
                                      bytes_accessed=bytes_accessed),
    )(a, mask, w1b, s1v, b1v, w2b, s2v, b2v)

    # (num_blocks, Rblk, Cout_p) -> slice interior positions / real channels -> NCHW.
    out = out.reshape(N, Hp + 2, Wp + 2, Cout_p)[:, 1:Hp + 1, 1:Wp + 1, :Cout]
    return jnp.transpose(out, (0, 3, 1, 2))


def _reference(x_nchw, w1, s1, b1, w2, s2, b2, *, quantize):
    """Pure-JAX reference.  quantize=True mirrors the kernel's bf16 operand rounding
    (f32 accumulation), quantize=False is the full-f32 module semantics."""
    if quantize:
        xp = _pool_to_bf16_nhwc(x_nchw).astype(jnp.float32)
        w1r = w1.astype(jnp.bfloat16).astype(jnp.float32)
        w2r = w2.astype(jnp.bfloat16).astype(jnp.float32)
    else:
        N, Cin, H, W = x_nchw.shape
        x = jnp.transpose(x_nchw, (0, 2, 3, 1)).astype(jnp.float32)
        xp = x.reshape(N, H // 2, 2, W // 2, 2, Cin).mean(axis=(2, 4))
        w1r, w2r = w1, w2

    def conv(inp, w):
        return jax.lax.conv_general_dilated(
            inp, w, window_strides=(1, 1), padding=[(1, 1), (1, 1)],
            dimension_numbers=("NHWC", "HWIO", "NHWC"),
            precision=jax.lax.Precision.HIGHEST)

    y = jnp.maximum(conv(xp, w1r) * s1.reshape(1, 1, 1, -1) + b1.reshape(1, 1, 1, -1), 0.0)
    if quantize:
        y = y.astype(jnp.bfloat16).astype(jnp.float32)
    y = jnp.maximum(conv(y, w2r) * s2.reshape(1, 1, 1, -1) + b2.reshape(1, 1, 1, -1), 0.0)
    return jnp.transpose(y, (0, 3, 1, 2))


def _make_params(key, cin, cout):
    """Deterministic synthetic params; BN (eval mode) folded to scale/bias."""
    ks = jax.random.split(key, 10)
    eps = 1e-5

    w1 = jax.random.normal(ks[0], (3, 3, cin, cout), jnp.float32) * 0.2
    w2 = jax.random.normal(ks[1], (3, 3, cout, cout), jnp.float32) * 0.2

    def bn_fold(kg, kb, km, kv):
        gamma = 1.0 + 0.1 * jax.random.normal(kg, (cout,), jnp.float32)
        beta = 0.1 * jax.random.normal(kb, (cout,), jnp.float32)
        rmean = 0.1 * jax.random.normal(km, (cout,), jnp.float32)
        rvar = jax.random.uniform(kv, (cout,), jnp.float32, 0.5, 1.5)
        scale = gamma / jnp.sqrt(rvar + eps)
        bias = beta - rmean * scale
        return scale, bias

    s1, b1 = bn_fold(ks[2], ks[3], ks[4], ks[5])
    s2, b2 = bn_fold(ks[6], ks[7], ks[8], ks[9])
    return w1, s1, b1, w2, s2, b2


if __name__ == "__main__":
    N, CIN, COUT, H, W = 2, 4, 8, 16, 16

    key = jax.random.PRNGKey(0)
    kx, kp = jax.random.split(key)
    x = jax.random.normal(kx, (N, CIN, H, W), jnp.float32)
    params = _make_params(kp, CIN, COUT)

    out = jax.block_until_ready(downblock_pallas(x, *params))
    assert out.shape == (N, COUT, H // 2, W // 2), out.shape

    # Strict check against a reference using the same bf16-quantised operands
    # (f32 accumulation) -- isolates im2col / padding / BN / ReLU correctness.
    ref_q = _reference(x, *params, quantize=True)
    assert jnp.allclose(out, ref_q, rtol=1e-3, atol=1e-3), \
        float(jnp.max(jnp.abs(out - ref_q)))

    # Sanity check against the full-f32 module semantics (difference = bf16 rounding).
    ref_f = _reference(x, *params, quantize=False)
    assert jnp.allclose(out, ref_f, rtol=5e-2, atol=5e-2), \
        float(jnp.max(jnp.abs(out - ref_f)))

    print("KERNEL_OK")
</pallas_src>

<mosaic_0001>
module attributes {stable_mosaic.version = 11 : i64} {
  func.func @_downblock_kernel(%arg0: i32, %arg1: memref<1x232x4xbf16, #tpu.memory_space<vmem>>, %arg2: memref<200x1xf32, #tpu.memory_space<vmem>>, %arg3: memref<36x8xbf16, #tpu.memory_space<vmem>>, %arg4: memref<1x8xf32, #tpu.memory_space<vmem>>, %arg5: memref<1x8xf32, #tpu.memory_space<vmem>>, %arg6: memref<72x128xbf16, #tpu.memory_space<vmem>>, %arg7: memref<1x128xf32, #tpu.memory_space<vmem>>, %arg8: memref<1x128xf32, #tpu.memory_space<vmem>>, %arg9: memref<1x200x128xf32, #tpu.memory_space<vmem>>, %arg10: memref<232x8xbf16, #tpu.memory_space<vmem>>) attributes {dimension_semantics = [#tpu.dimension_semantics<parallel>], iteration_bounds = array<i64: 1>, scalar_prefetch = 0 : i64, scratch_operands = 1 : i64, tpu.core_type = #tpu.core_type<tc>, window_params = [{transform_indices = @transform_0, window_bounds = array<i64: 1, 232, 4>}, {pipeline_mode = #tpu.pipeline_mode<synchronous>, transform_indices = @transform_1, window_bounds = array<i64: 200, 1>}, {pipeline_mode = #tpu.pipeline_mode<synchronous>, transform_indices = @transform_2, window_bounds = array<i64: 36, 8>}, {pipeline_mode = #tpu.pipeline_mode<synchronous>, transform_indices = @transform_3, window_bounds = array<i64: 1, 8>}, {pipeline_mode = #tpu.pipeline_mode<synchronous>, transform_indices = @transform_4, window_bounds = array<i64: 1, 8>}, {pipeline_mode = #tpu.pipeline_mode<synchronous>, transform_indices = @transform_5, window_bounds = array<i64: 72, 128>}, {pipeline_mode = #tpu.pipeline_mode<synchronous>, transform_indices = @transform_6, window_bounds = array<i64: 1, 128>}, {pipeline_mode = #tpu.pipeline_mode<synchronous>, transform_indices = @transform_7, window_bounds = array<i64: 1, 128>}, {transform_indices = @transform_8, window_bounds = array<i64: 1, 200, 128>}]} {
    %cst = arith.constant 0.000000e+00 : bf16
    %0 = vector.broadcast %cst : bf16 to vector<16x8xbf16>
    %c0 = arith.constant 0 : index
    %c0_0 = arith.constant 0 : index
    %1 = vector.load %arg10[%c0, %c0_0] : memref<232x8xbf16, #tpu.memory_space<vmem>>, vector<16x8xbf16>
    tpu.vector_store %arg10[%c0, %c0_0], %0 {strides = array<i32>} : memref<232x8xbf16, #tpu.memory_space<vmem>>, vector<16x8xbf16>,
    %cst_1 = arith.constant 0.000000e+00 : bf16
    %2 = vector.broadcast %cst_1 : bf16 to vector<16x8xbf16>
    %c216 = arith.constant 216 : index
    %c0_2 = arith.constant 0 : index
    %3 = vector.load %arg10[%c216, %c0_2] : memref<232x8xbf16, #tpu.memory_space<vmem>>, vector<16x8xbf16>
    tpu.vector_store %arg10[%c216, %c0_2], %2 {strides = array<i32>} : memref<232x8xbf16, #tpu.memory_space<vmem>>, vector<16x8xbf16>,
    %c0_3 = arith.constant 0 : index
    %c0_4 = arith.constant 0 : index
    %4 = vector.load %arg2[%c0_3, %c0_4] : memref<200x1xf32, #tpu.memory_space<vmem>>, vector<200x1xf32>
    %cst_5 = arith.constant 0.000000e+00 : f32
    %5 = vector.broadcast %cst_5 : f32 to vector<200x8xf32>
    %c0_6 = arith.constant 0 : index
    %c5 = arith.constant 5 : index
    %c0_7 = arith.constant 0 : index
    %6 = vector.load %arg1[%c0_6, %c5, %c0_7] : memref<1x232x4xbf16, #tpu.memory_space<vmem>>, vector<1x200x4xbf16>
    %7 = vector.shape_cast %6 : vector<1x200x4xbf16> to vector<200x4xbf16>
    %c0_8 = arith.constant 0 : index
    %c0_9 = arith.constant 0 : index
    %8 = vector.load %arg3[%c0_8, %c0_9] : memref<36x8xbf16, #tpu.memory_space<vmem>>, vector<4x8xbf16>
    %cst_10 = arith.constant dense<0.000000e+00> : vector<200x8xf32>
    %9 = tpu.matmul %7, %8, %cst_10 {dimension_numbers = #tpu.dot_dimension_numbers<[1], [0], [0], [1], [0, 0, 1, 1], [], []>} : vector<200x4xbf16>, vector<4x8xbf16>, vector<200x8xf32> -> vector<200x8xf32>
    %10 = arith.addf %5, %9 : vector<200x8xf32>
    %c0_11 = arith.constant 0 : index
    %c6 = arith.constant 6 : index
    %c0_12 = arith.constant 0 : index
    %11 = vector.load %arg1[%c0_11, %c6, %c0_12] : memref<1x232x4xbf16, #tpu.memory_space<vmem>>, vector<1x200x4xbf16>
    %12 = vector.shape_cast %11 : vector<1x200x4xbf16> to vector<200x4xbf16>
    %c4 = arith.constant 4 : index
    %c0_13 = arith.constant 0 : index
    %13 = vector.load %arg3[%c4, %c0_13] : memref<36x8xbf16, #tpu.memory_space<vmem>>, vector<4x8xbf16>
    %cst_14 = arith.constant dense<0.000000e+00> : vector<200x8xf32>
    %14 = tpu.matmul %12, %13, %cst_14 {dimension_numbers = #tpu.dot_dimension_numbers<[1], [0], [0], [1], [0, 0, 1, 1], [], []>} : vector<200x4xbf16>, vector<4x8xbf16>, vector<200x8xf32> -> vector<200x8xf32>
    %15 = arith.addf %10, %14 : vector<200x8xf32>
    %c0_15 = arith.constant 0 : index
    %c7 = arith.constant 7 : index
    %c0_16 = arith.constant 0 : index
    %16 = vector.load %arg1[%c0_15, %c7, %c0_16] : memref<1x232x4xbf16, #tpu.memory_space<vmem>>, vector<1x200x4xbf16>
    %17 = vector.shape_cast %16 : vector<1x200x4xbf16> to vector<200x4xbf16>
    %c8 = arith.constant 8 : index
    %c0_17 = arith.constant 0 : index
    %18 = vector.load %arg3[%c8, %c0_17] : memref<36x8xbf16, #tpu.memory_space<vmem>>, vector<4x8xbf16>
    %cst_18 = arith.constant dense<0.000000e+00> : vector<200x8xf32>
    %19 = tpu.matmul %17, %18, %cst_18 {dimension_numbers = #tpu.dot_dimension_numbers<[1], [0], [0], [1], [0, 0, 1, 1], [], []>} : vector<200x4xbf16>, vector<4x8xbf16>, vector<200x8xf32> -> vector<200x8xf32>
    %20 = arith.addf %15, %19 : vector<200x8xf32>
    %c0_19 = arith.constant 0 : index
    %c15 = arith.constant 15 : index
    %c0_20 = arith.constant 0 : index
    %21 = vector.load %arg1[%c0_19, %c15, %c0_20] : memref<1x232x4xbf16, #tpu.memory_space<vmem>>, vector<1x200x4xbf16>
    %22 = vector.shape_cast %21 : vector<1x200x4xbf16> to vector<200x4xbf16>
    %c12 = arith.constant 12 : index
    %c0_21 = arith.constant 0 : index
    %23 = vector.load %arg3[%c12, %c0_21] : memref<36x8xbf16, #tpu.memory_space<vmem>>, vector<4x8xbf16>
    %cst_22 = arith.constant dense<0.000000e+00> : vector<200x8xf32>
    %24 = tpu.matmul %22, %23, %cst_22 {dimension_numbers = #tpu.dot_dimension_numbers<[1], [0], [0], [1], [0, 0, 1, 1], [], []>} : vector<200x4xbf16>, vector<4x8xbf16>, vector<200x8xf32> -> vector<200x8xf32>
    %25 = arith.addf %20, %24 : vector<200x8xf32>
    %c0_23 = arith.constant 0 : index
    %c16 = arith.constant 16 : index
    %c0_24 = arith.constant 0 : index
    %26 = vector.load %arg1[%c0_23, %c16, %c0_24] : memref<1x232x4xbf16, #tpu.memory_space<vmem>>, vector<1x200x4xbf16>
    %27 = vector.shape_cast %26 : vector<1x200x4xbf16> to vector<200x4xbf16>
    %c16_25 = arith.constant 16 : index
    %c0_26 = arith.constant 0 : index
    %28 = vector.load %arg3[%c16_25, %c0_26] : memref<36x8xbf16, #tpu.memory_space<vmem>>, vector<4x8xbf16>
    %cst_27 = arith.constant dense<0.000000e+00> : vector<200x8xf32>
    %29 = tpu.matmul %27, %28, %cst_27 {dimension_numbers = #tpu.dot_dimension_numbers<[1], [0], [0], [1], [0, 0, 1, 1], [], []>} : vector<200x4xbf16>, vector<4x8xbf16>, vector<200x8xf32> -> vector<200x8xf32>
    %30 = arith.addf %25, %29 : vector<200x8xf32>
    %c0_28 = arith.constant 0 : index
    %c17 = arith.constant 17 : index
    %c0_29 = arith.constant 0 : index
    %31 = vector.load %arg1[%c0_28, %c17, %c0_29] : memref<1x232x4xbf16, #tpu.memory_space<vmem>>, vector<1x200x4xbf16>
    %32 = vector.shape_cast %31 : vector<1x200x4xbf16> to vector<200x4xbf16>
    %c20 = arith.constant 20 : index
    %c0_30 = arith.constant 0 : index
    %33 = vector.load %arg3[%c20, %c0_30] : memref<36x8xbf16, #tpu.memory_space<vmem>>, vector<4x8xbf16>
    %cst_31 = arith.constant dense<0.000000e+00> : vector<200x8xf32>
    %34 = tpu.matmul %32, %33, %cst_31 {dimension_numbers = #tpu.dot_dimension_numbers<[1], [0], [0], [1], [0, 0, 1, 1], [], []>} : vector<200x4xbf16>, vector<4x8xbf16>, vector<200x8xf32> -> vector<200x8xf32>
    %35 = arith.addf %30, %34 : vector<200x8xf32>
    %c0_32 = arith.constant 0 : index
    %c25 = arith.constant 25 : index
    %c0_33 = arith.constant 0 : index
    %36 = vector.load %arg1[%c0_32, %c25, %c0_33] : memref<1x232x4xbf16, #tpu.memory_space<vmem>>, vector<1x200x4xbf16>
    %37 = vector.shape_cast %36 : vector<1x200x4xbf16> to vector<200x4xbf16>
    %c24 = arith.constant 24 : index
    %c0_34 = arith.constant 0 : index
    %38 = vector.load %arg3[%c24, %c0_34] : memref<36x8xbf16, #tpu.memory_space<vmem>>, vector<4x8xbf16>
    %cst_35 = arith.constant dense<0.000000e+00> : vector<200x8xf32>
    %39 = tpu.matmul %37, %38, %cst_35 {dimension_numbers = #tpu.dot_dimension_numbers<[1], [0], [0], [1], [0, 0, 1, 1], [], []>} : vector<200x4xbf16>, vector<4x8xbf16>, vector<200x8xf32> -> vector<200x8xf32>
    %40 = arith.addf %35, %39 : vector<200x8xf32>
    %c0_36 = arith.constant 0 : index
    %c26 = arith.constant 26 : index
    %c0_37 = arith.constant 0 : index
    %41 = vector.load %arg1[%c0_36, %c26, %c0_37] : memref<1x232x4xbf16, #tpu.memory_space<vmem>>, vector<1x200x4xbf16>
    %42 = vector.shape_cast %41 : vector<1x200x4xbf16> to vector<200x4xbf16>
    %c28 = arith.constant 28 : index
    %c0_38 = arith.constant 0 : index
    %43 = vector.load %arg3[%c28, %c0_38] : memref<36x8xbf16, #tpu.memory_space<vmem>>, vector<4x8xbf16>
    %cst_39 = arith.constant dense<0.000000e+00> : vector<200x8xf32>
    %44 = tpu.matmul %42, %43, %cst_39 {dimension_numbers = #tpu.dot_dimension_numbers<[1], [0], [0], [1], [0, 0, 1, 1], [], []>} : vector<200x4xbf16>, vector<4x8xbf16>, vector<200x8xf32> -> vector<200x8xf32>
    %45 = arith.addf %40, %44 : vector<200x8xf32>
    %c0_40 = arith.constant 0 : index
    %c27 = arith.constant 27 : index
    %c0_41 = arith.constant 0 : index
    %46 = vector.load %arg1[%c0_40, %c27, %c0_41] : memref<1x232x4xbf16, #tpu.memory_space<vmem>>, vector<1x200x4xbf16>
    %47 = vector.shape_cast %46 : vector<1x200x4xbf16> to vector<200x4xbf16>
    %c32 = arith.constant 32 : index
    %c0_42 = arith.constant 0 : index
    %48 = vector.load %arg3[%c32, %c0_42] : memref<36x8xbf16, #tpu.memory_space<vmem>>, vector<4x8xbf16>
    %cst_43 = arith.constant dense<0.000000e+00> : vector<200x8xf32>
    %49 = tpu.matmul %47, %48, %cst_43 {dimension_numbers = #tpu.dot_dimension_numbers<[1], [0], [0], [1], [0, 0, 1, 1], [], []>} : vector<200x4xbf16>, vector<4x8xbf16>, vector<200x8xf32> -> vector<200x8xf32>
    %50 = arith.addf %45, %49 : vector<200x8xf32>
    %c0_44 = arith.constant 0 : index
    %c0_45 = arith.constant 0 : index
    %51 = vector.load %arg4[%c0_44, %c0_45] : memref<1x8xf32, #tpu.memory_space<vmem>>, vector<1x8xf32>
    %52 = vector.broadcast %51 : vector<1x8xf32> to vector<200x8xf32>
    %53 = arith.mulf %50, %52 : vector<200x8xf32>
    %c0_46 = arith.constant 0 : index
    %c0_47 = arith.constant 0 : index
    %54 = vector.load %arg5[%c0_46, %c0_47] : memref<1x8xf32, #tpu.memory_space<vmem>>, vector<1x8xf32>
    %55 = vector.broadcast %54 : vector<1x8xf32> to vector<200x8xf32>
    %56 = arith.addf %53, %55 : vector<200x8xf32>
    %cst_48 = arith.constant 0.000000e+00 : f32
    %57 = vector.broadcast %cst_48 : f32 to vector<200x8xf32>
    %58 = arith.maximumf %56, %57 : vector<200x8xf32>
    %59 = vector.broadcast %4 : vector<200x1xf32> to vector<200x8xf32>
    %60 = arith.mulf %58, %59 : vector<200x8xf32>
    %61 = arith.truncf %60 : vector<200x8xf32> to vector<200x8xbf16>
    %c16_49 = arith.constant 16 : index
    %c0_50 = arith.constant 0 : index
    %62 = vector.load %arg10[%c16_49, %c0_50] : memref<232x8xbf16, #tpu.memory_space<vmem>>, vector<200x8xbf16>
    tpu.vector_store %arg10[%c16_49, %c0_50], %61 {strides = array<i32>} : memref<232x8xbf16, #tpu.memory_space<vmem>>, vector<200x8xbf16>,
    %cst_51 = arith.constant 0.000000e+00 : f32
    %63 = vector.broadcast %cst_51 : f32 to vector<200x128xf32>
    %c5_52 = arith.constant 5 : index
    %c0_53 = arith.constant 0 : index
    %64 = vector.load %arg10[%c5_52, %c0_53] : memref<232x8xbf16, #tpu.memory_space<vmem>>, vector<200x8xbf16>
    %c0_54 = arith.constant 0 : index
    %c0_55 = arith.constant 0 : index
    %65 = vector.load %arg6[%c0_54, %c0_55] : memref<72x128xbf16, #tpu.memory_space<vmem>>, vector<8x128xbf16>
    %cst_56 = arith.constant dense<0.000000e+00> : vector<200x128xf32>
    %66 = tpu.matmul %64, %65, %cst_56 {dimension_numbers = #tpu.dot_dimension_numbers<[1], [0], [0], [1], [0, 0, 1, 1], [], []>} : vector<200x8xbf16>, vector<8x128xbf16>, vector<200x128xf32> -> vector<200x128xf32>
    %67 = arith.addf %63, %66 : vector<200x128xf32>
    %c6_57 = arith.constant 6 : index
    %c0_58 = arith.constant 0 : index
    %68 = vector.load %arg10[%c6_57, %c0_58] : memref<232x8xbf16, #tpu.memory_space<vmem>>, vector<200x8xbf16>
    %c8_59 = arith.constant 8 : index
    %c0_60 = arith.constant 0 : index
    %69 = vector.load %arg6[%c8_59, %c0_60] : memref<72x128xbf16, #tpu.memory_space<vmem>>, vector<8x128xbf16>
    %cst_61 = arith.constant dense<0.000000e+00> : vector<200x128xf32>
    %70 = tpu.matmul %68, %69, %cst_61 {dimension_numbers = #tpu.dot_dimension_numbers<[1], [0], [0], [1], [0, 0, 1, 1], [], []>} : vector<200x8xbf16>, vector<8x128xbf16>, vector<200x128xf32> -> vector<200x128xf32>
    %71 = arith.addf %67, %70 : vector<200x128xf32>
    %c7_62 = arith.constant 7 : index
    %c0_63 = arith.constant 0 : index
    %72 = vector.load %arg10[%c7_62, %c0_63] : memref<232x8xbf16, #tpu.memory_space<vmem>>, vector<200x8xbf16>
    %c16_64 = arith.constant 16 : index
    %c0_65 = arith.constant 0 : index
    %73 = vector.load %arg6[%c16_64, %c0_65] : memref<72x128xbf16, #tpu.memory_space<vmem>>, vector<8x128xbf16>
    %cst_66 = arith.constant dense<0.000000e+00> : vector<200x128xf32>
    %74 = tpu.matmul %72, %73, %cst_66 {dimension_numbers = #tpu.dot_dimension_numbers<[1], [0], [0], [1], [0, 0, 1, 1], [], []>} : vector<200x8xbf16>, vector<8x128xbf16>, vector<200x128xf32> -> vector<200x128xf32>
    %75 = arith.addf %71, %74 : vector<200x128xf32>
    %c15_67 = arith.constant 15 : index
    %c0_68 = arith.constant 0 : index
    %76 = vector.load %arg10[%c15_67, %c0_68] : memref<232x8xbf16, #tpu.memory_space<vmem>>, vector<200x8xbf16>
    %c24_69 = arith.constant 24 : index
    %c0_70 = arith.constant 0 : index
    %77 = vector.load %arg6[%c24_69, %c0_70] : memref<72x128xbf16, #tpu.memory_space<vmem>>, vector<8x128xbf16>
    %cst_71 = arith.constant dense<0.000000e+00> : vector<200x128xf32>
    %78 = tpu.matmul %76, %77, %cst_71 {dimension_numbers = #tpu.dot_dimension_numbers<[1], [0], [0], [1], [0, 0, 1, 1], [], []>} : vector<200x8xbf16>, vector<8x128xbf16>, vector<200x128xf32> -> vector<200x128xf32>
    %79 = arith.addf %75, %78 : vector<200x128xf32>
    %c16_72 = arith.constant 16 : index
    %c0_73 = arith.constant 0 : index
    %80 = vector.load %arg10[%c16_72, %c0_73] : memref<232x8xbf16, #tpu.memory_space<vmem>>, vector<200x8xbf16>
    %c32_74 = arith.constant 32 : index
    %c0_75 = arith.constant 0 : index
    %81 = vector.load %arg6[%c32_74, %c0_75] : memref<72x128xbf16, #tpu.memory_space<vmem>>, vector<8x128xbf16>
    %cst_76 = arith.constant dense<0.000000e+00> : vector<200x128xf32>
    %82 = tpu.matmul %80, %81, %cst_76 {dimension_numbers = #tpu.dot_dimension_numbers<[1], [0], [0], [1], [0, 0, 1, 1], [], []>} : vector<200x8xbf16>, vector<8x128xbf16>, vector<200x128xf32> -> vector<200x128xf32>
    %83 = arith.addf %79, %82 : vector<200x128xf32>
    %c17_77 = arith.constant 17 : index
    %c0_78 = arith.constant 0 : index
    %84 = vector.load %arg10[%c17_77, %c0_78] : memref<232x8xbf16, #tpu.memory_space<vmem>>, vector<200x8xbf16>
    %c40 = arith.constant 40 : index
    %c0_79 = arith.constant 0 : index
    %85 = vector.load %arg6[%c40, %c0_79] : memref<72x128xbf16, #tpu.memory_space<vmem>>, vector<8x128xbf16>
    %cst_80 = arith.constant dense<0.000000e+00> : vector<200x128xf32>
    %86 = tpu.matmul %84, %85, %cst_80 {dimension_numbers = #tpu.dot_dimension_numbers<[1], [0], [0], [1], [0, 0, 1, 1], [], []>} : vector<200x8xbf16>, vector<8x128xbf16>, vector<200x128xf32> -> vector<200x128xf32>
    %87 = arith.addf %83, %86 : vector<200x128xf32>
    %c25_81 = arith.constant 25 : index
    %c0_82 = arith.constant 0 : index
    %88 = vector.load %arg10[%c25_81, %c0_82] : memref<232x8xbf16, #tpu.memory_space<vmem>>, vector<200x8xbf16>
    %c48 = arith.constant 48 : index
    %c0_83 = arith.constant 0 : index
    %89 = vector.load %arg6[%c48, %c0_83] : memref<72x128xbf16, #tpu.memory_space<vmem>>, vector<8x128xbf16>
    %cst_84 = arith.constant dense<0.000000e+00> : vector<200x128xf32>
    %90 = tpu.matmul %88, %89, %cst_84 {dimension_numbers = #tpu.dot_dimension_numbers<[1], [0], [0], [1], [0, 0, 1, 1], [], []>} : vector<200x8xbf16>, vector<8x128xbf16>, vector<200x128xf32> -> vector<200x128xf32>
    %91 = arith.addf %87, %90 : vector<200x128xf32>
    %c26_85 = arith.constant 26 : index
    %c0_86 = arith.constant 0 : index
    %92 = vector.load %arg10[%c26_85, %c0_86] : memref<232x8xbf16, #tpu.memory_space<vmem>>, vector<200x8xbf16>
    %c56 = arith.constant 56 : index
    %c0_87 = arith.constant 0 : index
    %93 = vector.load %arg6[%c56, %c0_87] : memref<72x128xbf16, #tpu.memory_space<vmem>>, vector<8x128xbf16>
    %cst_88 = arith.constant dense<0.000000e+00> : vector<200x128xf32>
    %94 = tpu.matmul %92, %93, %cst_88 {dimension_numbers = #tpu.dot_dimension_numbers<[1], [0], [0], [1], [0, 0, 1, 1], [], []>} : vector<200x8xbf16>, vector<8x128xbf16>, vector<200x128xf32> -> vector<200x128xf32>
    %95 = arith.addf %91, %94 : vector<200x128xf32>
    %c27_89 = arith.constant 27 : index
    %c0_90 = arith.constant 0 : index
    %96 = vector.load %arg10[%c27_89, %c0_90] : memref<232x8xbf16, #tpu.memory_space<vmem>>, vector<200x8xbf16>
    %c64 = arith.constant 64 : index
    %c0_91 = arith.constant 0 : index
    %97 = vector.load %arg6[%c64, %c0_91] : memref<72x128xbf16, #tpu.memory_space<vmem>>, vector<8x128xbf16>
    %cst_92 = arith.constant dense<0.000000e+00> : vector<200x128xf32>
    %98 = tpu.matmul %96, %97, %cst_92 {dimension_numbers = #tpu.dot_dimension_numbers<[1], [0], [0], [1], [0, 0, 1, 1], [], []>} : vector<200x8xbf16>, vector<8x128xbf16>, vector<200x128xf32> -> vector<200x128xf32>
    %99 = arith.addf %95, %98 : vector<200x128xf32>
    %c0_93 = arith.constant 0 : index
    %c0_94 = arith.constant 0 : index
    %100 = vector.load %arg7[%c0_93, %c0_94] : memref<1x128xf32, #tpu.memory_space<vmem>>, vector<1x128xf32>
    %101 = vector.broadcast %100 : vector<1x128xf32> to vector<200x128xf32>
    %102 = arith.mulf %99, %101 : vector<200x128xf32>
    %c0_95 = arith.constant 0 : index
    %c0_96 = arith.constant 0 : index
    %103 = vector.load %arg8[%c0_95, %c0_96] : memref<1x128xf32, #tpu.memory_space<vmem>>, vector<1x128xf32>
    %104 = vector.broadcast %103 : vector<1x128xf32> to vector<200x128xf32>
    %105 = arith.addf %102, %104 : vector<200x128xf32>
    %cst_97 = arith.constant 0.000000e+00 : f32
    %106 = vector.broadcast %cst_97 : f32 to vector<200x128xf32>
    %107 = arith.maximumf %105, %106 : vector<200x128xf32>
    %c0_98 = arith.constant 0 : index
    %c0_99 = arith.constant 0 : index
    %c0_100 = arith.constant 0 : index
    %108 = vector.load %arg9[%c0_98, %c0_99, %c0_100] : memref<1x200x128xf32, #tpu.memory_space<vmem>>, vector<1x200x128xf32>
    %109 = vector.shape_cast %108 : vector<1x200x128xf32> to vector<200x128xf32>
    %110 = vector.shape_cast %107 : vector<200x128xf32> to vector<1x200x128xf32>
    tpu.vector_store %arg9[%c0_98, %c0_99, %c0_100], %110 {strides = array<i32>} : memref<1x200x128xf32, #tpu.memory_space<vmem>>, vector<1x200x128xf32>,
    return
  }
  func.func @transform_0(%arg0: i32) -> (i32, i32, i32) {
    %c0_i32 = arith.constant 0 : i32
    %c0_i32_0 = arith.constant 0 : i32
    %c0_i32_1 = arith.constant 0 : i32
    return %arg0, %c0_i32, %c0_i32_0 : i32, i32, i32
  }
  func.func @transform_1(%arg0: i32) -> (i32, i32) {
    %c0_i32 = arith.constant 0 : i32
    %c0_i32_0 = arith.constant 0 : i32
    %c0_i32_1 = arith.constant 0 : i32
    return %c0_i32, %c0_i32_0 : i32, i32
  }
  func.func @transform_2(%arg0: i32) -> (i32, i32) {
    %c0_i32 = arith.constant 0 : i32
    %c0_i32_0 = arith.constant 0 : i32
    %c0_i32_1 = arith.constant 0 : i32
    return %c0_i32, %c0_i32_0 : i32, i32
  }
  func.func @transform_3(%arg0: i32) -> (i32, i32) {
    %c0_i32 = arith.constant 0 : i32
    %c0_i32_0 = arith.constant 0 : i32
    %c0_i32_1 = arith.constant 0 : i32
    return %c0_i32, %c0_i32_0 : i32, i32
  }
  func.func @transform_4(%arg0: i32) -> (i32, i32) {
    %c0_i32 = arith.constant 0 : i32
    %c0_i32_0 = arith.constant 0 : i32
    %c0_i32_1 = arith.constant 0 : i32
    return %c0_i32, %c0_i32_0 : i32, i32
  }
  func.func @transform_5(%arg0: i32) -> (i32, i32) {
    %c0_i32 = arith.constant 0 : i32
    %c0_i32_0 = arith.constant 0 : i32
    %c0_i32_1 = arith.constant 0 : i32
    return %c0_i32, %c0_i32_0 : i32, i32
  }
  func.func @transform_6(%arg0: i32) -> (i32, i32) {
    %c0_i32 = arith.constant 0 : i32
    %c0_i32_0 = arith.constant 0 : i32
    %c0_i32_1 = arith.constant 0 : i32
    return %c0_i32, %c0_i32_0 : i32, i32
  }
  func.func @transform_7(%arg0: i32) -> (i32, i32) {
    %c0_i32 = arith.constant 0 : i32
    %c0_i32_0 = arith.constant 0 : i32
    %c0_i32_1 = arith.constant 0 : i32
    return %c0_i32, %c0_i32_0 : i32, i32
  }
  func.func @transform_8(%arg0: i32) -> (i32, i32, i32) {
    %c0_i32 = arith.constant 0 : i32
    %c0_i32_0 = arith.constant 0 : i32
    %c0_i32_1 = arith.constant 0 : i32
    return %arg0, %c0_i32, %c0_i32_0 : i32, i32, i32
  }
}

</mosaic_0001>

<llo_original>
// kernel: tpu_custom_call.1
$region0: #{tpu_custom_call.1}
  #allocation0 [shape = 'u32[]', space=smem, size = 0x4, offset = 0x4, fixed_abs, tag = 'smem constant byte address 0x4 - core index']
  #allocation1 [shape = 'u32[144,128]{1,0:T(1,128)}', space=vmem, size = 0x12000, scoped, tag = 'internal scratch']
  #allocation2 [shape = 'bf16[232,8]{1,0:T(8,128)(2,1)}', space=vmem, size = 0xe800, scoped, tag = 'scratch operand']
  %s0 = inlined_call_operand.vmem [shape: bf16[1,232,4], index: 0, kind: input, shape index: {}]
  %s1 = inlined_call_operand.vmem [shape: f32[200,1], index: 1, kind: input, shape index: {}]
  %s2 = inlined_call_operand.vmem [shape: bf16[36,8], index: 2, kind: input, shape index: {}]
  %s3 = inlined_call_operand.vmem [shape: f32[1,8], index: 3, kind: input, shape index: {}]
  %s4 = inlined_call_operand.vmem [shape: f32[1,8], index: 4, kind: input, shape index: {}]
  %s5 = inlined_call_operand.vmem [shape: bf16[72,128], index: 5, kind: input, shape index: {}]
  %s6 = inlined_call_operand.vmem [shape: f32[1,128], index: 6, kind: input, shape index: {}]
  %s7 = inlined_call_operand.vmem [shape: f32[1,128], index: 7, kind: input, shape index: {}]
  %s8 = inlined_call_operand.hbm [shape: f32[1,200,128], index: 8, kind: output, shape index: {}]
  %s9 = sld [smem:[#allocation0]]
  $region42: #{tpu_custom_call.1} parent=0
    _
  %s11 = ssub.s32 1, %s9
  %s12 = scalar_select 0, %s11, %s9
  $region1: #{tpu_custom_call.1} parent=0
    #allocation3 [shape = 'u8[102400]{0}', space=vmem, size = 0x19000, scoped, tag = 'output window, operand 0, single buffered']
    #allocation4 [shape = 's32[1]{0}', space=sflag, size = 0x4, scoped, tag = 'scoped memory for tpu_custom_call.1']
    %13 = vsyncpa [#allocation4], 0
    // Predicated region
    $region2: #{tpu_custom_call.1} parent=1 // pred_check
      _
    $region3: #{tpu_custom_call.1} parent=1 // pred_check_branch
      %15 = sbr.rel (0) target = $region5
    $region4: #{tpu_custom_call.1} parent=1 // pred_region
      _
    $region5: #{tpu_custom_call.1} parent=1 // pred_fallthru
      _
    // Predicated region
    $region6: #{tpu_custom_call.1} parent=1 // pred_check
      _
    $region7: #{tpu_custom_call.1} parent=1 // pred_check_branch
      %17 = sbr.rel (0) target = $region9
    $region8: #{tpu_custom_call.1} parent=1 // pred_region
      _
    $region9: #{tpu_custom_call.1} parent=1 // pred_fallthru
      _
    // Predicated region
    $region10: #{tpu_custom_call.1} parent=1 // pred_check
      _
    $region11: #{tpu_custom_call.1} parent=1 // pred_check_branch
      %19 = sbr.rel (0) target = $region13
    $region12: #{tpu_custom_call.1} parent=1 // pred_region
      _
    $region13: #{tpu_custom_call.1} parent=1 // pred_fallthru
      _
    // Predicated region
    $region14: #{tpu_custom_call.1} parent=1 // pred_check
      _
    $region15: #{tpu_custom_call.1} parent=1 // pred_check_branch
      %21 = sbr.rel (0) target = $region17
    $region16: #{tpu_custom_call.1} parent=1 // pred_region
      _
    $region17: #{tpu_custom_call.1} parent=1 // pred_fallthru
      _
    // Predicated region
    $region18: #{tpu_custom_call.1} parent=1 // pred_check
      _
    $region19: #{tpu_custom_call.1} parent=1 // pred_check_branch
      %23 = sbr.rel (0) target = $region21
    $region20: #{tpu_custom_call.1} parent=1 // pred_region
      _
    $region21: #{tpu_custom_call.1} parent=1 // pred_fallthru
      _
    // Predicated region
    $region22: #{tpu_custom_call.1} parent=1 // pred_check
      _
    $region23: #{tpu_custom_call.1} parent=1 // pred_check_branch
      %25 = sbr.rel (0) target = $region25
    $region24: #{tpu_custom_call.1} parent=1 // pred_region
      _
    $region25: #{tpu_custom_call.1} parent=1 // pred_fallthru
      _
    // Predicated region
    $region26: #{tpu_custom_call.1} parent=1 // pred_check
      _
    $region27: #{tpu_custom_call.1} parent=1 // pred_check_branch
      %27 = sbr.rel (0) target = $region29
    $region28: #{tpu_custom_call.1} parent=1 // pred_region
      _
    $region29: #{tpu_custom_call.1} parent=1 // pred_fallthru
      _
    // Predicated region
    $region30: #{tpu_custom_call.1} parent=1 // pred_check
      _
    $region31: #{tpu_custom_call.1} parent=1 // pred_check_branch
      %29 = sbr.rel (0) target = $region33
    $region32: #{tpu_custom_call.1} parent=1 // pred_region
      _
    $region33: #{tpu_custom_call.1} parent=1 // pred_fallthru
      _
    %vm31 = vcmask 60416
    %32 = vst.msk [vmem:[#allocation2] sm:$0xf] %vm31, 0
    %33 = vst.msk [vmem:[#allocation2 + $0x4] sm:$0xf] %vm31, 0
    %34 = vst.msk [vmem:[#allocation2 + $0x6c] sm:$0xf] %vm31, 0
    %35 = vst.msk [vmem:[#allocation2 + $0x70] sm:$0xf] %vm31, 0
    %v36 = vld [vmem:[%s1] sm:$0xff]
    %v37 = vld [vmem:[%s1 + $0x8] sm:$0xff]
    %v38 = vld [vmem:[%s1 + $0x10] sm:$0xff]
    %v39 = vld [vmem:[%s1 + $0x18] sm:$0xff]
    %v40 = vld [vmem:[%s1 + $0x20] sm:$0xff]
    %v41 = vld [vmem:[%s1 + $0x28] sm:$0xff]
    %v42 = vld [vmem:[%s1 + $0x30] sm:$0xff]
    %v43 = vld [vmem:[%s1 + $0x38] sm:$0xff]
    %v44 = vld [vmem:[%s1 + $0x40] sm:$0xff]
    %v45 = vld [vmem:[%s1 + $0x48] sm:$0xff]
    %v46 = vld [vmem:[%s1 + $0x50] sm:$0xff]
    %v47 = vld [vmem:[%s1 + $0x58] sm:$0xff]
    %v48 = vld [vmem:[%s1 + $0x60] sm:$0xff]
    %v49 = vld [vmem:[%s1 + $0x68] sm:$0xff]
    %v50 = vld [vmem:[%s1 + $0x70] sm:$0xff]
    %v51 = vld [vmem:[%s1 + $0x78] sm:$0xff]
    %v52 = vld [vmem:[%s1 + $0x80] sm:$0xff]
    %v53 = vld [vmem:[%s1 + $0x88] sm:$0xff]
    %v54 = vld [vmem:[%s1 + $0x90] sm:$0xff]
    %v55 = vld [vmem:[%s1 + $0x98] sm:$0xff]
    %v56 = vld [vmem:[%s1 + $0xa0] sm:$0xff]
    %v57 = vld [vmem:[%s1 + $0xa8] sm:$0xff]
    %v58 = vld [vmem:[%s1 + $0xb0] sm:$0xff]
    %v59 = vld [vmem:[%s1 + $0xb8] sm:$0xff]
    %v60 = vld [vmem:[%s1 + $0xc0] sm:$0xff]
    %v61 = vld [vmem:[%s0] sm:$0xc]
    %v62 = vld [vmem:[%s0 + $0x4] sm:$0xf]
    %v63 = vld [vmem:[%s0 + $0x8] sm:$0xf]
    %v64 = vld [vmem:[%s0 + $0xc] sm:$0xf]
    %v65 = vld [vmem:[%s0 + $0x10] sm:$0xf]
    %v66 = vld [vmem:[%s0 + $0x14] sm:$0xf]
    %v67 = vld [vmem:[%s0 + $0x18] sm:$0xf]
    %v68 = vld [vmem:[%s0 + $0x1c] sm:$0xf]
    %v69 = vld [vmem:[%s0 + $0x20] sm:$0xf]
    %v70 = vld [vmem:[%s0 + $0x24] sm:$0xf]
    %v71 = vld [vmem:[%s0 + $0x28] sm:$0xf]
    %v72 = vld [vmem:[%s0 + $0x2c] sm:$0xf]
    %v73 = vld [vmem:[%s0 + $0x30] sm:$0xf]
    %v74 = vld [vmem:[%s0 + $0x34] sm:$0xf]
    %v75 = vld [vmem:[%s0 + $0x38] sm:$0xf]
    %v76 = vld [vmem:[%s0 + $0x3c] sm:$0xf]
    %v77 = vld [vmem:[%s0 + $0x40] sm:$0xf]
    %v78 = vld [vmem:[%s0 + $0x44] sm:$0xf]
    %v79 = vld [vmem:[%s0 + $0x48] sm:$0xf]
    %v80 = vld [vmem:[%s0 + $0x4c] sm:$0xf]
    %v81 = vld [vmem:[%s0 + $0x50] sm:$0xf]
    %v82 = vld [vmem:[%s0 + $0x54] sm:$0xf]
    %v83 = vld [vmem:[%s0 + $0x58] sm:$0xf]
    %v84 = vld [vmem:[%s0 + $0x5c] sm:$0xf]
    %v85 = vld [vmem:[%s0 + $0x60] sm:$0xf]
    %v86 = vld [vmem:[%s0 + $0x64] sm:$0x7]
    %v87 = vld [vmem:[%s2] sm:$0x3]
    %v88 = vld [vmem:[%s0] sm:$0x8]
    %v89 = vld [vmem:[%s2] sm:$0xc]
    %v116 = vunpack.c.l.b16 %v88
    %v117 = vunpack.c.l.b16 %v62
    %v118 = vunpack.c.l.b16 %v63
    %v119 = vunpack.c.l.b16 %v64
    %v120 = vunpack.c.l.b16 %v65
    %v121 = vunpack.c.l.b16 %v66
    %v122 = vunpack.c.l.b16 %v67
    %v123 = vunpack.c.l.b16 %v68
    %v124 = vunpack.c.l.b16 %v69
    %v125 = vunpack.c.l.b16 %v70
    %v126 = vunpack.c.l.b16 %v71
    %v127 = vunpack.c.l.b16 %v72
    %v128 = vunpack.c.l.b16 %v73
    %v129 = vunpack.c.l.b16 %v74
    %v130 = vunpack.c.l.b16 %v75
    %v131 = vunpack.c.l.b16 %v76
    %v132 = vunpack.c.l.b16 %v77
    %v133 = vunpack.c.l.b16 %v78
    %v134 = vunpack.c.l.b16 %v79
    %v135 = vunpack.c.l.b16 %v80
    %v136 = vunpack.c.l.b16 %v81
    %v137 = vunpack.c.l.b16 %v82
    %v138 = vunpack.c.l.b16 %v83
    %v139 = vunpack.c.l.b16 %v84
    %v140 = vunpack.c.l.b16 %v85
    %v141 = vunpack.c.l.b16 %v86
    %v142 = vpack.c.b16 %v117, %v116
    %v143 = vpack.c.b16 %v119, %v118
    %v144 = vpack.c.b16 %v121, %v120
    %v145 = vpack.c.b16 %v123, %v122
    %v146 = vpack.c.b16 %v125, %v124
    %v147 = vpack.c.b16 %v127, %v126
    %v148 = vpack.c.b16 %v129, %v128
    %v149 = vpack.c.b16 %v131, %v130
    %v150 = vpack.c.b16 %v133, %v132
    %v151 = vpack.c.b16 %v135, %v134
    %v152 = vpack.c.b16 %v137, %v136
    %v153 = vpack.c.b16 %v139, %v138
    %v154 = vpack.c.b16 %v141, %v140
    %vm155 = vcmask 1044480
    %v156 = vrot.slane %v142, 3
    %v157 = vrot.slane %v143, 3
    %v158 = vsel %vm155, %v156, %v157
    %v159 = vrot.slane %v144, 3
    %v160 = vsel %vm155, %v157, %v159
    %v161 = vrot.slane %v145, 3
    %v162 = vsel %vm155, %v159, %v161
    %v163 = vrot.slane %v146, 3
    %v164 = vsel %vm155, %v161, %v163
    %v165 = vrot.slane %v147, 3
    %v166 = vsel %vm155, %v163, %v165
    %v167 = vrot.slane %v148, 3
    %v168 = vsel %vm155, %v165, %v167
    %v169 = vrot.slane %v149, 3
    %v170 = vsel %vm155, %v167, %v169
    %v171 = vrot.slane %v150, 3
    %v172 = vsel %vm155, %v169, %v171
    %v173 = vrot.slane %v151, 3
    %v174 = vsel %vm155, %v171, %v173
    %v175 = vrot.slane %v152, 3
    %v176 = vsel %vm155, %v173, %v175
    %v177 = vrot.slane %v153, 3
    %v178 = vsel %vm155, %v175, %v177
    %v179 = vrot.slane %v154, 3
    %v180 = vsel %vm155, %v177, %v179
    %v182 = vunpack.c.l.b16 %v89
    %v183 = vpack.c.b16 %v182, %v182
    %v184 = vrot.slane %v183, 2
    %vm185 = vcmask 31744
    %v187 = vsel %vm185, %v158, 0
    %v190 = vsel %vm185, %v160, 0
    %v193 = vsel %vm185, %v162, 0
    %v196 = vsel %vm185, %v164, 0
    %v199 = vsel %vm185, %v166, 0
    %v202 = vsel %vm185, %v168, 0
    %v205 = vsel %vm185, %v170, 0
    %v208 = vsel %vm185, %v172, 0
    %v211 = vsel %vm185, %v174, 0
    %v214 = vsel %vm185, %v176, 0
    %v217 = vsel %vm185, %v178, 0
    %v220 = vsel %vm185, %v180, 0
    %v223 = vsel %vm185, %v179, 0
    %vm225 = vcmask 1041408
    %v227 = vsel %vm225, %v184, 0
    %229 = vmatprep.subr.bf16.mxu0 0
    %230 = vmatpush1.bf16.msra.mxu0 0
    %231 = vmatprep.subr.bf16.mxu0 0
    %232 = vmatpush1.bf16.msra.mxu0 0
    %233 = vmatprep.subr.bf16.mxu0 0
    %234 = vmatpush1.bf16.msra.mxu0 0
    %235 = vmatprep.subr.bf16.mxu0 0
    %236 = vmatpush1.bf16.msra.mxu0 0
    %237 = vmatprep.subr.bf16.mxu0 0
    %238 = vmatpush1.bf16.msra.mxu0 0
    %239 = vmatprep.subr.bf16.mxu0 0
    %240 = vmatpush1.bf16.msra.mxu0 0
    %241 = vmatprep.subr.bf16.mxu0 0
    %242 = vmatpush1.bf16.msra.mxu0 0
    %243 = vmatprep.subr.bf16.mxu0 0
    %244 = vmatpush1.bf16.msra.mxu0 %v227
    %245 = vmatprep.subr.bf16.mxu0 0
    %246 = vmatpush2.bf16.msra.mxu0 0
    %247 = vmatprep.subr.bf16.mxu0 0
    %248 = vmatpush2.bf16.msra.mxu0 0
    %249 = vmatprep.subr.bf16.mxu0 0
    %250 = vmatpush2.bf16.msra.mxu0 0
    %251 = vmatprep.subr.bf16.mxu0 0
    %252 = vmatpush2.bf16.msra.mxu0 0
    %253 = vmatprep.subr.bf16.mxu0 0
    %254 = vmatpush2.bf16.msra.mxu0 0
    %255 = vmatprep.subr.bf16.mxu0 0
    %256 = vmatpush2.bf16.msra.mxu0 0
    %257 = vmatprep.subr.bf16.mxu0 0
    %258 = vmatpush2.bf16.msra.mxu0 0
    %259 = vmatprep.subr.bf16.mxu0 0
    %260 = vmatpush2.bf16.msra.mxu0 0
    %261 = vmatprep.mubr.bf16.mxu0 0
    %262 = vmatmul.mubr.bf16.gmra.mxu0 %v187
    %v263 = vpop.f32.mrf.mxu0
    %v264 = vadd.f32 0.0, %v263
    %v265 = vpop.f32.mrf.mxu0
    %v266 = vpop.f32.mrf.mxu0
    %v267 = vadd.f32 0.0, %v266
    %v268 = vpop.f32.mrf.mxu0
    %269 = vmatprep.mubr.bf16.mxu0 0
    %270 = vmatmul.mubr.bf16.gmra.mxu0 %v190
    %v271 = vpop.f32.mrf.mxu0
    %v272 = vadd.f32 0.0, %v271
    %v273 = vpop.f32.mrf.mxu0
    %v274 = vpop.f32.mrf.mxu0
    %v275 = vadd.f32 0.0, %v274
    %v276 = vpop.f32.mrf.mxu0
    %277 = vmatprep.mubr.bf16.mxu0 0
    %278 = vmatmul.mubr.bf16.gmra.mxu0 %v193
    %v279 = vpop.f32.mrf.mxu0
    %v280 = vadd.f32 0.0, %v279
    %v281 = vpop.f32.mrf.mxu0
    %v282 = vpop.f32.mrf.mxu0
    %v283 = vadd.f32 0.0, %v282
    %v284 = vpop.f32.mrf.mxu0
    %285 = vmatprep.mubr.bf16.mxu0 0
    %286 = vmatmul.mubr.bf16.gmra.mxu0 %v196
    %v287 = vpop.f32.mrf.mxu0
    %v288 = vadd.f32 0.0, %v287
    %v289 = vpop.f32.mrf.mxu0
    %v290 = vpop.f32.mrf.mxu0
    %v291 = vadd.f32 0.0, %v290
    %v292 = vpop.f32.mrf.mxu0
    %293 = vmatprep.mubr.bf16.mxu0 0
    %294 = vmatmul.mubr.bf16.gmra.mxu0 %v199
    %v295 = vpop.f32.mrf.mxu0
    %v296 = vadd.f32 0.0, %v295
    %v297 = vpop.f32.mrf.mxu0
    %v298 = vpop.f32.mrf.mxu0
    %v299 = vadd.f32 0.0, %v298
    %v300 = vpop.f32.mrf.mxu0
    %301 = vmatprep.mubr.bf16.mxu0 0
    %302 = vmatmul.mubr.bf16.gmra.mxu0 %v202
    %v303 = vpop.f32.mrf.mxu0
    %v304 = vadd.f32 0.0, %v303
    %v305 = vpop.f32.mrf.mxu0
    %v306 = vpop.f32.mrf.mxu0
    %v307 = vadd.f32 0.0, %v306
    %v308 = vpop.f32.mrf.mxu0
    %309 = vmatprep.mubr.bf16.mxu0 0
    %310 = vmatmul.mubr.bf16.gmra.mxu0 %v205
    %v311 = vpop.f32.mrf.mxu0
    %v312 = vadd.f32 0.0, %v311
    %v313 = vpop.f32.mrf.mxu0
    %v314 = vpop.f32.mrf.mxu0
    %v315 = vadd.f32 0.0, %v314
    %v316 = vpop.f32.mrf.mxu0
    %317 = vmatprep.mubr.bf16.mxu0 0
    %318 = vmatmul.mubr.bf16.gmra.mxu0 %v208
    %v319 = vpop.f32.mrf.mxu0
    %v320 = vadd.f32 0.0, %v319
    %v321 = vpop.f32.mrf.mxu0
    %v322 = vpop.f32.mrf.mxu0
    %v323 = vadd.f32 0.0, %v322
    %v324 = vpop.f32.mrf.mxu0
    %325 = vmatprep.mubr.bf16.mxu0 0
    %326 = vmatmul.mubr.bf16.gmra.mxu0 %v211
    %v327 = vpop.f32.mrf.mxu0
    %v328 = vadd.f32 0.0, %v327
    %v329 = vpop.f32.mrf.mxu0
    %v330 = vpop.f32.mrf.mxu0
    %v331 = vadd.f32 0.0, %v330
    %v332 = vpop.f32.mrf.mxu0
    %333 = vmatprep.mubr.bf16.mxu0 0
    %334 = vmatmul.mubr.bf16.gmra.mxu0 %v214
    %v335 = vpop.f32.mrf.mxu0
    %v336 = vadd.f32 0.0, %v335
    %v337 = vpop.f32.mrf.mxu0
    %v338 = vpop.f32.mrf.mxu0
    %v339 = vadd.f32 0.0, %v338
    %v340 = vpop.f32.mrf.mxu0
    %341 = vmatprep.mubr.bf16.mxu0 0
    %342 = vmatmul.mubr.bf16.gmra.mxu0 %v217
    %v343 = vpop.f32.mrf.mxu0
    %v344 = vadd.f32 0.0, %v343
    %v345 = vpop.f32.mrf.mxu0
    %v346 = vpop.f32.mrf.mxu0
    %v347 = vadd.f32 0.0, %v346
    %v348 = vpop.f32.mrf.mxu0
    %349 = vmatprep.mubr.bf16.mxu0 0
    %350 = vmatmul.mubr.bf16.gmra.mxu0 %v220
    %v351 = vpop.f32.mrf.mxu0
    %v352 = vadd.f32 0.0, %v351
    %v353 = vpop.f32.mrf.mxu0
    %v354 = vpop.f32.mrf.mxu0
    %v355 = vadd.f32 0.0, %v354
    %v356 = vpop.f32.mrf.mxu0
    %357 = vmatprep.mubr.bf16.mxu0 0
    %358 = vmatmul.mubr.bf16.gmra.mxu0 %v223
    %v359 = vpop.f32.mrf.mxu0
    %v360 = vadd.f32 0.0, %v359
    %v361 = vpop.f32.mrf.mxu0
    %v362 = vpop.f32.mrf.mxu0
    %v363 = vpop.f32.mrf.mxu0
    %364 = vdwg.mxu0
    %v366 = vunpack.c.l.b16 %v61
    %v367 = vpack.c.b16 %v117, %v366
    %vm368 = vsmask.f32 5376
    %v370 = vshrl.u32 %v367, 16
    %v372 = vrot.slane %v370, 2
    %v373 = vshll.u32 %v367, 16
    %v375 = vrot.slane %v373, 3
    %v376 = vor.u32 %v372, %v375
    %v378 = vshrl.u32 %v143, 16
    %v380 = vrot.slane %v378, 2
    %v381 = vshll.u32 %v143, 16
    %v383 = vrot.slane %v381, 3
    %v384 = vor.u32 %v380, %v383
    %v385 = vsel %vm368, %v376, %v384
    %v387 = vshrl.u32 %v144, 16
    %v389 = vrot.slane %v387, 2
    %v390 = vshll.u32 %v144, 16
    %v392 = vrot.slane %v390, 3
    %v393 = vor.u32 %v389, %v392
    %v394 = vsel %vm368, %v384, %v393
    %v396 = vshrl.u32 %v145, 16
    %v398 = vrot.slane %v396, 2
    %v399 = vshll.u32 %v145, 16
    %v401 = vrot.slane %v399, 3
    %v402 = vor.u32 %v398, %v401
    %v403 = vsel %vm368, %v393, %v402
    %v405 = vshrl.u32 %v146, 16
    %v407 = vrot.slane %v405, 2
    %v408 = vshll.u32 %v146, 16
    %v410 = vrot.slane %v408, 3
    %v411 = vor.u32 %v407, %v410
    %v412 = vsel %vm368, %v402, %v411
    %v414 = vshrl.u32 %v147, 16
    %v416 = vrot.slane %v414, 2
    %v417 = vshll.u32 %v147, 16
    %v419 = vrot.slane %v417, 3
    %v420 = vor.u32 %v416, %v419
    %v421 = vsel %vm368, %v411, %v420
    %v423 = vshrl.u32 %v148, 16
    %v425 = vrot.slane %v423, 2
    %v426 = vshll.u32 %v148, 16
    %v428 = vrot.slane %v426, 3
    %v429 = vor.u32 %v425, %v428
    %v430 = vsel %vm368, %v420, %v429
    %v432 = vshrl.u32 %v149, 16
    %v434 = vrot.slane %v432, 2
    %v435 = vshll.u32 %v149, 16
    %v437 = vrot.slane %v435, 3
    %v438 = vor.u32 %v434, %v437
    %v439 = vsel %vm368, %v429, %v438
    %v441 = vshrl.u32 %v150, 16
    %v443 = vrot.slane %v441, 2
    %v444 = vshll.u32 %v150, 16
    %v446 = vrot.slane %v444, 3
    %v447 = vor.u32 %v443, %v446
    %v448 = vsel %vm368, %v438, %v447
    %v450 = vshrl.u32 %v151, 16
    %v452 = vrot.slane %v450, 2
    %v453 = vshll.u32 %v151, 16
    %v455 = vrot.slane %v453, 3
    %v456 = vor.u32 %v452, %v455
    %v457 = vsel %vm368, %v447, %v456
    %v459 = vshrl.u32 %v152, 16
    %v461 = vrot.slane %v459, 2
    %v462 = vshll.u32 %v152, 16
    %v464 = vrot.slane %v462, 3
    %v465 = vor.u32 %v461, %v464
    %v466 = vsel %vm368, %v456, %v465
    %v468 = vshrl.u32 %v153, 16
    %v470 = vrot.slane %v468, 2
    %v471 = vshll.u32 %v153, 16
    %v473 = vrot.slane %v471, 3
    %v474 = vor.u32 %v470, %v473
    %v475 = vsel %vm368, %v465, %v474
    %v477 = vshrl.u32 %v154, 16
    %v479 = vrot.slane %v477, 2
    %v480 = vshll.u32 %v154, 16
    %v482 = vrot.slane %v480, 3
    %v483 = vor.u32 %v479, %v482
    %v484 = vsel %vm368, %v474, %v483
    %v486 = vsel %vm185, %v385, 0
    %v489 = vsel %vm185, %v394, 0
    %v492 = vsel %vm185, %v403, 0
    %v495 = vsel %vm185, %v412, 0
    %v498 = vsel %vm185, %v421, 0
    %v501 = vsel %vm185, %v430, 0
    %v504 = vsel %vm185, %v439, 0
    %v507 = vsel %vm185, %v448, 0
    %v510 = vsel %vm185, %v457, 0
    %v513 = vsel %vm185, %v466, 0
    %v516 = vsel %vm185, %v475, 0
    %v519 = vsel %vm185, %v484, 0
    %v522 = vsel %vm185, %v483, 0
    %v525 = vsel %vm225, %v87, 0
    %527 = vmatprep.subr.bf16.mxu0 0
    %528 = vmatpush1.bf16.msra.mxu0 0
    %529 = vmatprep.subr.bf16.mxu0 0
    %530 = vmatpush1.bf16.msra.mxu0 0
    %531 = vmatprep.subr.bf16.mxu0 0
    %532 = vmatpush1.bf16.msra.mxu0 0
    %533 = vmatprep.subr.bf16.mxu0 0
    %534 = vmatpush1.bf16.msra.mxu0 0
    %535 = vmatprep.subr.bf16.mxu0 0
    %536 = vmatpush1.bf16.msra.mxu0 0
    %537 = vmatprep.subr.bf16.mxu0 0
    %538 = vmatpush1.bf16.msra.mxu0 0
    %539 = vmatprep.subr.bf16.mxu0 0
    %540 = vmatpush1.bf16.msra.mxu0 0
    %541 = vmatprep.subr.bf16.mxu0 0
    %542 = vmatpush1.bf16.msra.mxu0 %v525
    %543 = vmatprep.subr.bf16.mxu0 0
    %544 = vmatpush2.bf16.msra.mxu0 0
    %545 = vmatprep.subr.bf16.mxu0 0
    %546 = vmatpush2.bf16.msra.mxu0 0
    %547 = vmatprep.subr.bf16.mxu0 0
    %548 = vmatpush2.bf16.msra.mxu0 0
    %549 = vmatprep.subr.bf16.mxu0 0
    %550 = vmatpush2.bf16.msra.mxu0 0
    %551 = vmatprep.subr.bf16.mxu0 0
    %552 = vmatpush2.bf16.msra.mxu0 0
    %553 = vmatprep.subr.bf16.mxu0 0
    %554 = vmatpush2.bf16.msra.mxu0 0
    %555 = vmatprep.subr.bf16.mxu0 0
    %556 = vmatpush2.bf16.msra.mxu0 0
    %557 = vmatprep.subr.bf16.mxu0 0
    %558 = vmatpush2.bf16.msra.mxu0 0
    %559 = vmatprep.mubr.bf16.mxu0 0
    %560 = vmatmul.mubr.bf16.gmra.mxu0 %v486
    %v561 = vpop.f32.mrf.mxu0
    %v562 = vadd.f32 %v264, %v561
    %v563 = vpop.f32.mrf.mxu0
    %v564 = vpop.f32.mrf.mxu0
    %v565 = vadd.f32 %v267, %v564
    %v566 = vpop.f32.mrf.mxu0
    %567 = vmatprep.mubr.bf16.mxu0 0
    %568 = vmatmul.mubr.bf16.gmra.mxu0 %v489
    %v569 = vpop.f32.mrf.mxu0
    %v570 = vadd.f32 %v272, %v569
    %v571 = vpop.f32.mrf.mxu0
    %v572 = vpop.f32.mrf.mxu0
    %v573 = vadd.f32 %v275, %v572
    %v574 = vpop.f32.mrf.mxu0
    %575 = vmatprep.mubr.bf16.mxu0 0
    %576 = vmatmul.mubr.bf16.gmra.mxu0 %v492
    %v577 = vpop.f32.mrf.mxu0
    %v578 = vadd.f32 %v280, %v577
    %v579 = vpop.f32.mrf.mxu0
    %v580 = vpop.f32.mrf.mxu0
    %v581 = vadd.f32 %v283, %v580
    %v582 = vpop.f32.mrf.mxu0
    %583 = vmatprep.mubr.bf16.mxu0 0
    %584 = vmatmul.mubr.bf16.gmra.mxu0 %v495
    %v585 = vpop.f32.mrf.mxu0
    %v586 = vadd.f32 %v288, %v585
    %v587 = vpop.f32.mrf.mxu0
    %v588 = vpop.f32.mrf.mxu0
    %v589 = vadd.f32 %v291, %v588
    %v590 = vpop.f32.mrf.mxu0
    %591 = vmatprep.mubr.bf16.mxu0 0
    %592 = vmatmul.mubr.bf16.gmra.mxu0 %v498
    %v593 = vpop.f32.mrf.mxu0
    %v594 = vadd.f32 %v296, %v593
    %v595 = vpop.f32.mrf.mxu0
    %v596 = vpop.f32.mrf.mxu0
    %v597 = vadd.f32 %v299, %v596
    %v598 = vpop.f32.mrf.mxu0
    %599 = vmatprep.mubr.bf16.mxu0 0
    %600 = vmatmul.mubr.bf16.gmra.mxu0 %v501
    %v601 = vpop.f32.mrf.mxu0
    %v602 = vadd.f32 %v304, %v601
    %v603 = vpop.f32.mrf.mxu0
    %v604 = vpop.f32.mrf.mxu0
    %v605 = vadd.f32 %v307, %v604
    %v606 = vpop.f32.mrf.mxu0
    %607 = vmatprep.mubr.bf16.mxu0 0
    %608 = vmatmul.mubr.bf16.gmra.mxu0 %v504
    %v609 = vpop.f32.mrf.mxu0
    %v610 = vadd.f32 %v312, %v609
    %v611 = vpop.f32.mrf.mxu0
    %v612 = vpop.f32.mrf.mxu0
    %v613 = vadd.f32 %v315, %v612
    %v614 = vpop.f32.mrf.mxu0
    %615 = vmatprep.mubr.bf16.mxu0 0
    %616 = vmatmul.mubr.bf16.gmra.mxu0 %v507
    %v617 = vpop.f32.mrf.mxu0
    %v618 = vadd.f32 %v320, %v617
    %v619 = vpop.f32.mrf.mxu0
    %v620 = vpop.f32.mrf.mxu0
    %v621 = vadd.f32 %v323, %v620
    %v622 = vpop.f32.mrf.mxu0
    %623 = vmatprep.mubr.bf16.mxu0 0
    %624 = vmatmul.mubr.bf16.gmra.mxu0 %v510
    %v625 = vpop.f32.mrf.mxu0
    %v626 = vadd.f32 %v328, %v625
    %v627 = vpop.f32.mrf.mxu0
    %v628 = vpop.f32.mrf.mxu0
    %v629 = vadd.f32 %v331, %v628
    %v630 = vpop.f32.mrf.mxu0
    %631 = vmatprep.mubr.bf16.mxu0 0
    %632 = vmatmul.mubr.bf16.gmra.mxu0 %v513
    %v633 = vpop.f32.mrf.mxu0
    %v634 = vadd.f32 %v336, %v633
    %v635 = vpop.f32.mrf.mxu0
    %v636 = vpop.f32.mrf.mxu0
    %v637 = vadd.f32 %v339, %v636
    %v638 = vpop.f32.mrf.mxu0
    %639 = vmatprep.mubr.bf16.mxu0 0
    %640 = vmatmul.mubr.bf16.gmra.mxu0 %v516
    %v641 = vpop.f32.mrf.mxu0
    %v642 = vadd.f32 %v344, %v641
    %v643 = vpop.f32.mrf.mxu0
    %v644 = vpop.f32.mrf.mxu0
    %v645 = vadd.f32 %v347, %v644
    %v646 = vpop.f32.mrf.mxu0
    %647 = vmatprep.mubr.bf16.mxu0 0
    %648 = vmatmul.mubr.bf16.gmra.mxu0 %v519
    %v649 = vpop.f32.mrf.mxu0
    %v650 = vadd.f32 %v352, %v649
    %v651 = vpop.f32.mrf.mxu0
    %v652 = vpop.f32.mrf.mxu0
    %v653 = vadd.f32 %v355, %v652
    %v654 = vpop.f32.mrf.mxu0
    %655 = vmatprep.mubr.bf16.mxu0 0
    %656 = vmatmul.mubr.bf16.gmra.mxu0 %v522
    %v657 = vpop.f32.mrf.mxu0
    %v658 = vadd.f32 %v360, %v657
    %v659 = vpop.f32.mrf.mxu0
    %v660 = vpop.f32.mrf.mxu0
    %v661 = vpop.f32.mrf.mxu0
    %662 = vdwg.mxu0
    %v663 = vld [vmem:[%s0 + $0x64] sm:$0xf]
    %v664 = vld [vmem:[%s2 + $0x4] sm:$0x3]
    %v666 = vunpack.c.l.b16 %v663
    %v667 = vpack.c.b16 %v666, %v140
    %vm668 = vsmask.f32 4352
    %v670 = vshrl.u32 %v142, 16
    %v672 = vrot.slane %v670, 3
    %v673 = vshll.u32 %v142, 16
    %v675 = vrot.slane %v673, 4
    %v676 = vor.u32 %v672, %v675
    %v677 = vrot.slane %v378, 3
    %v678 = vrot.slane %v381, 4
    %v679 = vor.u32 %v677, %v678
    %v680 = vsel %vm668, %v676, %v679
    %v681 = vrot.slane %v387, 3
    %v682 = vrot.slane %v390, 4
    %v683 = vor.u32 %v681, %v682
    %v684 = vsel %vm668, %v679, %v683
    %v685 = vrot.slane %v396, 3
    %v686 = vrot.slane %v399, 4
    %v687 = vor.u32 %v685, %v686
    %v688 = vsel %vm668, %v683, %v687
    %v689 = vrot.slane %v405, 3
    %v690 = vrot.slane %v408, 4
    %v691 = vor.u32 %v689, %v690
    %v692 = vsel %vm668, %v687, %v691
    %v693 = vrot.slane %v414, 3
    %v694 = vrot.slane %v417, 4
    %v695 = vor.u32 %v693, %v694
    %v696 = vsel %vm668, %v691, %v695
    %v697 = vrot.slane %v423, 3
    %v698 = vrot.slane %v426, 4
    %v699 = vor.u32 %v697, %v698
    %v700 = vsel %vm668, %v695, %v699
    %v701 = vrot.slane %v432, 3
    %v702 = vrot.slane %v435, 4
    %v703 = vor.u32 %v701, %v702
    %v704 = vsel %vm668, %v699, %v703
    %v705 = vrot.slane %v441, 3
    %v706 = vrot.slane %v444, 4
    %v707 = vor.u32 %v705, %v706
    %v708 = vsel %vm668, %v703, %v707
    %v709 = vrot.slane %v450, 3
    %v710 = vrot.slane %v453, 4
    %v711 = vor.u32 %v709, %v710
    %v712 = vsel %vm668, %v707, %v711
    %v713 = vrot.slane %v459, 3
    %v714 = vrot.slane %v462, 4
    %v715 = vor.u32 %v713, %v714
    %v716 = vsel %vm668, %v711, %v715
    %v717 = vrot.slane %v468, 3
    %v718 = vrot.slane %v471, 4
    %v719 = vor.u32 %v717, %v718
    %v720 = vsel %vm668, %v715, %v719
    %v722 = vshrl.u32 %v667, 16
    %v724 = vrot.slane %v722, 3
    %v725 = vshll.u32 %v667, 16
    %v727 = vrot.slane %v725, 4
    %v728 = vor.u32 %v724, %v727
    %v729 = vsel %vm668, %v719, %v728
    %v731 = vsel %vm185, %v680, 0
    %v734 = vsel %vm185, %v684, 0
    %v737 = vsel %vm185, %v688, 0
    %v740 = vsel %vm185, %v692, 0
    %v743 = vsel %vm185, %v696, 0
    %v746 = vsel %vm185, %v700, 0
    %v749 = vsel %vm185, %v704, 0
    %v752 = vsel %vm185, %v708, 0
    %v755 = vsel %vm185, %v712, 0
    %v758 = vsel %vm185, %v716, 0
    %v761 = vsel %vm185, %v720, 0
    %v764 = vsel %vm185, %v729, 0
    %v767 = vsel %vm185, %v728, 0
    %v770 = vsel %vm225, %v664, 0
    %772 = vmatprep.subr.bf16.mxu0 0
    %773 = vmatpush1.bf16.msra.mxu0 0
    %774 = vmatprep.subr.bf16.mxu0 0
    %775 = vmatpush1.bf16.msra.mxu0 0
    %776 = vmatprep.subr.bf16.mxu0 0
    %777 = vmatpush1.bf16.msra.mxu0 0
    %778 = vmatprep.subr.bf16.mxu0 0
    %779 = vmatpush1.bf16.msra.mxu0 0
    %780 = vmatprep.subr.bf16.mxu0 0
    %781 = vmatpush1.bf16.msra.mxu0 0
    %782 = vmatprep.subr.bf16.mxu0 0
    %783 = vmatpush1.bf16.msra.mxu0 0
    %784 = vmatprep.subr.bf16.mxu0 0
    %785 = vmatpush1.bf16.msra.mxu0 0
    %786 = vmatprep.subr.bf16.mxu0 0
    %787 = vmatpush1.bf16.msra.mxu0 %v770
    %788 = vmatprep.subr.bf16.mxu0 0
    %789 = vmatpush2.bf16.msra.mxu0 0
    %790 = vmatprep.subr.bf16.mxu0 0
    %791 = vmatpush2.bf16.msra.mxu0 0
    %792 = vmatprep.subr.bf16.mxu0 0
    %793 = vmatpush2.bf16.msra.mxu0 0
    %794 = vmatprep.subr.bf16.mxu0 0
    %795 = vmatpush2.bf16.msra.mxu0 0
    %796 = vmatprep.subr.bf16.mxu0 0
    %797 = vmatpush2.bf16.msra.mxu0 0
    %798 = vmatprep.subr.bf16.mxu0 0
    %799 = vmatpush2.bf16.msra.mxu0 0
    %800 = vmatprep.subr.bf16.mxu0 0
    %801 = vmatpush2.bf16.msra.mxu0 0
    %802 = vmatprep.subr.bf16.mxu0 0
    %803 = vmatpush2.bf16.msra.mxu0 0
    %804 = vmatprep.mubr.bf16.mxu0 0
    %805 = vmatmul.mubr.bf16.gmra.mxu0 %v731
    %v806 = vpop.f32.mrf.mxu0
    %v807 = vadd.f32 0.0, %v806
    %v808 = vpop.f32.mrf.mxu0
    %v809 = vpop.f32.mrf.mxu0
    %v810 = vadd.f32 0.0, %v809
    %v811 = vpop.f32.mrf.mxu0
    %812 = vmatprep.mubr.bf16.mxu0 0
    %813 = vmatmul.mubr.bf16.gmra.mxu0 %v734
    %v814 = vpop.f32.mrf.mxu0
    %v815 = vadd.f32 0.0, %v814
    %v816 = vpop.f32.mrf.mxu0
    %v817 = vpop.f32.mrf.mxu0
    %v818 = vadd.f32 0.0, %v817
    %v819 = vpop.f32.mrf.mxu0
    %820 = vmatprep.mubr.bf16.mxu0 0
    %821 = vmatmul.mubr.bf16.gmra.mxu0 %v737
    %v822 = vpop.f32.mrf.mxu0
    %v823 = vadd.f32 0.0, %v822
    %v824 = vpop.f32.mrf.mxu0
    %v825 = vpop.f32.mrf.mxu0
    %v826 = vadd.f32 0.0, %v825
    %v827 = vpop.f32.mrf.mxu0
    %828 = vmatprep.mubr.bf16.mxu0 0
    %829 = vmatmul.mubr.bf16.gmra.mxu0 %v740
    %v830 = vpop.f32.mrf.mxu0
    %v831 = vadd.f32 0.0, %v830
    %v832 = vpop.f32.mrf.mxu0
    %v833 = vpop.f32.mrf.mxu0
    %v834 = vadd.f32 0.0, %v833
    %v835 = vpop.f32.mrf.mxu0
    %836 = vmatprep.mubr.bf16.mxu0 0
    %837 = vmatmul.mubr.bf16.gmra.mxu0 %v743
    %v838 = vpop.f32.mrf.mxu0
    %v839 = vadd.f32 0.0, %v838
    %v840 = vpop.f32.mrf.mxu0
    %v841 = vpop.f32.mrf.mxu0
    %v842 = vadd.f32 0.0, %v841
    %v843 = vpop.f32.mrf.mxu0
    %844 = vmatprep.mubr.bf16.mxu0 0
    %845 = vmatmul.mubr.bf16.gmra.mxu0 %v746
    %v846 = vpop.f32.mrf.mxu0
    %v847 = vadd.f32 0.0, %v846
    %v848 = vpop.f32.mrf.mxu0
    %v849 = vpop.f32.mrf.mxu0
    %v850 = vadd.f32 0.0, %v849
    %v851 = vpop.f32.mrf.mxu0
    %852 = vmatprep.mubr.bf16.mxu0 0
    %853 = vmatmul.mubr.bf16.gmra.mxu0 %v749
    %v854 = vpop.f32.mrf.mxu0
    %v855 = vadd.f32 0.0, %v854
    %v856 = vpop.f32.mrf.mxu0
    %v857 = vpop.f32.mrf.mxu0
    %v858 = vadd.f32 0.0, %v857
    %v859 = vpop.f32.mrf.mxu0
    %860 = vmatprep.mubr.bf16.mxu0 0
    %861 = vmatmul.mubr.bf16.gmra.mxu0 %v752
    %v862 = vpop.f32.mrf.mxu0
    %v863 = vadd.f32 0.0, %v862
    %v864 = vpop.f32.mrf.mxu0
    %v865 = vpop.f32.mrf.mxu0
    %v866 = vadd.f32 0.0, %v865
    %v867 = vpop.f32.mrf.mxu0
    %868 = vmatprep.mubr.bf16.mxu0 0
    %869 = vmatmul.mubr.bf16.gmra.mxu0 %v755
    %v870 = vpop.f32.mrf.mxu0
    %v871 = vadd.f32 0.0, %v870
    %v872 = vpop.f32.mrf.mxu0
    %v873 = vpop.f32.mrf.mxu0
    %v874 = vadd.f32 0.0, %v873
    %v875 = vpop.f32.mrf.mxu0
    %876 = vmatprep.mubr.bf16.mxu0 0
    %877 = vmatmul.mubr.bf16.gmra.mxu0 %v758
    %v878 = vpop.f32.mrf.mxu0
    %v879 = vadd.f32 0.0, %v878
    %v880 = vpop.f32.mrf.mxu0
    %v881 = vpop.f32.mrf.mxu0
    %v882 = vadd.f32 0.0, %v881
    %v883 = vpop.f32.mrf.mxu0
    %884 = vmatprep.mubr.bf16.mxu0 0
    %885 = vmatmul.mubr.bf16.gmra.mxu0 %v761
    %v886 = vpop.f32.mrf.mxu0
    %v887 = vadd.f32 0.0, %v886
    %v888 = vpop.f32.mrf.mxu0
    %v889 = vpop.f32.mrf.mxu0
    %v890 = vadd.f32 0.0, %v889
    %v891 = vpop.f32.mrf.mxu0
    %892 = vmatprep.mubr.bf16.mxu0 0
    %893 = vmatmul.mubr.bf16.gmra.mxu0 %v764
    %v894 = vpop.f32.mrf.mxu0
    %v895 = vadd.f32 0.0, %v894
    %v896 = vpop.f32.mrf.mxu0
    %v897 = vpop.f32.mrf.mxu0
    %v898 = vadd.f32 0.0, %v897
    %v899 = vpop.f32.mrf.mxu0
    %900 = vmatprep.mubr.bf16.mxu0 0
    %901 = vmatmul.mubr.bf16.gmra.mxu0 %v767
    %v902 = vpop.f32.mrf.mxu0
    %v903 = vadd.f32 0.0, %v902
    %v904 = vpop.f32.mrf.mxu0
    %v905 = vpop.f32.mrf.mxu0
    %v906 = vpop.f32.mrf.mxu0
    %907 = vdwg.mxu0
    %v908 = vadd.f32 %v562, %v807
    %v909 = vadd.f32 %v565, %v810
    %v910 = vadd.f32 %v570, %v815
    %v911 = vadd.f32 %v573, %v818
    %v912 = vadd.f32 %v578, %v823
    %v913 = vadd.f32 %v581, %v826
    %v914 = vadd.f32 %v586, %v831
    %v915 = vadd.f32 %v589, %v834
    %v916 = vadd.f32 %v594, %v839
    %v917 = vadd.f32 %v597, %v842
    %v918 = vadd.f32 %v602, %v847
    %v919 = vadd.f32 %v605, %v850
    %v920 = vadd.f32 %v610, %v855
    %v921 = vadd.f32 %v613, %v858
    %v922 = vadd.f32 %v618, %v863
    %v923 = vadd.f32 %v621, %v866
    %v924 = vadd.f32 %v626, %v871
    %v925 = vadd.f32 %v629, %v874
    %v926 = vadd.f32 %v634, %v879
    %v927 = vadd.f32 %v637, %v882
    %v928 = vadd.f32 %v642, %v887
    %v929 = vadd.f32 %v645, %v890
    %v930 = vadd.f32 %v650, %v895
    %v931 = vadd.f32 %v653, %v898
    %v932 = vadd.f32 %v658, %v903
    %v933 = vld [vmem:[%s0 + $0x4] sm:$0x8]
    %v934 = vld [vmem:[%s0 + $0x8] sm:$0xf]
    %v935 = vld [vmem:[%s0 + $0xc] sm:$0xf]
    %v936 = vld [vmem:[%s0 + $0x10] sm:$0xf]
    %v937 = vld [vmem:[%s0 + $0x14] sm:$0xf]
    %v938 = vld [vmem:[%s0 + $0x18] sm:$0xf]
    %v939 = vld [vmem:[%s0 + $0x1c] sm:$0xf]
    %v940 = vld [vmem:[%s0 + $0x20] sm:$0xf]
    %v941 = vld [vmem:[%s0 + $0x24] sm:$0xf]
    %v942 = vld [vmem:[%s0 + $0x28] sm:$0xf]
    %v943 = vld [vmem:[%s0 + $0x2c] sm:$0xf]
    %v944 = vld [vmem:[%s0 + $0x30] sm:$0xf]
    %v945 = vld [vmem:[%s0 + $0x34] sm:$0xf]
    %v946 = vld [vmem:[%s0 + $0x38] sm:$0xf]
    %v947 = vld [vmem:[%s0 + $0x3c] sm:$0xf]
    %v948 = vld [vmem:[%s0 + $0x40] sm:$0xf]
    %v949 = vld [vmem:[%s0 + $0x44] sm:$0xf]
    %v950 = vld [vmem:[%s0 + $0x48] sm:$0xf]
    %v951 = vld [vmem:[%s0 + $0x4c] sm:$0xf]
    %v952 = vld [vmem:[%s0 + $0x50] sm:$0xf]
    %v953 = vld [vmem:[%s0 + $0x54] sm:$0xf]
    %v954 = vld [vmem:[%s0 + $0x58] sm:$0xf]
    %v955 = vld [vmem:[%s0 + $0x5c] sm:$0xf]
    %v956 = vld [vmem:[%s0 + $0x60] sm:$0xf]
    %v957 = vld [vmem:[%s0 + $0x64] sm:$0xf]
    %v958 = vld [vmem:[%s0 + $0x68] sm:$0xf]
    %v959 = vld [vmem:[%s2 + $0x4] sm:$0xc]
    %v986 = vunpack.c.l.b16 %v933
    %v987 = vunpack.c.l.b16 %v934
    %v988 = vunpack.c.l.b16 %v935
    %v989 = vunpack.c.l.b16 %v936
    %v990 = vunpack.c.l.b16 %v937
    %v991 = vunpack.c.l.b16 %v938
    %v992 = vunpack.c.l.b16 %v939
    %v993 = vunpack.c.l.b16 %v940
    %v994 = vunpack.c.l.b16 %v941
    %v995 = vunpack.c.l.b16 %v942
    %v996 = vunpack.c.l.b16 %v943
    %v997 = vunpack.c.l.b16 %v944
    %v998 = vunpack.c.l.b16 %v945
    %v999 = vunpack.c.l.b16 %v946
    %v1000 = vunpack.c.l.b16 %v947
    %v1001 = vunpack.c.l.b16 %v948
    %v1002 = vunpack.c.l.b16 %v949
    %v1003 = vunpack.c.l.b16 %v950
    %v1004 = vunpack.c.l.b16 %v951
    %v1005 = vunpack.c.l.b16 %v952
    %v1006 = vunpack.c.l.b16 %v953
    %v1007 = vunpack.c.l.b16 %v954
    %v1008 = vunpack.c.l.b16 %v955
    %v1009 = vunpack.c.l.b16 %v956
    %v1010 = vunpack.c.l.b16 %v957
    %v1011 = vunpack.c.l.b16 %v958
    %v1012 = vpack.c.b16 %v987, %v986
    %v1013 = vpack.c.b16 %v989, %v988
    %v1014 = vpack.c.b16 %v991, %v990
    %v1015 = vpack.c.b16 %v993, %v992
    %v1016 = vpack.c.b16 %v995, %v994
    %v1017 = vpack.c.b16 %v997, %v996
    %v1018 = vpack.c.b16 %v999, %v998
    %v1019 = vpack.c.b16 %v1001, %v1000
    %v1020 = vpack.c.b16 %v1003, %v1002
    %v1021 = vpack.c.b16 %v1005, %v1004
    %v1022 = vpack.c.b16 %v1007, %v1006
    %v1023 = vpack.c.b16 %v1009, %v1008
    %v1024 = vpack.c.b16 %v1011, %v1010
    %v1026 = vshrl.u32 %v1012, 16
    %v1028 = vrot.slane %v1026, 3
    %v1029 = vshll.u32 %v1012, 16
    %v1031 = vrot.slane %v1029, 4
    %v1032 = vor.u32 %v1028, %v1031
    %v1034 = vshrl.u32 %v1013, 16
    %v1036 = vrot.slane %v1034, 3
    %v1037 = vshll.u32 %v1013, 16
    %v1039 = vrot.slane %v1037, 4
    %v1040 = vor.u32 %v1036, %v1039
    %v1041 = vsel %vm668, %v1032, %v1040
    %v1043 = vshrl.u32 %v1014, 16
    %v1045 = vrot.slane %v1043, 3
    %v1046 = vshll.u32 %v1014, 16
    %v1048 = vrot.slane %v1046, 4
    %v1049 = vor.u32 %v1045, %v1048
    %v1050 = vsel %vm668, %v1040, %v1049
    %v1052 = vshrl.u32 %v1015, 16
    %v1054 = vrot.slane %v1052, 3
    %v1055 = vshll.u32 %v1015, 16
    %v1057 = vrot.slane %v1055, 4
    %v1058 = vor.u32 %v1054, %v1057
    %v1059 = vsel %vm668, %v1049, %v1058
    %v1061 = vshrl.u32 %v1016, 16
    %v1063 = vrot.slane %v1061, 3
    %v1064 = vshll.u32 %v1016, 16
    %v1066 = vrot.slane %v1064, 4
    %v1067 = vor.u32 %v1063, %v1066
    %v1068 = vsel %vm668, %v1058, %v1067
    %v1070 = vshrl.u32 %v1017, 16
    %v1072 = vrot.slane %v1070, 3
    %v1073 = vshll.u32 %v1017, 16
    %v1075 = vrot.slane %v1073, 4
    %v1076 = vor.u32 %v1072, %v1075
    %v1077 = vsel %vm668, %v1067, %v1076
    %v1079 = vshrl.u32 %v1018, 16
    %v1081 = vrot.slane %v1079, 3
    %v1082 = vshll.u32 %v1018, 16
    %v1084 = vrot.slane %v1082, 4
    %v1085 = vor.u32 %v1081, %v1084
    %v1086 = vsel %vm668, %v1076, %v1085
    %v1088 = vshrl.u32 %v1019, 16
    %v1090 = vrot.slane %v1088, 3
    %v1091 = vshll.u32 %v1019, 16
    %v1093 = vrot.slane %v1091, 4
    %v1094 = vor.u32 %v1090, %v1093
    %v1095 = vsel %vm668, %v1085, %v1094
    %v1097 = vshrl.u32 %v1020, 16
    %v1099 = vrot.slane %v1097, 3
    %v1100 = vshll.u32 %v1020, 16
    %v1102 = vrot.slane %v1100, 4
    %v1103 = vor.u32 %v1099, %v1102
    %v1104 = vsel %vm668, %v1094, %v1103
    %v1106 = vshrl.u32 %v1021, 16
    %v1108 = vrot.slane %v1106, 3
    %v1109 = vshll.u32 %v1021, 16
    %v1111 = vrot.slane %v1109, 4
    %v1112 = vor.u32 %v1108, %v1111
    %v1113 = vsel %vm668, %v1103, %v1112
    %v1115 = vshrl.u32 %v1022, 16
    %v1117 = vrot.slane %v1115, 3
    %v1118 = vshll.u32 %v1022, 16
    %v1120 = vrot.slane %v1118, 4
    %v1121 = vor.u32 %v1117, %v1120
    %v1122 = vsel %vm668, %v1112, %v1121
    %v1124 = vshrl.u32 %v1023, 16
    %v1126 = vrot.slane %v1124, 3
    %v1127 = vshll.u32 %v1023, 16
    %v1129 = vrot.slane %v1127, 4
    %v1130 = vor.u32 %v1126, %v1129
    %v1131 = vsel %vm668, %v1121, %v1130
    %v1133 = vshrl.u32 %v1024, 16
    %v1135 = vrot.slane %v1133, 3
    %v1136 = vshll.u32 %v1024, 16
    %v1138 = vrot.slane %v1136, 4
    %v1139 = vor.u32 %v1135, %v1138
    %v1140 = vsel %vm668, %v1130, %v1139
    %v1142 = vunpack.c.l.b16 %v959
    %v1143 = vpack.c.b16 %v1142, %v1142
    %v1144 = vrot.slane %v1143, 2
    %v1146 = vsel %vm185, %v1041, 0
    %v1149 = vsel %vm185, %v1050, 0
    %v1152 = vsel %vm185, %v1059, 0
    %v1155 = vsel %vm185, %v1068, 0
    %v1158 = vsel %vm185, %v1077, 0
    %v1161 = vsel %vm185, %v1086, 0
    %v1164 = vsel %vm185, %v1095, 0
    %v1167 = vsel %vm185, %v1104, 0
    %v1170 = vsel %vm185, %v1113, 0
    %v1173 = vsel %vm185, %v1122, 0
    %v1176 = vsel %vm185, %v1131, 0
    %v1179 = vsel %vm185, %v1140, 0
    %v1182 = vsel %vm185, %v1139, 0
    %v1185 = vsel %vm225, %v1144, 0
    %1187 = vmatprep.subr.bf16.mxu0 0
    %1188 = vmatpush1.bf16.msra.mxu0 0
    %1189 = vmatprep.subr.bf16.mxu0 0
    %1190 = vmatpush1.bf16.msra.mxu0 0
    %1191 = vmatprep.subr.bf16.mxu0 0
    %1192 = vmatpush1.bf16.msra.mxu0 0
    %1193 = vmatprep.subr.bf16.mxu0 0
    %1194 = vmatpush1.bf16.msra.mxu0 0
    %1195 = vmatprep.subr.bf16.mxu0 0
    %1196 = vmatpush1.bf16.msra.mxu0 0
    %1197 = vmatprep.subr.bf16.mxu0 0
    %1198 = vmatpush1.bf16.msra.mxu0 0
    %1199 = vmatprep.subr.bf16.mxu0 0
    %1200 = vmatpush1.bf16.msra.mxu0 0
    %1201 = vmatprep.subr.bf16.mxu0 0
    %1202 = vmatpush1.bf16.msra.mxu0 %v1185
    %1203 = vmatprep.subr.bf16.mxu0 0
    %1204 = vmatpush2.bf16.msra.mxu0 0
    %1205 = vmatprep.subr.bf16.mxu0 0
    %1206 = vmatpush2.bf16.msra.mxu0 0
    %1207 = vmatprep.subr.bf16.mxu0 0
    %1208 = vmatpush2.bf16.msra.mxu0 0
    %1209 = vmatprep.subr.bf16.mxu0 0
    %1210 = vmatpush2.bf16.msra.mxu0 0
    %1211 = vmatprep.subr.bf16.mxu0 0
    %1212 = vmatpush2.bf16.msra.mxu0 0
    %1213 = vmatprep.subr.bf16.mxu0 0
    %1214 = vmatpush2.bf16.msra.mxu0 0
    %1215 = vmatprep.subr.bf16.mxu0 0
    %1216 = vmatpush2.bf16.msra.mxu0 0
    %1217 = vmatprep.subr.bf16.mxu0 0
    %1218 = vmatpush2.bf16.msra.mxu0 0
    %1219 = vmatprep.mubr.bf16.mxu0 0
    %1220 = vmatmul.mubr.bf16.gmra.mxu0 %v1146
    %v1221 = vpop.f32.mrf.mxu0
    %v1222 = vadd.f32 0.0, %v1221
    %v1223 = vpop.f32.mrf.mxu0
    %v1224 = vpop.f32.mrf.mxu0
    %v1225 = vadd.f32 0.0, %v1224
    %v1226 = vpop.f32.mrf.mxu0
    %1227 = vmatprep.mubr.bf16.mxu0 0
    %1228 = vmatmul.mubr.bf16.gmra.mxu0 %v1149
    %v1229 = vpop.f32.mrf.mxu0
    %v1230 = vadd.f32 0.0, %v1229
    %v1231 = vpop.f32.mrf.mxu0
    %v1232 = vpop.f32.mrf.mxu0
    %v1233 = vadd.f32 0.0, %v1232
    %v1234 = vpop.f32.mrf.mxu0
    %1235 = vmatprep.mubr.bf16.mxu0 0
    %1236 = vmatmul.mubr.bf16.gmra.mxu0 %v1152
    %v1237 = vpop.f32.mrf.mxu0
    %v1238 = vadd.f32 0.0, %v1237
    %v1239 = vpop.f32.mrf.mxu0
    %v1240 = vpop.f32.mrf.mxu0
    %v1241 = vadd.f32 0.0, %v1240
    %v1242 = vpop.f32.mrf.mxu0
    %1243 = vmatprep.mubr.bf16.mxu0 0
    %1244 = vmatmul.mubr.bf16.gmra.mxu0 %v1155
    %v1245 = vpop.f32.mrf.mxu0
    %v1246 = vadd.f32 0.0, %v1245
    %v1247 = vpop.f32.mrf.mxu0
    %v1248 = vpop.f32.mrf.mxu0
    %v1249 = vadd.f32 0.0, %v1248
    %v1250 = vpop.f32.mrf.mxu0
    %1251 = vmatprep.mubr.bf16.mxu0 0
    %1252 = vmatmul.mubr.bf16.gmra.mxu0 %v1158
    %v1253 = vpop.f32.mrf.mxu0
    %v1254 = vadd.f32 0.0, %v1253
    %v1255 = vpop.f32.mrf.mxu0
    %v1256 = vpop.f32.mrf.mxu0
    %v1257 = vadd.f32 0.0, %v1256
    %v1258 = vpop.f32.mrf.mxu0
    %1259 = vmatprep.mubr.bf16.mxu0 0
    %1260 = vmatmul.mubr.bf16.gmra.mxu0 %v1161
    %v1261 = vpop.f32.mrf.mxu0
    %v1262 = vadd.f32 0.0, %v1261
    %v1263 = vpop.f32.mrf.mxu0
    %v1264 = vpop.f32.mrf.mxu0
    %v1265 = vadd.f32 0.0, %v1264
    %v1266 = vpop.f32.mrf.mxu0
    %1267 = vmatprep.mubr.bf16.mxu0 0
    %1268 = vmatmul.mubr.bf16.gmra.mxu0 %v1164
    %v1269 = vpop.f32.mrf.mxu0
    %v1270 = vadd.f32 0.0, %v1269
    %v1271 = vpop.f32.mrf.mxu0
    %v1272 = vpop.f32.mrf.mxu0
    %v1273 = vadd.f32 0.0, %v1272
    %v1274 = vpop.f32.mrf.mxu0
    %1275 = vmatprep.mubr.bf16.mxu0 0
    %1276 = vmatmul.mubr.bf16.gmra.mxu0 %v1167
    %v1277 = vpop.f32.mrf.mxu0
    %v1278 = vadd.f32 0.0, %v1277
    %v1279 = vpop.f32.mrf.mxu0
    %v1280 = vpop.f32.mrf.mxu0
    %v1281 = vadd.f32 0.0, %v1280
    %v1282 = vpop.f32.mrf.mxu0
    %1283 = vmatprep.mubr.bf16.mxu0 0
    %1284 = vmatmul.mubr.bf16.gmra.mxu0 %v1170
    %v1285 = vpop.f32.mrf.mxu0
    %v1286 = vadd.f32 0.0, %v1285
    %v1287 = vpop.f32.mrf.mxu0
    %v1288 = vpop.f32.mrf.mxu0
    %v1289 = vadd.f32 0.0, %v1288
    %v1290 = vpop.f32.mrf.mxu0
    %1291 = vmatprep.mubr.bf16.mxu0 0
    %1292 = vmatmul.mubr.bf16.gmra.mxu0 %v1173
    %v1293 = vpop.f32.mrf.mxu0
    %v1294 = vadd.f32 0.0, %v1293
    %v1295 = vpop.f32.mrf.mxu0
    %v1296 = vpop.f32.mrf.mxu0
    %v1297 = vadd.f32 0.0, %v1296
    %v1298 = vpop.f32.mrf.mxu0
    %1299 = vmatprep.mubr.bf16.mxu0 0
    %1300 = vmatmul.mubr.bf16.gmra.mxu0 %v1176
    %v1301 = vpop.f32.mrf.mxu0
    %v1302 = vadd.f32 0.0, %v1301
    %v1303 = vpop.f32.mrf.mxu0
    %v1304 = vpop.f32.mrf.mxu0
    %v1305 = vadd.f32 0.0, %v1304
    %v1306 = vpop.f32.mrf.mxu0
    %1307 = vmatprep.mubr.bf16.mxu0 0
    %1308 = vmatmul.mubr.bf16.gmra.mxu0 %v1179
    %v1309 = vpop.f32.mrf.mxu0
    %v1310 = vadd.f32 0.0, %v1309
    %v1311 = vpop.f32.mrf.mxu0
    %v1312 = vpop.f32.mrf.mxu0
    %v1313 = vadd.f32 0.0, %v1312
    %v1314 = vpop.f32.mrf.mxu0
    %1315 = vmatprep.mubr.bf16.mxu0 0
    %1316 = vmatmul.mubr.bf16.gmra.mxu0 %v1182
    %v1317 = vpop.f32.mrf.mxu0
    %v1318 = vadd.f32 0.0, %v1317
    %v1319 = vpop.f32.mrf.mxu0
    %v1320 = vpop.f32.mrf.mxu0
    %v1321 = vpop.f32.mrf.mxu0
    %1322 = vdwg.mxu0
    %v1323 = vadd.f32 %v908, %v1222
    %v1324 = vadd.f32 %v909, %v1225
    %v1325 = vadd.f32 %v910, %v1230
    %v1326 = vadd.f32 %v911, %v1233
    %v1327 = vadd.f32 %v912, %v1238
    %v1328 = vadd.f32 %v913, %v1241
    %v1329 = vadd.f32 %v914, %v1246
    %v1330 = vadd.f32 %v915, %v1249
    %v1331 = vadd.f32 %v916, %v1254
    %v1332 = vadd.f32 %v917, %v1257
    %v1333 = vadd.f32 %v918, %v1262
    %v1334 = vadd.f32 %v919, %v1265
    %v1335 = vadd.f32 %v920, %v1270
    %v1336 = vadd.f32 %v921, %v1273
    %v1337 = vadd.f32 %v922, %v1278
    %v1338 = vadd.f32 %v923, %v1281
    %v1339 = vadd.f32 %v924, %v1286
    %v1340 = vadd.f32 %v925, %v1289
    %v1341 = vadd.f32 %v926, %v1294
    %v1342 = vadd.f32 %v927, %v1297
    %v1343 = vadd.f32 %v928, %v1302
    %v1344 = vadd.f32 %v929, %v1305
    %v1345 = vadd.f32 %v930, %v1310
    %v1346 = vadd.f32 %v931, %v1313
    %v1347 = vadd.f32 %v932, %v1318
    %v1348 = vld [vmem:[%s2 + $0x8] sm:$0x3]
    %v1349 = vpack.c.b16 %v988, %v987
    %v1350 = vpack.c.b16 %v990, %v989
    %v1351 = vpack.c.b16 %v992, %v991
    %v1352 = vpack.c.b16 %v994, %v993
    %v1353 = vpack.c.b16 %v996, %v995
    %v1354 = vpack.c.b16 %v998, %v997
    %v1355 = vpack.c.b16 %v1000, %v999
    %v1356 = vpack.c.b16 %v1002, %v1001
    %v1357 = vpack.c.b16 %v1004, %v1003
    %v1358 = vpack.c.b16 %v1006, %v1005
    %v1359 = vpack.c.b16 %v1008, %v1007
    %v1360 = vpack.c.b16 %v1010, %v1009
    %v1361 = vpack.c.b16 %v1011, %v1011
    %v1363 = vsel %vm185, %v1349, 0
    %v1366 = vsel %vm185, %v1350, 0
    %v1369 = vsel %vm185, %v1351, 0
    %v1372 = vsel %vm185, %v1352, 0
    %v1375 = vsel %vm185, %v1353, 0
    %v1378 = vsel %vm185, %v1354, 0
    %v1381 = vsel %vm185, %v1355, 0
    %v1384 = vsel %vm185, %v1356, 0
    %v1387 = vsel %vm185, %v1357, 0
    %v1390 = vsel %vm185, %v1358, 0
    %v1393 = vsel %vm185, %v1359, 0
    %v1396 = vsel %vm185, %v1360, 0
    %v1399 = vsel %vm185, %v1361, 0
    %v1402 = vsel %vm225, %v1348, 0
    %1404 = vmatprep.subr.bf16.mxu0 0
    %1405 = vmatpush1.bf16.msra.mxu0 0
    %1406 = vmatprep.subr.bf16.mxu0 0
    %1407 = vmatpush1.bf16.msra.mxu0 0
    %1408 = vmatprep.subr.bf16.mxu0 0
    %1409 = vmatpush1.bf16.msra.mxu0 0
    %1410 = vmatprep.subr.bf16.mxu0 0
    %1411 = vmatpush1.bf16.msra.mxu0 0
    %1412 = vmatprep.subr.bf16.mxu0 0
    %1413 = vmatpush1.bf16.msra.mxu0 0
    %1414 = vmatprep.subr.bf16.mxu0 0
    %1415 = vmatpush1.bf16.msra.mxu0 0
    %1416 = vmatprep.subr.bf16.mxu0 0
    %1417 = vmatpush1.bf16.msra.mxu0 0
    %1418 = vmatprep.subr.bf16.mxu0 0
    %1419 = vmatpush1.bf16.msra.mxu0 %v1402
    %1420 = vmatprep.subr.bf16.mxu0 0
    %1421 = vmatpush2.bf16.msra.mxu0 0
    %1422 = vmatprep.subr.bf16.mxu0 0
    %1423 = vmatpush2.bf16.msra.mxu0 0
    %1424 = vmatprep.subr.bf16.mxu0 0
    %1425 = vmatpush2.bf16.msra.mxu0 0
    %1426 = vmatprep.subr.bf16.mxu0 0
    %1427 = vmatpush2.bf16.msra.mxu0 0
    %1428 = vmatprep.subr.bf16.mxu0 0
    %1429 = vmatpush2.bf16.msra.mxu0 0
    %1430 = vmatprep.subr.bf16.mxu0 0
    %1431 = vmatpush2.bf16.msra.mxu0 0
    %1432 = vmatprep.subr.bf16.mxu0 0
    %1433 = vmatpush2.bf16.msra.mxu0 0
    %1434 = vmatprep.subr.bf16.mxu0 0
    %1435 = vmatpush2.bf16.msra.mxu0 0
    %1436 = vmatprep.mubr.bf16.mxu0 0
    %1437 = vmatmul.mubr.bf16.gmra.mxu0 %v1363
    %v1438 = vpop.f32.mrf.mxu0
    %v1439 = vadd.f32 0.0, %v1438
    %v1440 = vpop.f32.mrf.mxu0
    %v1441 = vpop.f32.mrf.mxu0
    %v1442 = vadd.f32 0.0, %v1441
    %v1443 = vpop.f32.mrf.mxu0
    %1444 = vmatprep.mubr.bf16.mxu0 0
    %1445 = vmatmul.mubr.bf16.gmra.mxu0 %v1366
    %v1446 = vpop.f32.mrf.mxu0
    %v1447 = vadd.f32 0.0, %v1446
    %v1448 = vpop.f32.mrf.mxu0
    %v1449 = vpop.f32.mrf.mxu0
    %v1450 = vadd.f32 0.0, %v1449
    %v1451 = vpop.f32.mrf.mxu0
    %1452 = vmatprep.mubr.bf16.mxu0 0
    %1453 = vmatmul.mubr.bf16.gmra.mxu0 %v1369
    %v1454 = vpop.f32.mrf.mxu0
    %v1455 = vadd.f32 0.0, %v1454
    %v1456 = vpop.f32.mrf.mxu0
    %v1457 = vpop.f32.mrf.mxu0
    %v1458 = vadd.f32 0.0, %v1457
    %v1459 = vpop.f32.mrf.mxu0
    %1460 = vmatprep.mubr.bf16.mxu0 0
    %1461 = vmatmul.mubr.bf16.gmra.mxu0 %v1372
    %v1462 = vpop.f32.mrf.mxu0
    %v1463 = vadd.f32 0.0, %v1462
    %v1464 = vpop.f32.mrf.mxu0
    %v1465 = vpop.f32.mrf.mxu0
    %v1466 = vadd.f32 0.0, %v1465
    %v1467 = vpop.f32.mrf.mxu0
    %1468 = vmatprep.mubr.bf16.mxu0 0
    %1469 = vmatmul.mubr.bf16.gmra.mxu0 %v1375
    %v1470 = vpop.f32.mrf.mxu0
    %v1471 = vadd.f32 0.0, %v1470
    %v1472 = vpop.f32.mrf.mxu0
    %v1473 = vpop.f32.mrf.mxu0
    %v1474 = vadd.f32 0.0, %v1473
    %v1475 = vpop.f32.mrf.mxu0
    %1476 = vmatprep.mubr.bf16.mxu0 0
    %1477 = vmatmul.mubr.bf16.gmra.mxu0 %v1378
    %v1478 = vpop.f32.mrf.mxu0
    %v1479 = vadd.f32 0.0, %v1478
    %v1480 = vpop.f32.mrf.mxu0
    %v1481 = vpop.f32.mrf.mxu0
    %v1482 = vadd.f32 0.0, %v1481
    %v1483 = vpop.f32.mrf.mxu0
    %1484 = vmatprep.mubr.bf16.mxu0 0
    %1485 = vmatmul.mubr.bf16.gmra.mxu0 %v1381
    %v1486 = vpop.f32.mrf.mxu0
    %v1487 = vadd.f32 0.0, %v1486
    %v1488 = vpop.f32.mrf.mxu0
    %v1489 = vpop.f32.mrf.mxu0
    %v1490 = vadd.f32 0.0, %v1489
    %v1491 = vpop.f32.mrf.mxu0
    %1492 = vmatprep.mubr.bf16.mxu0 0
    %1493 = vmatmul.mubr.bf16.gmra.mxu0 %v1384
    %v1494 = vpop.f32.mrf.mxu0
    %v1495 = vadd.f32 0.0, %v1494
    %v1496 = vpop.f32.mrf.mxu0
    %v1497 = vpop.f32.mrf.mxu0
    %v1498 = vadd.f32 0.0, %v1497
    %v1499 = vpop.f32.mrf.mxu0
    %1500 = vmatprep.mubr.bf16.mxu0 0
    %1501 = vmatmul.mubr.bf16.gmra.mxu0 %v1387
    %v1502 = vpop.f32.mrf.mxu0
    %v1503 = vadd.f32 0.0, %v1502
    %v1504 = vpop.f32.mrf.mxu0
    %v1505 = vpop.f32.mrf.mxu0
    %v1506 = vadd.f32 0.0, %v1505
    %v1507 = vpop.f32.mrf.mxu0
    %1508 = vmatprep.mubr.bf16.mxu0 0
    %1509 = vmatmul.mubr.bf16.gmra.mxu0 %v1390
    %v1510 = vpop.f32.mrf.mxu0
    %v1511 = vadd.f32 0.0, %v1510
    %v1512 = vpop.f32.mrf.mxu0
    %v1513 = vpop.f32.mrf.mxu0
    %v1514 = vadd.f32 0.0, %v1513
    %v1515 = vpop.f32.mrf.mxu0
    %1516 = vmatprep.mubr.bf16.mxu0 0
    %1517 = vmatmul.mubr.bf16.gmra.mxu0 %v1393
    %v1518 = vpop.f32.mrf.mxu0
    %v1519 = vadd.f32 0.0, %v1518
    %v1520 = vpop.f32.mrf.mxu0
    %v1521 = vpop.f32.mrf.mxu0
    %v1522 = vadd.f32 0.0, %v1521
    %v1523 = vpop.f32.mrf.mxu0
    %1524 = vmatprep.mubr.bf16.mxu0 0
    %1525 = vmatmul.mubr.bf16.gmra.mxu0 %v1396
    %v1526 = vpop.f32.mrf.mxu0
    %v1527 = vadd.f32 0.0, %v1526
    %v1528 = vpop.f32.mrf.mxu0
    %v1529 = vpop.f32.mrf.mxu0
    %v1530 = vadd.f32 0.0, %v1529
    %v1531 = vpop.f32.mrf.mxu0
    %1532 = vmatprep.mubr.bf16.mxu0 0
    %1533 = vmatmul.mubr.bf16.gmra.mxu0 %v1399
    %v1534 = vpop.f32.mrf.mxu0
    %v1535 = vadd.f32 0.0, %v1534
    %v1536 = vpop.f32.mrf.mxu0
    %v1537 = vpop.f32.mrf.mxu0
    %v1538 = vpop.f32.mrf.mxu0
    %1539 = vdwg.mxu0
    %v1540 = vadd.f32 %v1323, %v1439
    %v1541 = vadd.f32 %v1324, %v1442
    %v1542 = vadd.f32 %v1325, %v1447
    %v1543 = vadd.f32 %v1326, %v1450
    %v1544 = vadd.f32 %v1327, %v1455
    %v1545 = vadd.f32 %v1328, %v1458
    %v1546 = vadd.f32 %v1329, %v1463
    %v1547 = vadd.f32 %v1330, %v1466
    %v1548 = vadd.f32 %v1331, %v1471
    %v1549 = vadd.f32 %v1332, %v1474
    %v1550 = vadd.f32 %v1333, %v1479
    %v1551 = vadd.f32 %v1334, %v1482
    %v1552 = vadd.f32 %v1335, %v1487
    %v1553 = vadd.f32 %v1336, %v1490
    %v1554 = vadd.f32 %v1337, %v1495
    %v1555 = vadd.f32 %v1338, %v1498
    %v1556 = vadd.f32 %v1339, %v1503
    %v1557 = vadd.f32 %v1340, %v1506
    %v1558 = vadd.f32 %v1341, %v1511
    %v1559 = vadd.f32 %v1342, %v1514
    %v1560 = vadd.f32 %v1343, %v1519
    %v1561 = vadd.f32 %v1344, %v1522
    %v1562 = vadd.f32 %v1345, %v1527
    %v1563 = vadd.f32 %v1346, %v1530
    %v1564 = vadd.f32 %v1347, %v1535
    %v1565 = vld [vmem:[%s0 + $0x8] sm:$0xf]
    %v1566 = vld [vmem:[%s0 + $0xc] sm:$0xf]
    %v1567 = vld [vmem:[%s0 + $0x10] sm:$0xf]
    %v1568 = vld [vmem:[%s0 + $0x14] sm:$0xf]
    %v1569 = vld [vmem:[%s0 + $0x18] sm:$0xf]
    %v1570 = vld [vmem:[%s0 + $0x1c] sm:$0xf]
    %v1571 = vld [vmem:[%s0 + $0x20] sm:$0xf]
    %v1572 = vld [vmem:[%s0 + $0x24] sm:$0xf]
    %v1573 = vld [vmem:[%s0 + $0x28] sm:$0xf]
    %v1574 = vld [vmem:[%s0 + $0x2c] sm:$0xf]
    %v1575 = vld [vmem:[%s0 + $0x30] sm:$0xf]
    %v1576 = vld [vmem:[%s0 + $0x34] sm:$0xf]
    %v1577 = vld [vmem:[%s0 + $0x38] sm:$0xf]
    %v1578 = vld [vmem:[%s0 + $0x3c] sm:$0xf]
    %v1579 = vld [vmem:[%s0 + $0x40] sm:$0xf]
    %v1580 = vld [vmem:[%s0 + $0x44] sm:$0xf]
    %v1581 = vld [vmem:[%s0 + $0x48] sm:$0xf]
    %v1582 = vld [vmem:[%s0 + $0x4c] sm:$0xf]
    %v1583 = vld [vmem:[%s0 + $0x50] sm:$0xf]
    %v1584 = vld [vmem:[%s0 + $0x54] sm:$0xf]
    %v1585 = vld [vmem:[%s0 + $0x58] sm:$0xf]
    %v1586 = vld [vmem:[%s0 + $0x5c] sm:$0xf]
    %v1587 = vld [vmem:[%s0 + $0x60] sm:$0xf]
    %v1588 = vld [vmem:[%s0 + $0x64] sm:$0xf]
    %v1589 = vld [vmem:[%s0 + $0x68] sm:$0xf]
    %v1590 = vld [vmem:[%s0 + $0x6c] sm:$0x1]
    %v1591 = vld [vmem:[%s2 + $0x8] sm:$0xc]
    %v1618 = vunpack.c.l.b16 %v1565
    %v1619 = vunpack.c.l.b16 %v1566
    %v1620 = vunpack.c.l.b16 %v1567
    %v1621 = vunpack.c.l.b16 %v1568
    %v1622 = vunpack.c.l.b16 %v1569
    %v1623 = vunpack.c.l.b16 %v1570
    %v1624 = vunpack.c.l.b16 %v1571
    %v1625 = vunpack.c.l.b16 %v1572
    %v1626 = vunpack.c.l.b16 %v1573
    %v1627 = vunpack.c.l.b16 %v1574
    %v1628 = vunpack.c.l.b16 %v1575
    %v1629 = vunpack.c.l.b16 %v1576
    %v1630 = vunpack.c.l.b16 %v1577
    %v1631 = vunpack.c.l.b16 %v1578
    %v1632 = vunpack.c.l.b16 %v1579
    %v1633 = vunpack.c.l.b16 %v1580
    %v1634 = vunpack.c.l.b16 %v1581
    %v1635 = vunpack.c.l.b16 %v1582
    %v1636 = vunpack.c.l.b16 %v1583
    %v1637 = vunpack.c.l.b16 %v1584
    %v1638 = vunpack.c.l.b16 %v1585
    %v1639 = vunpack.c.l.b16 %v1586
    %v1640 = vunpack.c.l.b16 %v1587
    %v1641 = vunpack.c.l.b16 %v1588
    %v1642 = vunpack.c.l.b16 %v1589
    %v1643 = vunpack.c.l.b16 %v1590
    %v1644 = vpack.c.b16 %v1619, %v1618
    %v1645 = vpack.c.b16 %v1621, %v1620
    %v1646 = vpack.c.b16 %v1623, %v1622
    %v1647 = vpack.c.b16 %v1625, %v1624
    %v1648 = vpack.c.b16 %v1627, %v1626
    %v1649 = vpack.c.b16 %v1629, %v1628
    %v1650 = vpack.c.b16 %v1631, %v1630
    %v1651 = vpack.c.b16 %v1633, %v1632
    %v1652 = vpack.c.b16 %v1635, %v1634
    %v1653 = vpack.c.b16 %v1637, %v1636
    %v1654 = vpack.c.b16 %v1639, %v1638
    %v1655 = vpack.c.b16 %v1641, %v1640
    %v1656 = vpack.c.b16 %v1643, %v1642
    %vm1657 = vsmask.f32 7424
    %v1659 = vshrl.u32 %v1644, 16
    %v1661 = vshll.u32 %v1644, 16
    %v1663 = vrot.slane %v1661, 1
    %v1664 = vor.u32 %v1659, %v1663
    %v1666 = vshll.u32 %v1645, 16
    %v1668 = vrot.slane %v1666, 1
    %v1669 = vsel %vm1657, %v1664, %v1668
    %v1670 = vshrl.u32 %v1645, 16
    %v1672 = vor.u32 %v1670, %v1668
    %v1674 = vshll.u32 %v1646, 16
    %v1676 = vrot.slane %v1674, 1
    %v1677 = vsel %vm1657, %v1672, %v1676
    %v1678 = vshrl.u32 %v1646, 16
    %v1680 = vor.u32 %v1678, %v1676
    %v1682 = vshll.u32 %v1647, 16
    %v1684 = vrot.slane %v1682, 1
    %v1685 = vsel %vm1657, %v1680, %v1684
    %v1686 = vshrl.u32 %v1647, 16
    %v1688 = vor.u32 %v1686, %v1684
    %v1690 = vshll.u32 %v1648, 16
    %v1692 = vrot.slane %v1690, 1
    %v1693 = vsel %vm1657, %v1688, %v1692
    %v1694 = vshrl.u32 %v1648, 16
    %v1696 = vor.u32 %v1694, %v1692
    %v1698 = vshll.u32 %v1649, 16
    %v1700 = vrot.slane %v1698, 1
    %v1701 = vsel %vm1657, %v1696, %v1700
    %v1702 = vshrl.u32 %v1649, 16
    %v1704 = vor.u32 %v1702, %v1700
    %v1706 = vshll.u32 %v1650, 16
    %v1708 = vrot.slane %v1706, 1
    %v1709 = vsel %vm1657, %v1704, %v1708
    %v1710 = vshrl.u32 %v1650, 16
    %v1712 = vor.u32 %v1710, %v1708
    %v1714 = vshll.u32 %v1651, 16
    %v1716 = vrot.slane %v1714, 1
    %v1717 = vsel %vm1657, %v1712, %v1716
    %v1718 = vshrl.u32 %v1651, 16
    %v1720 = vor.u32 %v1718, %v1716
    %v1722 = vshll.u32 %v1652, 16
    %v1724 = vrot.slane %v1722, 1
    %v1725 = vsel %vm1657, %v1720, %v1724
    %v1726 = vshrl.u32 %v1652, 16
    %v1728 = vor.u32 %v1726, %v1724
    %v1730 = vshll.u32 %v1653, 16
    %v1732 = vrot.slane %v1730, 1
    %v1733 = vsel %vm1657, %v1728, %v1732
    %v1734 = vshrl.u32 %v1653, 16
    %v1736 = vor.u32 %v1734, %v1732
    %v1738 = vshll.u32 %v1654, 16
    %v1740 = vrot.slane %v1738, 1
    %v1741 = vsel %vm1657, %v1736, %v1740
    %v1742 = vshrl.u32 %v1654, 16
    %v1744 = vor.u32 %v1742, %v1740
    %v1746 = vshll.u32 %v1655, 16
    %v1748 = vrot.slane %v1746, 1
    %v1749 = vsel %vm1657, %v1744, %v1748
    %v1750 = vshrl.u32 %v1655, 16
    %v1752 = vor.u32 %v1750, %v1748
    %v1754 = vshll.u32 %v1656, 16
    %v1756 = vrot.slane %v1754, 1
    %v1757 = vsel %vm1657, %v1752, %v1756
    %v1758 = vshrl.u32 %v1656, 16
    %v1760 = vor.u32 %v1758, %v1756
    %v1762 = vunpack.c.l.b16 %v1591
    %v1763 = vpack.c.b16 %v1762, %v1762
    %v1764 = vrot.slane %v1763, 2
    %v1766 = vsel %vm185, %v1669, 0
    %v1769 = vsel %vm185, %v1677, 0
    %v1772 = vsel %vm185, %v1685, 0
    %v1775 = vsel %vm185, %v1693, 0
    %v1778 = vsel %vm185, %v1701, 0
    %v1781 = vsel %vm185, %v1709, 0
    %v1784 = vsel %vm185, %v1717, 0
    %v1787 = vsel %vm185, %v1725, 0
    %v1790 = vsel %vm185, %v1733, 0
    %v1793 = vsel %vm185, %v1741, 0
    %v1796 = vsel %vm185, %v1749, 0
    %v1799 = vsel %vm185, %v1757, 0
    %v1802 = vsel %vm185, %v1760, 0
    %v1805 = vsel %vm225, %v1764, 0
    %1807 = vmatprep.subr.bf16.mxu0 0
    %1808 = vmatpush1.bf16.msra.mxu0 0
    %1809 = vmatprep.subr.bf16.mxu0 0
    %1810 = vmatpush1.bf16.msra.mxu0 0
    %1811 = vmatprep.subr.bf16.mxu0 0
    %1812 = vmatpush1.bf16.msra.mxu0 0
    %1813 = vmatprep.subr.bf16.mxu0 0
    %1814 = vmatpush1.bf16.msra.mxu0 0
    %1815 = vmatprep.subr.bf16.mxu0 0
    %1816 = vmatpush1.bf16.msra.mxu0 0
    %1817 = vmatprep.subr.bf16.mxu0 0
    %1818 = vmatpush1.bf16.msra.mxu0 0
    %1819 = vmatprep.subr.bf16.mxu0 0
    %1820 = vmatpush1.bf16.msra.mxu0 0
    %1821 = vmatprep.subr.bf16.mxu0 0
    %1822 = vmatpush1.bf16.msra.mxu0 %v1805
    %1823 = vmatprep.subr.bf16.mxu0 0
    %1824 = vmatpush2.bf16.msra.mxu0 0
    %1825 = vmatprep.subr.bf16.mxu0 0
    %1826 = vmatpush2.bf16.msra.mxu0 0
    %1827 = vmatprep.subr.bf16.mxu0 0
    %1828 = vmatpush2.bf16.msra.mxu0 0
    %1829 = vmatprep.subr.bf16.mxu0 0
    %1830 = vmatpush2.bf16.msra.mxu0 0
    %1831 = vmatprep.subr.bf16.mxu0 0
    %1832 = vmatpush2.bf16.msra.mxu0 0
    %1833 = vmatprep.subr.bf16.mxu0 0
    %1834 = vmatpush2.bf16.msra.mxu0 0
    %1835 = vmatprep.subr.bf16.mxu0 0
    %1836 = vmatpush2.bf16.msra.mxu0 0
    %1837 = vmatprep.subr.bf16.mxu0 0
    %1838 = vmatpush2.bf16.msra.mxu0 0
    %1839 = vmatprep.mubr.bf16.mxu0 0
    %1840 = vmatmul.mubr.bf16.gmra.mxu0 %v1766
    %v1841 = vpop.f32.mrf.mxu0
    %v1842 = vadd.f32 0.0, %v1841
    %v1843 = vpop.f32.mrf.mxu0
    %v1844 = vpop.f32.mrf.mxu0
    %v1845 = vadd.f32 0.0, %v1844
    %v1846 = vpop.f32.mrf.mxu0
    %1847 = vmatprep.mubr.bf16.mxu0 0
    %1848 = vmatmul.mubr.bf16.gmra.mxu0 %v1769
    %v1849 = vpop.f32.mrf.mxu0
    %v1850 = vadd.f32 0.0, %v1849
    %v1851 = vpop.f32.mrf.mxu0
    %v1852 = vpop.f32.mrf.mxu0
    %v1853 = vadd.f32 0.0, %v1852
    %v1854 = vpop.f32.mrf.mxu0
    %1855 = vmatprep.mubr.bf16.mxu0 0
    %1856 = vmatmul.mubr.bf16.gmra.mxu0 %v1772
    %v1857 = vpop.f32.mrf.mxu0
    %v1858 = vadd.f32 0.0, %v1857
    %v1859 = vpop.f32.mrf.mxu0
    %v1860 = vpop.f32.mrf.mxu0
    %v1861 = vadd.f32 0.0, %v1860
    %v1862 = vpop.f32.mrf.mxu0
    %1863 = vmatprep.mubr.bf16.mxu0 0
    %1864 = vmatmul.mubr.bf16.gmra.mxu0 %v1775
    %v1865 = vpop.f32.mrf.mxu0
    %v1866 = vadd.f32 0.0, %v1865
    %v1867 = vpop.f32.mrf.mxu0
    %v1868 = vpop.f32.mrf.mxu0
    %v1869 = vadd.f32 0.0, %v1868
    %v1870 = vpop.f32.mrf.mxu0
    %1871 = vmatprep.mubr.bf16.mxu0 0
    %1872 = vmatmul.mubr.bf16.gmra.mxu0 %v1778
    %v1873 = vpop.f32.mrf.mxu0
    %v1874 = vadd.f32 0.0, %v1873
    %v1875 = vpop.f32.mrf.mxu0
    %v1876 = vpop.f32.mrf.mxu0
    %v1877 = vadd.f32 0.0, %v1876
    %v1878 = vpop.f32.mrf.mxu0
    %1879 = vmatprep.mubr.bf16.mxu0 0
    %1880 = vmatmul.mubr.bf16.gmra.mxu0 %v1781
    %v1881 = vpop.f32.mrf.mxu0
    %v1882 = vadd.f32 0.0, %v1881
    %v1883 = vpop.f32.mrf.mxu0
    %v1884 = vpop.f32.mrf.mxu0
    %v1885 = vadd.f32 0.0, %v1884
    %v1886 = vpop.f32.mrf.mxu0
    %1887 = vmatprep.mubr.bf16.mxu0 0
    %1888 = vmatmul.mubr.bf16.gmra.mxu0 %v1784
    %v1889 = vpop.f32.mrf.mxu0
    %v1890 = vadd.f32 0.0, %v1889
    %v1891 = vpop.f32.mrf.mxu0
    %v1892 = vpop.f32.mrf.mxu0
    %v1893 = vadd.f32 0.0, %v1892
    %v1894 = vpop.f32.mrf.mxu0
    %1895 = vmatprep.mubr.bf16.mxu0 0
    %1896 = vmatmul.mubr.bf16.gmra.mxu0 %v1787
    %v1897 = vpop.f32.mrf.mxu0
    %v1898 = vadd.f32 0.0, %v1897
    %v1899 = vpop.f32.mrf.mxu0
    %v1900 = vpop.f32.mrf.mxu0
    %v1901 = vadd.f32 0.0, %v1900
    %v1902 = vpop.f32.mrf.mxu0
    %1903 = vmatprep.mubr.bf16.mxu0 0
    %1904 = vmatmul.mubr.bf16.gmra.mxu0 %v1790
    %v1905 = vpop.f32.mrf.mxu0
    %v1906 = vadd.f32 0.0, %v1905
    %v1907 = vpop.f32.mrf.mxu0
    %v1908 = vpop.f32.mrf.mxu0
    %v1909 = vadd.f32 0.0, %v1908
    %v1910 = vpop.f32.mrf.mxu0
    %1911 = vmatprep.mubr.bf16.mxu0 0
    %1912 = vmatmul.mubr.bf16.gmra.mxu0 %v1793
    %v1913 = vpop.f32.mrf.mxu0
    %v1914 = vadd.f32 0.0, %v1913
    %v1915 = vpop.f32.mrf.mxu0
    %v1916 = vpop.f32.mrf.mxu0
    %v1917 = vadd.f32 0.0, %v1916
    %v1918 = vpop.f32.mrf.mxu0
    %1919 = vmatprep.mubr.bf16.mxu0 0
    %1920 = vmatmul.mubr.bf16.gmra.mxu0 %v1796
    %v1921 = vpop.f32.mrf.mxu0
    %v1922 = vadd.f32 0.0, %v1921
    %v1923 = vpop.f32.mrf.mxu0
    %v1924 = vpop.f32.mrf.mxu0
    %v1925 = vadd.f32 0.0, %v1924
    %v1926 = vpop.f32.mrf.mxu0
    %1927 = vmatprep.mubr.bf16.mxu0 0
    %1928 = vmatmul.mubr.bf16.gmra.mxu0 %v1799
    %v1929 = vpop.f32.mrf.mxu0
    %v1930 = vadd.f32 0.0, %v1929
    %v1931 = vpop.f32.mrf.mxu0
    %v1932 = vpop.f32.mrf.mxu0
    %v1933 = vadd.f32 0.0, %v1932
    %v1934 = vpop.f32.mrf.mxu0
    %1935 = vmatprep.mubr.bf16.mxu0 0
    %1936 = vmatmul.mubr.bf16.gmra.mxu0 %v1802
    %v1937 = vpop.f32.mrf.mxu0
    %v1938 = vadd.f32 0.0, %v1937
    %v1939 = vpop.f32.mrf.mxu0
    %v1940 = vpop.f32.mrf.mxu0
    %v1941 = vpop.f32.mrf.mxu0
    %1942 = vdwg.mxu0
    %v1943 = vadd.f32 %v1540, %v1842
    %v1944 = vadd.f32 %v1541, %v1845
    %v1945 = vadd.f32 %v1542, %v1850
    %v1946 = vadd.f32 %v1543, %v1853
    %v1947 = vadd.f32 %v1544, %v1858
    %v1948 = vadd.f32 %v1545, %v1861
    %v1949 = vadd.f32 %v1546, %v1866
    %v1950 = vadd.f32 %v1547, %v1869
    %v1951 = vadd.f32 %v1548, %v1874
    %v1952 = vadd.f32 %v1549, %v1877
    %v1953 = vadd.f32 %v1550, %v1882
    %v1954 = vadd.f32 %v1551, %v1885
    %v1955 = vadd.f32 %v1552, %v1890
    %v1956 = vadd.f32 %v1553, %v1893
    %v1957 = vadd.f32 %v1554, %v1898
    %v1958 = vadd.f32 %v1555, %v1901
    %v1959 = vadd.f32 %v1556, %v1906
    %v1960 = vadd.f32 %v1557, %v1909
    %v1961 = vadd.f32 %v1558, %v1914
    %v1962 = vadd.f32 %v1559, %v1917
    %v1963 = vadd.f32 %v1560, %v1922
    %v1964 = vadd.f32 %v1561, %v1925
    %v1965 = vadd.f32 %v1562, %v1930
    %v1966 = vadd.f32 %v1563, %v1933
    %v1967 = vadd.f32 %v1564, %v1938
    %v1968 = vld [vmem:[%s0 + $0xc] sm:$0xf]
    %v1969 = vld [vmem:[%s0 + $0x10] sm:$0xf]
    %v1970 = vld [vmem:[%s0 + $0x14] sm:$0xf]
    %v1971 = vld [vmem:[%s0 + $0x18] sm:$0xf]
    %v1972 = vld [vmem:[%s0 + $0x1c] sm:$0xf]
    %v1973 = vld [vmem:[%s0 + $0x20] sm:$0xf]
    %v1974 = vld [vmem:[%s0 + $0x24] sm:$0xf]
    %v1975 = vld [vmem:[%s0 + $0x28] sm:$0xf]
    %v1976 = vld [vmem:[%s0 + $0x2c] sm:$0xf]
    %v1977 = vld [vmem:[%s0 + $0x30] sm:$0xf]
    %v1978 = vld [vmem:[%s0 + $0x34] sm:$0xf]
    %v1979 = vld [vmem:[%s0 + $0x38] sm:$0xf]
    %v1980 = vld [vmem:[%s0 + $0x3c] sm:$0xf]
    %v1981 = vld [vmem:[%s0 + $0x40] sm:$0xf]
    %v1982 = vld [vmem:[%s0 + $0x44] sm:$0xf]
    %v1983 = vld [vmem:[%s0 + $0x48] sm:$0xf]
    %v1984 = vld [vmem:[%s0 + $0x4c] sm:$0xf]
    %v1985 = vld [vmem:[%s0 + $0x50] sm:$0xf]
    %v1986 = vld [vmem:[%s0 + $0x54] sm:$0xf]
    %v1987 = vld [vmem:[%s0 + $0x58] sm:$0xf]
    %v1988 = vld [vmem:[%s0 + $0x5c] sm:$0xf]
    %v1989 = vld [vmem:[%s0 + $0x60] sm:$0xf]
    %v1990 = vld [vmem:[%s0 + $0x64] sm:$0xf]
    %v1991 = vld [vmem:[%s0 + $0x68] sm:$0xf]
    %v1992 = vld [vmem:[%s0 + $0x6c] sm:$0xf]
    %v1993 = vld [vmem:[%s0 + $0x70] sm:$0x1]
    %v1994 = vld [vmem:[%s2 + $0xc] sm:$0x3]
    %v2021 = vunpack.c.l.b16 %v1968
    %v2022 = vunpack.c.l.b16 %v1969
    %v2023 = vunpack.c.l.b16 %v1970
    %v2024 = vunpack.c.l.b16 %v1971
    %v2025 = vunpack.c.l.b16 %v1972
    %v2026 = vunpack.c.l.b16 %v1973
    %v2027 = vunpack.c.l.b16 %v1974
    %v2028 = vunpack.c.l.b16 %v1975
    %v2029 = vunpack.c.l.b16 %v1976
    %v2030 = vunpack.c.l.b16 %v1977
    %v2031 = vunpack.c.l.b16 %v1978
    %v2032 = vunpack.c.l.b16 %v1979
    %v2033 = vunpack.c.l.b16 %v1980
    %v2034 = vunpack.c.l.b16 %v1981
    %v2035 = vunpack.c.l.b16 %v1982
    %v2036 = vunpack.c.l.b16 %v1983
    %v2037 = vunpack.c.l.b16 %v1984
    %v2038 = vunpack.c.l.b16 %v1985
    %v2039 = vunpack.c.l.b16 %v1986
    %v2040 = vunpack.c.l.b16 %v1987
    %v2041 = vunpack.c.l.b16 %v1988
    %v2042 = vunpack.c.l.b16 %v1989
    %v2043 = vunpack.c.l.b16 %v1990
    %v2044 = vunpack.c.l.b16 %v1991
    %v2045 = vunpack.c.l.b16 %v1992
    %v2046 = vunpack.c.l.b16 %v1993
    %v2047 = vpack.c.b16 %v2022, %v2021
    %v2048 = vpack.c.b16 %v2024, %v2023
    %v2049 = vpack.c.b16 %v2026, %v2025
    %v2050 = vpack.c.b16 %v2028, %v2027
    %v2051 = vpack.c.b16 %v2030, %v2029
    %v2052 = vpack.c.b16 %v2032, %v2031
    %v2053 = vpack.c.b16 %v2034, %v2033
    %v2054 = vpack.c.b16 %v2036, %v2035
    %v2055 = vpack.c.b16 %v2038, %v2037
    %v2056 = vpack.c.b16 %v2040, %v2039
    %v2057 = vpack.c.b16 %v2042, %v2041
    %v2058 = vpack.c.b16 %v2044, %v2043
    %v2059 = vpack.c.b16 %v2046, %v2045
    %v2061 = vshrl.u32 %v2047, 16
    %v2063 = vshll.u32 %v2047, 16
    %v2065 = vrot.slane %v2063, 1
    %v2066 = vor.u32 %v2061, %v2065
    %v2068 = vshll.u32 %v2048, 16
    %v2070 = vrot.slane %v2068, 1
    %v2071 = vsel %vm1657, %v2066, %v2070
    %v2072 = vshrl.u32 %v2048, 16
    %v2074 = vor.u32 %v2072, %v2070
    %v2076 = vshll.u32 %v2049, 16
    %v2078 = vrot.slane %v2076, 1
    %v2079 = vsel %vm1657, %v2074, %v2078
    %v2080 = vshrl.u32 %v2049, 16
    %v2082 = vor.u32 %v2080, %v2078
    %v2084 = vshll.u32 %v2050, 16
    %v2086 = vrot.slane %v2084, 1
    %v2087 = vsel %vm1657, %v2082, %v2086
    %v2088 = vshrl.u32 %v2050, 16
    %v2090 = vor.u32 %v2088, %v2086
    %v2092 = vshll.u32 %v2051, 16
    %v2094 = vrot.slane %v2092, 1
    %v2095 = vsel %vm1657, %v2090, %v2094
    %v2096 = vshrl.u32 %v2051, 16
    %v2098 = vor.u32 %v2096, %v2094
    %v2100 = vshll.u32 %v2052, 16
    %v2102 = vrot.slane %v2100, 1
    %v2103 = vsel %vm1657, %v2098, %v2102
    %v2104 = vshrl.u32 %v2052, 16
    %v2106 = vor.u32 %v2104, %v2102
    %v2108 = vshll.u32 %v2053, 16
    %v2110 = vrot.slane %v2108, 1
    %v2111 = vsel %vm1657, %v2106, %v2110
    %v2112 = vshrl.u32 %v2053, 16
    %v2114 = vor.u32 %v2112, %v2110
    %v2116 = vshll.u32 %v2054, 16
    %v2118 = vrot.slane %v2116, 1
    %v2119 = vsel %vm1657, %v2114, %v2118
    %v2120 = vshrl.u32 %v2054, 16
    %v2122 = vor.u32 %v2120, %v2118
    %v2124 = vshll.u32 %v2055, 16
    %v2126 = vrot.slane %v2124, 1
    %v2127 = vsel %vm1657, %v2122, %v2126
    %v2128 = vshrl.u32 %v2055, 16
    %v2130 = vor.u32 %v2128, %v2126
    %v2132 = vshll.u32 %v2056, 16
    %v2134 = vrot.slane %v2132, 1
    %v2135 = vsel %vm1657, %v2130, %v2134
    %v2136 = vshrl.u32 %v2056, 16
    %v2138 = vor.u32 %v2136, %v2134
    %v2140 = vshll.u32 %v2057, 16
    %v2142 = vrot.slane %v2140, 1
    %v2143 = vsel %vm1657, %v2138, %v2142
    %v2144 = vshrl.u32 %v2057, 16
    %v2146 = vor.u32 %v2144, %v2142
    %v2148 = vshll.u32 %v2058, 16
    %v2150 = vrot.slane %v2148, 1
    %v2151 = vsel %vm1657, %v2146, %v2150
    %v2152 = vshrl.u32 %v2058, 16
    %v2154 = vor.u32 %v2152, %v2150
    %v2156 = vshll.u32 %v2059, 16
    %v2158 = vrot.slane %v2156, 1
    %v2159 = vsel %vm1657, %v2154, %v2158
    %v2160 = vshrl.u32 %v2059, 16
    %v2162 = vor.u32 %v2160, %v2158
    %v2164 = vsel %vm185, %v2071, 0
    %v2167 = vsel %vm185, %v2079, 0
    %v2170 = vsel %vm185, %v2087, 0
    %v2173 = vsel %vm185, %v2095, 0
    %v2176 = vsel %vm185, %v2103, 0
    %v2179 = vsel %vm185, %v2111, 0
    %v2182 = vsel %vm185, %v2119, 0
    %v2185 = vsel %vm185, %v2127, 0
    %v2188 = vsel %vm185, %v2135, 0
    %v2191 = vsel %vm185, %v2143, 0
    %v2194 = vsel %vm185, %v2151, 0
    %v2197 = vsel %vm185, %v2159, 0
    %v2200 = vsel %vm185, %v2162, 0
    %v2203 = vsel %vm225, %v1994, 0
    %2205 = vmatprep.subr.bf16.mxu0 0
    %2206 = vmatpush1.bf16.msra.mxu0 0
    %2207 = vmatprep.subr.bf16.mxu0 0
    %2208 = vmatpush1.bf16.msra.mxu0 0
    %2209 = vmatprep.subr.bf16.mxu0 0
    %2210 = vmatpush1.bf16.msra.mxu0 0
    %2211 = vmatprep.subr.bf16.mxu0 0
    %2212 = vmatpush1.bf16.msra.mxu0 0
    %2213 = vmatprep.subr.bf16.mxu0 0
    %2214 = vmatpush1.bf16.msra.mxu0 0
    %2215 = vmatprep.subr.bf16.mxu0 0
    %2216 = vmatpush1.bf16.msra.mxu0 0
    %2217 = vmatprep.subr.bf16.mxu0 0
    %2218 = vmatpush1.bf16.msra.mxu0 0
    %2219 = vmatprep.subr.bf16.mxu0 0
    %2220 = vmatpush1.bf16.msra.mxu0 %v2203
    %2221 = vmatprep.subr.bf16.mxu0 0
    %2222 = vmatpush2.bf16.msra.mxu0 0
    %2223 = vmatprep.subr.bf16.mxu0 0
    %2224 = vmatpush2.bf16.msra.mxu0 0
    %2225 = vmatprep.subr.bf16.mxu0 0
    %2226 = vmatpush2.bf16.msra.mxu0 0
    %2227 = vmatprep.subr.bf16.mxu0 0
    %2228 = vmatpush2.bf16.msra.mxu0 0
    %2229 = vmatprep.subr.bf16.mxu0 0
    %2230 = vmatpush2.bf16.msra.mxu0 0
    %2231 = vmatprep.subr.bf16.mxu0 0
    %2232 = vmatpush2.bf16.msra.mxu0 0
    %2233 = vmatprep.subr.bf16.mxu0 0
    %2234 = vmatpush2.bf16.msra.mxu0 0
    %2235 = vmatprep.subr.bf16.mxu0 0
    %2236 = vmatpush2.bf16.msra.mxu0 0
    %2237 = vmatprep.mubr.bf16.mxu0 0
    %2238 = vmatmul.mubr.bf16.gmra.mxu0 %v2164
    %v2239 = vpop.f32.mrf.mxu0
    %v2240 = vadd.f32 0.0, %v2239
    %v2241 = vpop.f32.mrf.mxu0
    %v2242 = vpop.f32.mrf.mxu0
    %v2243 = vadd.f32 0.0, %v2242
    %v2244 = vpop.f32.mrf.mxu0
    %2245 = vmatprep.mubr.bf16.mxu0 0
    %2246 = vmatmul.mubr.bf16.gmra.mxu0 %v2167
    %v2247 = vpop.f32.mrf.mxu0
    %v2248 = vadd.f32 0.0, %v2247
    %v2249 = vpop.f32.mrf.mxu0
    %v2250 = vpop.f32.mrf.mxu0
    %v2251 = vadd.f32 0.0, %v2250
    %v2252 = vpop.f32.mrf.mxu0
    %2253 = vmatprep.mubr.bf16.mxu0 0
    %2254 = vmatmul.mubr.bf16.gmra.mxu0 %v2170
    %v2255 = vpop.f32.mrf.mxu0
    %v2256 = vadd.f32 0.0, %v2255
    %v2257 = vpop.f32.mrf.mxu0
    %v2258 = vpop.f32.mrf.mxu0
    %v2259 = vadd.f32 0.0, %v2258
    %v2260 = vpop.f32.mrf.mxu0
    %2261 = vmatprep.mubr.bf16.mxu0 0
    %2262 = vmatmul.mubr.bf16.gmra.mxu0 %v2173
    %v2263 = vpop.f32.mrf.mxu0
    %v2264 = vadd.f32 0.0, %v2263
    %v2265 = vpop.f32.mrf.mxu0
    %v2266 = vpop.f32.mrf.mxu0
    %v2267 = vadd.f32 0.0, %v2266
    %v2268 = vpop.f32.mrf.mxu0
    %2269 = vmatprep.mubr.bf16.mxu0 0
    %2270 = vmatmul.mubr.bf16.gmra.mxu0 %v2176
    %v2271 = vpop.f32.mrf.mxu0
    %v2272 = vadd.f32 0.0, %v2271
    %v2273 = vpop.f32.mrf.mxu0
    %v2274 = vpop.f32.mrf.mxu0
    %v2275 = vadd.f32 0.0, %v2274
    %v2276 = vpop.f32.mrf.mxu0
    %2277 = vmatprep.mubr.bf16.mxu0 0
    %2278 = vmatmul.mubr.bf16.gmra.mxu0 %v2179
    %v2279 = vpop.f32.mrf.mxu0
    %v2280 = vadd.f32 0.0, %v2279
    %v2281 = vpop.f32.mrf.mxu0
    %v2282 = vpop.f32.mrf.mxu0
    %v2283 = vadd.f32 0.0, %v2282
    %v2284 = vpop.f32.mrf.mxu0
    %2285 = vmatprep.mubr.bf16.mxu0 0
    %2286 = vmatmul.mubr.bf16.gmra.mxu0 %v2182
    %v2287 = vpop.f32.mrf.mxu0
    %v2288 = vadd.f32 0.0, %v2287
    %v2289 = vpop.f32.mrf.mxu0
    %v2290 = vpop.f32.mrf.mxu0
    %v2291 = vadd.f32 0.0, %v2290
    %v2292 = vpop.f32.mrf.mxu0
    %2293 = vmatprep.mubr.bf16.mxu0 0
    %2294 = vmatmul.mubr.bf16.gmra.mxu0 %v2185
    %v2295 = vpop.f32.mrf.mxu0
    %v2296 = vadd.f32 0.0, %v2295
    %v2297 = vpop.f32.mrf.mxu0
    %v2298 = vpop.f32.mrf.mxu0
    %v2299 = vadd.f32 0.0, %v2298
    %v2300 = vpop.f32.mrf.mxu0
    %2301 = vmatprep.mubr.bf16.mxu0 0
    %2302 = vmatmul.mubr.bf16.gmra.mxu0 %v2188
    %v2303 = vpop.f32.mrf.mxu0
    %v2304 = vadd.f32 0.0, %v2303
    %v2305 = vpop.f32.mrf.mxu0
    %v2306 = vpop.f32.mrf.mxu0
    %v2307 = vadd.f32 0.0, %v2306
    %v2308 = vpop.f32.mrf.mxu0
    %2309 = vmatprep.mubr.bf16.mxu0 0
    %2310 = vmatmul.mubr.bf16.gmra.mxu0 %v2191
    %v2311 = vpop.f32.mrf.mxu0
    %v2312 = vadd.f32 0.0, %v2311
    %v2313 = vpop.f32.mrf.mxu0
    %v2314 = vpop.f32.mrf.mxu0
    %v2315 = vadd.f32 0.0, %v2314
    %v2316 = vpop.f32.mrf.mxu0
    %2317 = vmatprep.mubr.bf16.mxu0 0
    %2318 = vmatmul.mubr.bf16.gmra.mxu0 %v2194
    %v2319 = vpop.f32.mrf.mxu0
    %v2320 = vadd.f32 0.0, %v2319
    %v2321 = vpop.f32.mrf.mxu0
    %v2322 = vpop.f32.mrf.mxu0
    %v2323 = vadd.f32 0.0, %v2322
    %v2324 = vpop.f32.mrf.mxu0
    %2325 = vmatprep.mubr.bf16.mxu0 0
    %2326 = vmatmul.mubr.bf16.gmra.mxu0 %v2197
    %v2327 = vpop.f32.mrf.mxu0
    %v2328 = vadd.f32 0.0, %v2327
    %v2329 = vpop.f32.mrf.mxu0
    %v2330 = vpop.f32.mrf.mxu0
    %v2331 = vadd.f32 0.0, %v2330
    %v2332 = vpop.f32.mrf.mxu0
    %2333 = vmatprep.mubr.bf16.mxu0 0
    %2334 = vmatmul.mubr.bf16.gmra.mxu0 %v2200
    %v2335 = vpop.f32.mrf.mxu0
    %v2336 = vadd.f32 0.0, %v2335
    %v2337 = vpop.f32.mrf.mxu0
    %v2338 = vpop.f32.mrf.mxu0
    %v2339 = vpop.f32.mrf.mxu0
    %2340 = vdwg.mxu0
    %v2341 = vadd.f32 %v1943, %v2240
    %v2342 = vadd.f32 %v1944, %v2243
    %v2343 = vadd.f32 %v1945, %v2248
    %v2344 = vadd.f32 %v1946, %v2251
    %v2345 = vadd.f32 %v1947, %v2256
    %v2346 = vadd.f32 %v1948, %v2259
    %v2347 = vadd.f32 %v1949, %v2264
    %v2348 = vadd.f32 %v1950, %v2267
    %v2349 = vadd.f32 %v1951, %v2272
    %v2350 = vadd.f32 %v1952, %v2275
    %v2351 = vadd.f32 %v1953, %v2280
    %v2352 = vadd.f32 %v1954, %v2283
    %v2353 = vadd.f32 %v1955, %v2288
    %v2354 = vadd.f32 %v1956, %v2291
    %v2355 = vadd.f32 %v1957, %v2296
    %v2356 = vadd.f32 %v1958, %v2299
    %v2357 = vadd.f32 %v1959, %v2304
    %v2358 = vadd.f32 %v1960, %v2307
    %v2359 = vadd.f32 %v1961, %v2312
    %v2360 = vadd.f32 %v1962, %v2315
    %v2361 = vadd.f32 %v1963, %v2320
    %v2362 = vadd.f32 %v1964, %v2323
    %v2363 = vadd.f32 %v1965, %v2328
    %v2364 = vadd.f32 %v1966, %v2331
    %v2365 = vadd.f32 %v1967, %v2336
    %v2366 = vld [vmem:[%s0 + $0xc] sm:$0xe]
    %v2367 = vld [vmem:[%s2 + $0xc] sm:$0xc]
    %v2369 = vunpack.c.l.b16 %v2366
    %v2370 = vpack.c.b16 %v2022, %v2369
    %vm2371 = vcmask 1046528
    %v2372 = vrot.slane %v2370, 1
    %v2373 = vrot.slane %v2048, 1
    %v2374 = vsel %vm2371, %v2372, %v2373
    %v2375 = vrot.slane %v2049, 1
    %v2376 = vsel %vm2371, %v2373, %v2375
    %v2377 = vrot.slane %v2050, 1
    %v2378 = vsel %vm2371, %v2375, %v2377
    %v2379 = vrot.slane %v2051, 1
    %v2380 = vsel %vm2371, %v2377, %v2379
    %v2381 = vrot.slane %v2052, 1
    %v2382 = vsel %vm2371, %v2379, %v2381
    %v2383 = vrot.slane %v2053, 1
    %v2384 = vsel %vm2371, %v2381, %v2383
    %v2385 = vrot.slane %v2054, 1
    %v2386 = vsel %vm2371, %v2383, %v2385
    %v2387 = vrot.slane %v2055, 1
    %v2388 = vsel %vm2371, %v2385, %v2387
    %v2389 = vrot.slane %v2056, 1
    %v2390 = vsel %vm2371, %v2387, %v2389
    %v2391 = vrot.slane %v2057, 1
    %v2392 = vsel %vm2371, %v2389, %v2391
    %v2393 = vrot.slane %v2058, 1
    %v2394 = vsel %vm2371, %v2391, %v2393
    %v2395 = vrot.slane %v2059, 1
    %v2396 = vsel %vm2371, %v2393, %v2395
    %v2398 = vunpack.c.l.b16 %v2367
    %v2399 = vpack.c.b16 %v2398, %v2398
    %v2400 = vrot.slane %v2399, 2
    %v2402 = vsel %vm185, %v2374, 0
    %v2405 = vsel %vm185, %v2376, 0
    %v2408 = vsel %vm185, %v2378, 0
    %v2411 = vsel %vm185, %v2380, 0
    %v2414 = vsel %vm185, %v2382, 0
    %v2417 = vsel %vm185, %v2384, 0
    %v2420 = vsel %vm185, %v2386, 0
    %v2423 = vsel %vm185, %v2388, 0
    %v2426 = vsel %vm185, %v2390, 0
    %v2429 = vsel %vm185, %v2392, 0
    %v2432 = vsel %vm185, %v2394, 0
    %v2435 = vsel %vm185, %v2396, 0
    %v2438 = vsel %vm185, %v2395, 0
    %v2441 = vsel %vm225, %v2400, 0
    %2443 = vmatprep.subr.bf16.mxu0 0
    %2444 = vmatpush1.bf16.msra.mxu0 0
    %2445 = vmatprep.subr.bf16.mxu0 0
    %2446 = vmatpush1.bf16.msra.mxu0 0
    %2447 = vmatprep.subr.bf16.mxu0 0
    %2448 = vmatpush1.bf16.msra.mxu0 0
    %2449 = vmatprep.subr.bf16.mxu0 0
    %2450 = vmatpush1.bf16.msra.mxu0 0
    %2451 = vmatprep.subr.bf16.mxu0 0
    %2452 = vmatpush1.bf16.msra.mxu0 0
    %2453 = vmatprep.subr.bf16.mxu0 0
    %2454 = vmatpush1.bf16.msra.mxu0 0
    %2455 = vmatprep.subr.bf16.mxu0 0
    %2456 = vmatpush1.bf16.msra.mxu0 0
    %2457 = vmatprep.subr.bf16.mxu0 0
    %2458 = vmatpush1.bf16.msra.mxu0 %v2441
    %2459 = vmatprep.subr.bf16.mxu0 0
    %2460 = vmatpush2.bf16.msra.mxu0 0
    %2461 = vmatprep.subr.bf16.mxu0 0
    %2462 = vmatpush2.bf16.msra.mxu0 0
    %2463 = vmatprep.subr.bf16.mxu0 0
    %2464 = vmatpush2.bf16.msra.mxu0 0
    %2465 = vmatprep.subr.bf16.mxu0 0
    %2466 = vmatpush2.bf16.msra.mxu0 0
    %2467 = vmatprep.subr.bf16.mxu0 0
    %2468 = vmatpush2.bf16.msra.mxu0 0
    %2469 = vmatprep.subr.bf16.mxu0 0
    %2470 = vmatpush2.bf16.msra.mxu0 0
    %2471 = vmatprep.subr.bf16.mxu0 0
    %2472 = vmatpush2.bf16.msra.mxu0 0
    %2473 = vmatprep.subr.bf16.mxu0 0
    %2474 = vmatpush2.bf16.msra.mxu0 0
    %2475 = vmatprep.mubr.bf16.mxu0 0
    %2476 = vmatmul.mubr.bf16.gmra.mxu0 %v2402
    %v2477 = vpop.f32.mrf.mxu0
    %v2478 = vadd.f32 0.0, %v2477
    %v2479 = vpop.f32.mrf.mxu0
    %v2480 = vpop.f32.mrf.mxu0
    %v2481 = vadd.f32 0.0, %v2480
    %v2482 = vpop.f32.mrf.mxu0
    %2483 = vmatprep.mubr.bf16.mxu0 0
    %2484 = vmatmul.mubr.bf16.gmra.mxu0 %v2405
    %v2485 = vpop.f32.mrf.mxu0
    %v2486 = vadd.f32 0.0, %v2485
    %v2487 = vpop.f32.mrf.mxu0
    %v2488 = vpop.f32.mrf.mxu0
    %v2489 = vadd.f32 0.0, %v2488
    %v2490 = vpop.f32.mrf.mxu0
    %2491 = vmatprep.mubr.bf16.mxu0 0
    %2492 = vmatmul.mubr.bf16.gmra.mxu0 %v2408
    %v2493 = vpop.f32.mrf.mxu0
    %v2494 = vadd.f32 0.0, %v2493
    %v2495 = vpop.f32.mrf.mxu0
    %v2496 = vpop.f32.mrf.mxu0
    %v2497 = vadd.f32 0.0, %v2496
    %v2498 = vpop.f32.mrf.mxu0
    %2499 = vmatprep.mubr.bf16.mxu0 0
    %2500 = vmatmul.mubr.bf16.gmra.mxu0 %v2411
    %v2501 = vpop.f32.mrf.mxu0
    %v2502 = vadd.f32 0.0, %v2501
    %v2503 = vpop.f32.mrf.mxu0
    %v2504 = vpop.f32.mrf.mxu0
    %v2505 = vadd.f32 0.0, %v2504
    %v2506 = vpop.f32.mrf.mxu0
    %2507 = vmatprep.mubr.bf16.mxu0 0
    %2508 = vmatmul.mubr.bf16.gmra.mxu0 %v2414
    %v2509 = vpop.f32.mrf.mxu0
    %v2510 = vadd.f32 0.0, %v2509
    %v2511 = vpop.f32.mrf.mxu0
    %v2512 = vpop.f32.mrf.mxu0
    %v2513 = vadd.f32 0.0, %v2512
    %v2514 = vpop.f32.mrf.mxu0
    %2515 = vmatprep.mubr.bf16.mxu0 0
    %2516 = vmatmul.mubr.bf16.gmra.mxu0 %v2417
    %v2517 = vpop.f32.mrf.mxu0
    %v2518 = vadd.f32 0.0, %v2517
    %v2519 = vpop.f32.mrf.mxu0
    %v2520 = vpop.f32.mrf.mxu0
    %v2521 = vadd.f32 0.0, %v2520
    %v2522 = vpop.f32.mrf.mxu0
    %2523 = vmatprep.mubr.bf16.mxu0 0
    %2524 = vmatmul.mubr.bf16.gmra.mxu0 %v2420
    %v2525 = vpop.f32.mrf.mxu0
    %v2526 = vadd.f32 0.0, %v2525
    %v2527 = vpop.f32.mrf.mxu0
    %v2528 = vpop.f32.mrf.mxu0
    %v2529 = vadd.f32 0.0, %v2528
    %v2530 = vpop.f32.mrf.mxu0
    %2531 = vmatprep.mubr.bf16.mxu0 0
    %2532 = vmatmul.mubr.bf16.gmra.mxu0 %v2423
    %v2533 = vpop.f32.mrf.mxu0
    %v2534 = vadd.f32 0.0, %v2533
    %v2535 = vpop.f32.mrf.mxu0
    %v2536 = vpop.f32.mrf.mxu0
    %v2537 = vadd.f32 0.0, %v2536
    %v2538 = vpop.f32.mrf.mxu0
    %2539 = vmatprep.mubr.bf16.mxu0 0
    %2540 = vmatmul.mubr.bf16.gmra.mxu0 %v2426
    %v2541 = vpop.f32.mrf.mxu0
    %v2542 = vadd.f32 0.0, %v2541
    %v2543 = vpop.f32.mrf.mxu0
    %v2544 = vpop.f32.mrf.mxu0
    %v2545 = vadd.f32 0.0, %v2544
    %v2546 = vpop.f32.mrf.mxu0
    %2547 = vmatprep.mubr.bf16.mxu0 0
    %2548 = vmatmul.mubr.bf16.gmra.mxu0 %v2429
    %v2549 = vpop.f32.mrf.mxu0
    %v2550 = vadd.f32 0.0, %v2549
    %v2551 = vpop.f32.mrf.mxu0
    %v2552 = vpop.f32.mrf.mxu0
    %v2553 = vadd.f32 0.0, %v2552
    %v2554 = vpop.f32.mrf.mxu0
    %2555 = vmatprep.mubr.bf16.mxu0 0
    %2556 = vmatmul.mubr.bf16.gmra.mxu0 %v2432
    %v2557 = vpop.f32.mrf.mxu0
    %v2558 = vadd.f32 0.0, %v2557
    %v2559 = vpop.f32.mrf.mxu0
    %v2560 = vpop.f32.mrf.mxu0
    %v2561 = vadd.f32 0.0, %v2560
    %v2562 = vpop.f32.mrf.mxu0
    %2563 = vmatprep.mubr.bf16.mxu0 0
    %2564 = vmatmul.mubr.bf16.gmra.mxu0 %v2435
    %v2565 = vpop.f32.mrf.mxu0
    %v2566 = vadd.f32 0.0, %v2565
    %v2567 = vpop.f32.mrf.mxu0
    %v2568 = vpop.f32.mrf.mxu0
    %v2569 = vadd.f32 0.0, %v2568
    %v2570 = vpop.f32.mrf.mxu0
    %2571 = vmatprep.mubr.bf16.mxu0 0
    %2572 = vmatmul.mubr.bf16.gmra.mxu0 %v2438
    %v2573 = vpop.f32.mrf.mxu0
    %v2574 = vadd.f32 0.0, %v2573
    %v2575 = vpop.f32.mrf.mxu0
    %v2576 = vpop.f32.mrf.mxu0
    %v2577 = vpop.f32.mrf.mxu0
    %2578 = vdwg.mxu0
    %v2579 = vadd.f32 %v2341, %v2478
    %v2580 = vadd.f32 %v2342, %v2481
    %v2581 = vadd.f32 %v2343, %v2486
    %v2582 = vadd.f32 %v2344, %v2489
    %v2583 = vadd.f32 %v2345, %v2494
    %v2584 = vadd.f32 %v2346, %v2497
    %v2585 = vadd.f32 %v2347, %v2502
    %v2586 = vadd.f32 %v2348, %v2505
    %v2587 = vadd.f32 %v2349, %v2510
    %v2588 = vadd.f32 %v2350, %v2513
    %v2589 = vadd.f32 %v2351, %v2518
    %v2590 = vadd.f32 %v2352, %v2521
    %v2591 = vadd.f32 %v2353, %v2526
    %v2592 = vadd.f32 %v2354, %v2529
    %v2593 = vadd.f32 %v2355, %v2534
    %v2594 = vadd.f32 %v2356, %v2537
    %v2595 = vadd.f32 %v2357, %v2542
    %v2596 = vadd.f32 %v2358, %v2545
    %v2597 = vadd.f32 %v2359, %v2550
    %v2598 = vadd.f32 %v2360, %v2553
    %v2599 = vadd.f32 %v2361, %v2558
    %v2600 = vadd.f32 %v2362, %v2561
    %v2601 = vadd.f32 %v2363, %v2566
    %v2602 = vadd.f32 %v2364, %v2569
    %v2603 = vadd.f32 %v2365, %v2574
    %v2604 = vld [vmem:[%s0 + $0x70] sm:$0x3]
    %v2605 = vld [vmem:[%s2 + $0x10] sm:$0x3]
    %v2607 = vunpack.c.l.b16 %v2604
    %v2608 = vpack.c.b16 %v2607, %v2045
    %vm2609 = vsmask.f32 6400
    %v2611 = vshrl.u32 %v2370, 16
    %v2613 = vrot.slane %v2611, 1
    %v2614 = vshll.u32 %v2370, 16
    %v2616 = vrot.slane %v2614, 2
    %v2617 = vor.u32 %v2613, %v2616
    %v2618 = vrot.slane %v2072, 1
    %v2619 = vrot.slane %v2068, 2
    %v2620 = vor.u32 %v2618, %v2619
    %v2621 = vsel %vm2609, %v2617, %v2620
    %v2622 = vrot.slane %v2080, 1
    %v2623 = vrot.slane %v2076, 2
    %v2624 = vor.u32 %v2622, %v2623
    %v2625 = vsel %vm2609, %v2620, %v2624
    %v2626 = vrot.slane %v2088, 1
    %v2627 = vrot.slane %v2084, 2
    %v2628 = vor.u32 %v2626, %v2627
    %v2629 = vsel %vm2609, %v2624, %v2628
    %v2630 = vrot.slane %v2096, 1
    %v2631 = vrot.slane %v2092, 2
    %v2632 = vor.u32 %v2630, %v2631
    %v2633 = vsel %vm2609, %v2628, %v2632
    %v2634 = vrot.slane %v2104, 1
    %v2635 = vrot.slane %v2100, 2
    %v2636 = vor.u32 %v2634, %v2635
    %v2637 = vsel %vm2609, %v2632, %v2636
    %v2638 = vrot.slane %v2112, 1
    %v2639 = vrot.slane %v2108, 2
    %v2640 = vor.u32 %v2638, %v2639
    %v2641 = vsel %vm2609, %v2636, %v2640
    %v2642 = vrot.slane %v2120, 1
    %v2643 = vrot.slane %v2116, 2
    %v2644 = vor.u32 %v2642, %v2643
    %v2645 = vsel %vm2609, %v2640, %v2644
    %v2646 = vrot.slane %v2128, 1
    %v2647 = vrot.slane %v2124, 2
    %v2648 = vor.u32 %v2646, %v2647
    %v2649 = vsel %vm2609, %v2644, %v2648
    %v2650 = vrot.slane %v2136, 1
    %v2651 = vrot.slane %v2132, 2
    %v2652 = vor.u32 %v2650, %v2651
    %v2653 = vsel %vm2609, %v2648, %v2652
    %v2654 = vrot.slane %v2144, 1
    %v2655 = vrot.slane %v2140, 2
    %v2656 = vor.u32 %v2654, %v2655
    %v2657 = vsel %vm2609, %v2652, %v2656
    %v2658 = vrot.slane %v2152, 1
    %v2659 = vrot.slane %v2148, 2
    %v2660 = vor.u32 %v2658, %v2659
    %v2661 = vsel %vm2609, %v2656, %v2660
    %v2663 = vshrl.u32 %v2608, 16
    %v2665 = vrot.slane %v2663, 1
    %v2666 = vshll.u32 %v2608, 16
    %v2668 = vrot.slane %v2666, 2
    %v2669 = vor.u32 %v2665, %v2668
    %v2670 = vsel %vm2609, %v2660, %v2669
    %v2672 = vsel %vm185, %v2621, 0
    %v2675 = vsel %vm185, %v2625, 0
    %v2678 = vsel %vm185, %v2629, 0
    %v2681 = vsel %vm185, %v2633, 0
    %v2684 = vsel %vm185, %v2637, 0
    %v2687 = vsel %vm185, %v2641, 0
    %v2690 = vsel %vm185, %v2645, 0
    %v2693 = vsel %vm185, %v2649, 0
    %v2696 = vsel %vm185, %v2653, 0
    %v2699 = vsel %vm185, %v2657, 0
    %v2702 = vsel %vm185, %v2661, 0
    %v2705 = vsel %vm185, %v2670, 0
    %v2708 = vsel %vm185, %v2669, 0
    %v2711 = vsel %vm225, %v2605, 0
    %2713 = vmatprep.subr.bf16.mxu0 0
    %2714 = vmatpush1.bf16.msra.mxu0 0
    %2715 = vmatprep.subr.bf16.mxu0 0
    %2716 = vmatpush1.bf16.msra.mxu0 0
    %2717 = vmatprep.subr.bf16.mxu0 0
    %2718 = vmatpush1.bf16.msra.mxu0 0
    %2719 = vmatprep.subr.bf16.mxu0 0
    %2720 = vmatpush1.bf16.msra.mxu0 0
    %2721 = vmatprep.subr.bf16.mxu0 0
    %2722 = vmatpush1.bf16.msra.mxu0 0
    %2723 = vmatprep.subr.bf16.mxu0 0
    %2724 = vmatpush1.bf16.msra.mxu0 0
    %2725 = vmatprep.subr.bf16.mxu0 0
    %2726 = vmatpush1.bf16.msra.mxu0 0
    %2727 = vmatprep.subr.bf16.mxu0 0
    %2728 = vmatpush1.bf16.msra.mxu0 %v2711
    %2729 = vmatprep.subr.bf16.mxu0 0
    %2730 = vmatpush2.bf16.msra.mxu0 0
    %2731 = vmatprep.subr.bf16.mxu0 0
    %2732 = vmatpush2.bf16.msra.mxu0 0
    %2733 = vmatprep.subr.bf16.mxu0 0
    %2734 = vmatpush2.bf16.msra.mxu0 0
    %2735 = vmatprep.subr.bf16.mxu0 0
    %2736 = vmatpush2.bf16.msra.mxu0 0
    %2737 = vmatprep.subr.bf16.mxu0 0
    %2738 = vmatpush2.bf16.msra.mxu0 0
    %2739 = vmatprep.subr.bf16.mxu0 0
    %2740 = vmatpush2.bf16.msra.mxu0 0
    %2741 = vmatprep.subr.bf16.mxu0 0
    %2742 = vmatpush2.bf16.msra.mxu0 0
    %2743 = vmatprep.subr.bf16.mxu0 0
    %2744 = vmatpush2.bf16.msra.mxu0 0
    %2745 = vmatprep.mubr.bf16.mxu0 0
    %2746 = vmatmul.mubr.bf16.gmra.mxu0 %v2672
    %v2747 = vpop.f32.mrf.mxu0
    %v2748 = vadd.f32 0.0, %v2747
    %v2749 = vpop.f32.mrf.mxu0
    %v2750 = vpop.f32.mrf.mxu0
    %v2751 = vadd.f32 0.0, %v2750
    %v2752 = vpop.f32.mrf.mxu0
    %2753 = vmatprep.mubr.bf16.mxu0 0
    %2754 = vmatmul.mubr.bf16.gmra.mxu0 %v2675
    %v2755 = vpop.f32.mrf.mxu0
    %v2756 = vadd.f32 0.0, %v2755
    %v2757 = vpop.f32.mrf.mxu0
    %v2758 = vpop.f32.mrf.mxu0
    %v2759 = vadd.f32 0.0, %v2758
    %v2760 = vpop.f32.mrf.mxu0
    %2761 = vmatprep.mubr.bf16.mxu0 0
    %2762 = vmatmul.mubr.bf16.gmra.mxu0 %v2678
    %v2763 = vpop.f32.mrf.mxu0
    %v2764 = vadd.f32 0.0, %v2763
    %v2765 = vpop.f32.mrf.mxu0
    %v2766 = vpop.f32.mrf.mxu0
    %v2767 = vadd.f32 0.0, %v2766
    %v2768 = vpop.f32.mrf.mxu0
    %2769 = vmatprep.mubr.bf16.mxu0 0
    %2770 = vmatmul.mubr.bf16.gmra.mxu0 %v2681
    %v2771 = vpop.f32.mrf.mxu0
    %v2772 = vadd.f32 0.0, %v2771
    %v2773 = vpop.f32.mrf.mxu0
    %v2774 = vpop.f32.mrf.mxu0
    %v2775 = vadd.f32 0.0, %v2774
    %v2776 = vpop.f32.mrf.mxu0
    %2777 = vmatprep.mubr.bf16.mxu0 0
    %2778 = vmatmul.mubr.bf16.gmra.mxu0 %v2684
    %v2779 = vpop.f32.mrf.mxu0
    %v2780 = vadd.f32 0.0, %v2779
    %v2781 = vpop.f32.mrf.mxu0
    %v2782 = vpop.f32.mrf.mxu0
    %v2783 = vadd.f32 0.0, %v2782
    %v2784 = vpop.f32.mrf.mxu0
    %2785 = vmatprep.mubr.bf16.mxu0 0
    %2786 = vmatmul.mubr.bf16.gmra.mxu0 %v2687
    %v2787 = vpop.f32.mrf.mxu0
    %v2788 = vadd.f32 0.0, %v2787
    %v2789 = vpop.f32.mrf.mxu0
    %v2790 = vpop.f32.mrf.mxu0
    %v2791 = vadd.f32 0.0, %v2790
    %v2792 = vpop.f32.mrf.mxu0
    %2793 = vmatprep.mubr.bf16.mxu0 0
    %2794 = vmatmul.mubr.bf16.gmra.mxu0 %v2690
    %v2795 = vpop.f32.mrf.mxu0
    %v2796 = vadd.f32 0.0, %v2795
    %v2797 = vpop.f32.mrf.mxu0
    %v2798 = vpop.f32.mrf.mxu0
    %v2799 = vadd.f32 0.0, %v2798
    %v2800 = vpop.f32.mrf.mxu0
    %2801 = vmatprep.mubr.bf16.mxu0 0
    %2802 = vmatmul.mubr.bf16.gmra.mxu0 %v2693
    %v2803 = vpop.f32.mrf.mxu0
    %v2804 = vadd.f32 0.0, %v2803
    %v2805 = vpop.f32.mrf.mxu0
    %v2806 = vpop.f32.mrf.mxu0
    %v2807 = vadd.f32 0.0, %v2806
    %v2808 = vpop.f32.mrf.mxu0
    %2809 = vmatprep.mubr.bf16.mxu0 0
    %2810 = vmatmul.mubr.bf16.gmra.mxu0 %v2696
    %v2811 = vpop.f32.mrf.mxu0
    %v2812 = vadd.f32 0.0, %v2811
    %v2813 = vpop.f32.mrf.mxu0
    %v2814 = vpop.f32.mrf.mxu0
    %v2815 = vadd.f32 0.0, %v2814
    %v2816 = vpop.f32.mrf.mxu0
    %2817 = vmatprep.mubr.bf16.mxu0 0
    %2818 = vmatmul.mubr.bf16.gmra.mxu0 %v2699
    %v2819 = vpop.f32.mrf.mxu0
    %v2820 = vadd.f32 0.0, %v2819
    %v2821 = vpop.f32.mrf.mxu0
    %v2822 = vpop.f32.mrf.mxu0
    %v2823 = vadd.f32 0.0, %v2822
    %v2824 = vpop.f32.mrf.mxu0
    %2825 = vmatprep.mubr.bf16.mxu0 0
    %2826 = vmatmul.mubr.bf16.gmra.mxu0 %v2702
    %v2827 = vpop.f32.mrf.mxu0
    %v2828 = vadd.f32 0.0, %v2827
    %v2829 = vpop.f32.mrf.mxu0
    %v2830 = vpop.f32.mrf.mxu0
    %v2831 = vadd.f32 0.0, %v2830
    %v2832 = vpop.f32.mrf.mxu0
    %2833 = vmatprep.mubr.bf16.mxu0 0
    %2834 = vmatmul.mubr.bf16.gmra.mxu0 %v2705
    %v2835 = vpop.f32.mrf.mxu0
    %v2836 = vadd.f32 0.0, %v2835
    %v2837 = vpop.f32.mrf.mxu0
    %v2838 = vpop.f32.mrf.mxu0
    %v2839 = vadd.f32 0.0, %v2838
    %v2840 = vpop.f32.mrf.mxu0
    %2841 = vmatprep.mubr.bf16.mxu0 0
    %2842 = vmatmul.mubr.bf16.gmra.mxu0 %v2708
    %v2843 = vpop.f32.mrf.mxu0
    %v2844 = vadd.f32 0.0, %v2843
    %v2845 = vpop.f32.mrf.mxu0
    %v2846 = vpop.f32.mrf.mxu0
    %v2847 = vpop.f32.mrf.mxu0
    %2848 = vdwg.mxu0
    %v2849 = vadd.f32 %v2579, %v2748
    %v2850 = vadd.f32 %v2580, %v2751
    %v2851 = vadd.f32 %v2581, %v2756
    %v2852 = vadd.f32 %v2582, %v2759
    %v2853 = vadd.f32 %v2583, %v2764
    %v2854 = vadd.f32 %v2584, %v2767
    %v2855 = vadd.f32 %v2585, %v2772
    %v2856 = vadd.f32 %v2586, %v2775
    %v2857 = vadd.f32 %v2587, %v2780
    %v2858 = vadd.f32 %v2588, %v2783
    %v2859 = vadd.f32 %v2589, %v2788
    %v2860 = vadd.f32 %v2590, %v2791
    %v2861 = vadd.f32 %v2591, %v2796
    %v2862 = vadd.f32 %v2592, %v2799
    %v2863 = vadd.f32 %v2593, %v2804
    %v2864 = vadd.f32 %v2594, %v2807
    %v2865 = vadd.f32 %v2595, %v2812
    %v2866 = vadd.f32 %v2596, %v2815
    %v2867 = vadd.f32 %v2597, %v2820
    %v2868 = vadd.f32 %v2598, %v2823
    %v2869 = vadd.f32 %v2599, %v2828
    %v2870 = vadd.f32 %v2600, %v2831
    %v2871 = vadd.f32 %v2601, %v2836
    %v2872 = vadd.f32 %v2602, %v2839
    %v2873 = vadd.f32 %v2603, %v2844
    %v2874 = vld [vmem:[%s3] sm:$0x1]
    %v2876 = vlaneseq
    %v2877 = vshrl.u32 %v2876, 7
    %v2878 = vsub.s32 0, %v2877
    %v2879 = vrot.slane %v2874, %v2878
    %v2881 = vmul.f32 %v2849, %v2879
    %v2882 = vmul.f32 %v2850, %v2879
    %v2883 = vmul.f32 %v2851, %v2879
    %v2884 = vmul.f32 %v2852, %v2879
    %v2885 = vmul.f32 %v2853, %v2879
    %v2886 = vmul.f32 %v2854, %v2879
    %v2887 = vmul.f32 %v2855, %v2879
    %v2888 = vmul.f32 %v2856, %v2879
    %v2889 = vmul.f32 %v2857, %v2879
    %v2890 = vmul.f32 %v2858, %v2879
    %v2891 = vmul.f32 %v2859, %v2879
    %v2892 = vmul.f32 %v2860, %v2879
    %v2893 = vmul.f32 %v2861, %v2879
    %v2894 = vmul.f32 %v2862, %v2879
    %v2895 = vmul.f32 %v2863, %v2879
    %v2896 = vmul.f32 %v2864, %v2879
    %v2897 = vmul.f32 %v2865, %v2879
    %v2898 = vmul.f32 %v2866, %v2879
    %v2899 = vmul.f32 %v2867, %v2879
    %v2900 = vmul.f32 %v2868, %v2879
    %v2901 = vmul.f32 %v2869, %v2879
    %v2902 = vmul.f32 %v2870, %v2879
    %v2903 = vmul.f32 %v2871, %v2879
    %v2904 = vmul.f32 %v2872, %v2879
    %v2905 = vmul.f32 %v2873, %v2879
    %v2906 = vld [vmem:[%s4] sm:$0x1]
    %v2908 = vlaneseq
    %v2909 = vshrl.u32 %v2908, 7
    %v2910 = vsub.s32 0, %v2909
    %v2911 = vrot.slane %v2906, %v2910
    %v2913 = vadd.f32 %v2881, %v2911
    %v2914 = vadd.f32 %v2882, %v2911
    %v2915 = vadd.f32 %v2883, %v2911
    %v2916 = vadd.f32 %v2884, %v2911
    %v2917 = vadd.f32 %v2885, %v2911
    %v2918 = vadd.f32 %v2886, %v2911
    %v2919 = vadd.f32 %v2887, %v2911
    %v2920 = vadd.f32 %v2888, %v2911
    %v2921 = vadd.f32 %v2889, %v2911
    %v2922 = vadd.f32 %v2890, %v2911
    %v2923 = vadd.f32 %v2891, %v2911
    %v2924 = vadd.f32 %v2892, %v2911
    %v2925 = vadd.f32 %v2893, %v2911
    %v2926 = vadd.f32 %v2894, %v2911
    %v2927 = vadd.f32 %v2895, %v2911
    %v2928 = vadd.f32 %v2896, %v2911
    %v2929 = vadd.f32 %v2897, %v2911
    %v2930 = vadd.f32 %v2898, %v2911
    %v2931 = vadd.f32 %v2899, %v2911
    %v2932 = vadd.f32 %v2900, %v2911
    %v2933 = vadd.f32 %v2901, %v2911
    %v2934 = vadd.f32 %v2902, %v2911
    %v2935 = vadd.f32 %v2903, %v2911
    %v2936 = vadd.f32 %v2904, %v2911
    %v2937 = vadd.f32 %v2905, %v2911
    %v2938 = vmax.f32 %v2913, 0.0
    %v2939 = vmax.f32 %v2914, 0.0
    %v2940 = vmax.f32 %v2915, 0.0
    %v2941 = vmax.f32 %v2916, 0.0
    %v2942 = vmax.f32 %v2917, 0.0
    %v2943 = vmax.f32 %v2918, 0.0
    %v2944 = vmax.f32 %v2919, 0.0
    %v2945 = vmax.f32 %v2920, 0.0
    %v2946 = vmax.f32 %v2921, 0.0
    %v2947 = vmax.f32 %v2922, 0.0
    %v2948 = vmax.f32 %v2923, 0.0
    %v2949 = vmax.f32 %v2924, 0.0
    %v2950 = vmax.f32 %v2925, 0.0
    %v2951 = vmax.f32 %v2926, 0.0
    %v2952 = vmax.f32 %v2927, 0.0
    %v2953 = vmax.f32 %v2928, 0.0
    %v2954 = vmax.f32 %v2929, 0.0
    %v2955 = vmax.f32 %v2930, 0.0
    %v2956 = vmax.f32 %v2931, 0.0
    %v2957 = vmax.f32 %v2932, 0.0
    %v2958 = vmax.f32 %v2933, 0.0
    %v2959 = vmax.f32 %v2934, 0.0
    %v2960 = vmax.f32 %v2935, 0.0
    %v2961 = vmax.f32 %v2936, 0.0
    %v2962 = vmax.f32 %v2937, 0.0
    %2964 = vset.pattern.permute.xlu0 0
    %2965 = vperm.xlu0 %2964, %v36
    %v2966 = vpop.permute.xlu0 %2965
    %2969 = vset.pattern.permute.xlu0 0
    %2970 = vperm.xlu0 %2969, %v37
    %v2971 = vpop.permute.xlu0 %2970
    %2974 = vset.pattern.permute.xlu0 0
    %2975 = vperm.xlu0 %2974, %v38
    %v2976 = vpop.permute.xlu0 %2975
    %2979 = vset.pattern.permute.xlu0 0
    %2980 = vperm.xlu0 %2979, %v39
    %v2981 = vpop.permute.xlu0 %2980
    %2984 = vset.pattern.permute.xlu0 0
    %2985 = vperm.xlu0 %2984, %v40
    %v2986 = vpop.permute.xlu0 %2985
    %2989 = vset.pattern.permute.xlu0 0
    %2990 = vperm.xlu0 %2989, %v41
    %v2991 = vpop.permute.xlu0 %2990
    %2994 = vset.pattern.permute.xlu0 0
    %2995 = vperm.xlu0 %2994, %v42
    %v2996 = vpop.permute.xlu0 %2995
    %2999 = vset.pattern.permute.xlu0 0
    %3000 = vperm.xlu0 %2999, %v43
    %v3001 = vpop.permute.xlu0 %3000
    %3004 = vset.pattern.permute.xlu0 0
    %3005 = vperm.xlu0 %3004, %v44
    %v3006 = vpop.permute.xlu0 %3005
    %3009 = vset.pattern.permute.xlu0 0
    %3010 = vperm.xlu0 %3009, %v45
    %v3011 = vpop.permute.xlu0 %3010
    %3014 = vset.pattern.permute.xlu0 0
    %3015 = vperm.xlu0 %3014, %v46
    %v3016 = vpop.permute.xlu0 %3015
    %3019 = vset.pattern.permute.xlu0 0
    %3020 = vperm.xlu0 %3019, %v47
    %v3021 = vpop.permute.xlu0 %3020
    %3024 = vset.pattern.permute.xlu0 0
    %3025 = vperm.xlu0 %3024, %v48
    %v3026 = vpop.permute.xlu0 %3025
    %3029 = vset.pattern.permute.xlu0 0
    %3030 = vperm.xlu0 %3029, %v49
    %v3031 = vpop.permute.xlu0 %3030
    %3034 = vset.pattern.permute.xlu0 0
    %3035 = vperm.xlu0 %3034, %v50
    %v3036 = vpop.permute.xlu0 %3035
    %3039 = vset.pattern.permute.xlu0 0
    %3040 = vperm.xlu0 %3039, %v51
    %v3041 = vpop.permute.xlu0 %3040
    %3044 = vset.pattern.permute.xlu0 0
    %3045 = vperm.xlu0 %3044, %v52
    %v3046 = vpop.permute.xlu0 %3045
    %3049 = vset.pattern.permute.xlu0 0
    %3050 = vperm.xlu0 %3049, %v53
    %v3051 = vpop.permute.xlu0 %3050
    %3054 = vset.pattern.permute.xlu0 0
    %3055 = vperm.xlu0 %3054, %v54
    %v3056 = vpop.permute.xlu0 %3055
    %3059 = vset.pattern.permute.xlu0 0
    %3060 = vperm.xlu0 %3059, %v55
    %v3061 = vpop.permute.xlu0 %3060
    %3064 = vset.pattern.permute.xlu0 0
    %3065 = vperm.xlu0 %3064, %v56
    %v3066 = vpop.permute.xlu0 %3065
    %3069 = vset.pattern.permute.xlu0 0
    %3070 = vperm.xlu0 %3069, %v57
    %v3071 = vpop.permute.xlu0 %3070
    %3074 = vset.pattern.permute.xlu0 0
    %3075 = vperm.xlu0 %3074, %v58
    %v3076 = vpop.permute.xlu0 %3075
    %3079 = vset.pattern.permute.xlu0 0
    %3080 = vperm.xlu0 %3079, %v59
    %v3081 = vpop.permute.xlu0 %3080
    %3084 = vset.pattern.permute.xlu0 0
    %3085 = vperm.xlu0 %3084, %v60
    %v3086 = vpop.permute.xlu0 %3085
    %v3088 = vmul.f32 %v2938, %v2966
    %v3089 = vmul.f32 %v2939, %v2971
    %v3090 = vmul.f32 %v2940, %v2976
    %v3091 = vmul.f32 %v2941, %v2981
    %v3092 = vmul.f32 %v2942, %v2986
    %v3093 = vmul.f32 %v2943, %v2991
    %v3094 = vmul.f32 %v2944, %v2996
    %v3095 = vmul.f32 %v2945, %v3001
    %v3096 = vmul.f32 %v2946, %v3006
    %v3097 = vmul.f32 %v2947, %v3011
    %v3098 = vmul.f32 %v2948, %v3016
    %v3099 = vmul.f32 %v2949, %v3021
    %v3100 = vmul.f32 %v2950, %v3026
    %v3101 = vmul.f32 %v2951, %v3031
    %v3102 = vmul.f32 %v2952, %v3036
    %v3103 = vmul.f32 %v2953, %v3041
    %v3104 = vmul.f32 %v2954, %v3046
    %v3105 = vmul.f32 %v2955, %v3051
    %v3106 = vmul.f32 %v2956, %v3056
    %v3107 = vmul.f32 %v2957, %v3061
    %v3108 = vmul.f32 %v2958, %v3066
    %v3109 = vmul.f32 %v2959, %v3071
    %v3110 = vmul.f32 %v2960, %v3076
    %v3111 = vmul.f32 %v2961, %v3081
    %v3112 = vmul.f32 %v2962, %v3086
    %v3113 = vpack.c.bf16 %v3089, %v3088
    %v3114 = vpack.c.bf16 %v3091, %v3090
    %v3115 = vpack.c.bf16 %v3093, %v3092
    %v3116 = vpack.c.bf16 %v3095, %v3094
    %v3117 = vpack.c.bf16 %v3097, %v3096
    %v3118 = vpack.c.bf16 %v3099, %v3098
    %v3119 = vpack.c.bf16 %v3101, %v3100
    %v3120 = vpack.c.bf16 %v3103, %v3102
    %v3121 = vpack.c.bf16 %v3105, %v3104
    %v3122 = vpack.c.bf16 %v3107, %v3106
    %v3123 = vpack.c.bf16 %v3109, %v3108
    %v3124 = vpack.c.bf16 %v3111, %v3110
    %v3125 = vpack.c.bf16 %v3112, %v3112
    %v3139 = vunpack.c.l.b16 %v3113
    %v3140 = vunpack.c.h.b16 %v3113
    %v3141 = vunpack.c.l.b16 %v3114
    %v3142 = vunpack.c.h.b16 %v3114
    %v3143 = vunpack.c.l.b16 %v3115
    %v3144 = vunpack.c.h.b16 %v3115
    %v3145 = vunpack.c.l.b16 %v3116
    %v3146 = vunpack.c.h.b16 %v3116
    %v3147 = vunpack.c.l.b16 %v3117
    %v3148 = vunpack.c.h.b16 %v3117
    %v3149 = vunpack.c.l.b16 %v3118
    %v3150 = vunpack.c.h.b16 %v3118
    %v3151 = vunpack.c.l.b16 %v3119
    %v3152 = vunpack.c.h.b16 %v3119
    %v3153 = vunpack.c.l.b16 %v3120
    %v3154 = vunpack.c.h.b16 %v3120
    %v3155 = vunpack.c.l.b16 %v3121
    %v3156 = vunpack.c.h.b16 %v3121
    %v3157 = vunpack.c.l.b16 %v3122
    %v3158 = vunpack.c.h.b16 %v3122
    %v3159 = vunpack.c.l.b16 %v3123
    %v3160 = vunpack.c.h.b16 %v3123
    %v3161 = vunpack.c.l.b16 %v3124
    %v3162 = vunpack.c.h.b16 %v3124
    %v3163 = vunpack.c.l.b16 %v3125
    %v3164 = vpack.c.b16 %v3139, %v3139
    %v3165 = vpack.c.b16 %v3140, %v3140
    %v3166 = vpack.c.b16 %v3141, %v3141
    %v3167 = vpack.c.b16 %v3142, %v3142
    %v3168 = vpack.c.b16 %v3143, %v3143
    %v3169 = vpack.c.b16 %v3144, %v3144
    %v3170 = vpack.c.b16 %v3145, %v3145
    %v3171 = vpack.c.b16 %v3146, %v3146
    %v3172 = vpack.c.b16 %v3147, %v3147
    %v3173 = vpack.c.b16 %v3148, %v3148
    %v3174 = vpack.c.b16 %v3149, %v3149
    %v3175 = vpack.c.b16 %v3150, %v3150
    %v3176 = vpack.c.b16 %v3151, %v3151
    %v3177 = vpack.c.b16 %v3152, %v3152
    %v3178 = vpack.c.b16 %v3153, %v3153
    %v3179 = vpack.c.b16 %v3154, %v3154
    %v3180 = vpack.c.b16 %v3155, %v3155
    %v3181 = vpack.c.b16 %v3156, %v3156
    %v3182 = vpack.c.b16 %v3157, %v3157
    %v3183 = vpack.c.b16 %v3158, %v3158
    %v3184 = vpack.c.b16 %v3159, %v3159
    %v3185 = vpack.c.b16 %v3160, %v3160
    %v3186 = vpack.c.b16 %v3161, %v3161
    %v3187 = vpack.c.b16 %v3162, %v3162
    %v3188 = vpack.c.b16 %v3163, %v3163
    %3214 = vst.msk [vmem:[#allocation2 + $0x8] sm:$0xf] %vm31, %v3164
    %3215 = vst.msk [vmem:[#allocation2 + $0xc] sm:$0xf] %vm31, %v3165
    %3216 = vst.msk [vmem:[#allocation2 + $0x10] sm:$0xf] %vm31, %v3166
    %3217 = vst.msk [vmem:[#allocation2 + $0x14] sm:$0xf] %vm31, %v3167
    %3218 = vst.msk [vmem:[#allocation2 + $0x18] sm:$0xf] %vm31, %v3168
    %3219 = vst.msk [vmem:[#allocation2 + $0x1c] sm:$0xf] %vm31, %v3169
    %3220 = vst.msk [vmem:[#allocation2 + $0x20] sm:$0xf] %vm31, %v3170
    %3221 = vst.msk [vmem:[#allocation2 + $0x24] sm:$0xf] %vm31, %v3171
    %3222 = vst.msk [vmem:[#allocation2 + $0x28] sm:$0xf] %vm31, %v3172
    %3223 = vst.msk [vmem:[#allocation2 + $0x2c] sm:$0xf] %vm31, %v3173
    %3224 = vst.msk [vmem:[#allocation2 + $0x30] sm:$0xf] %vm31, %v3174
    %3225 = vst.msk [vmem:[#allocation2 + $0x34] sm:$0xf] %vm31, %v3175
    %3226 = vst.msk [vmem:[#allocation2 + $0x38] sm:$0xf] %vm31, %v3176
    %3227 = vst.msk [vmem:[#allocation2 + $0x3c] sm:$0xf] %vm31, %v3177
    %3228 = vst.msk [vmem:[#allocation2 + $0x40] sm:$0xf] %vm31, %v3178
    %3229 = vst.msk [vmem:[#allocation2 + $0x44] sm:$0xf] %vm31, %v3179
    %3230 = vst.msk [vmem:[#allocation2 + $0x48] sm:$0xf] %vm31, %v3180
    %3231 = vst.msk [vmem:[#allocation2 + $0x4c] sm:$0xf] %vm31, %v3181
    %3232 = vst.msk [vmem:[#allocation2 + $0x50] sm:$0xf] %vm31, %v3182
    %3233 = vst.msk [vmem:[#allocation2 + $0x54] sm:$0xf] %vm31, %v3183
    %3234 = vst.msk [vmem:[#allocation2 + $0x58] sm:$0xf] %vm31, %v3184
    %3235 = vst.msk [vmem:[#allocation2 + $0x5c] sm:$0xf] %vm31, %v3185
    %3236 = vst.msk [vmem:[#allocation2 + $0x60] sm:$0xf] %vm31, %v3186
    %3237 = vst.msk [vmem:[#allocation2 + $0x64] sm:$0xf] %vm31, %v3187
    %3238 = vst.msk [vmem:[#allocation2 + $0x68] sm:$0xf] %vm31, %v3188
    %v3239 = vld [vmem:[#allocation2] sm:$0xc]
    %v3240 = vld [vmem:[#allocation2 + $0x4] sm:$0xf]
    %v3241 = vld [vmem:[#allocation2 + $0x8] sm:$0xf]
    %v3242 = vld [vmem:[#allocation2 + $0xc] sm:$0xf]
    %v3243 = vld [vmem:[#allocation2 + $0x10] sm:$0xf]
    %v3244 = vld [vmem:[#allocation2 + $0x14] sm:$0xf]
    %v3245 = vld [vmem:[#allocation2 + $0x18] sm:$0xf]
    %v3246 = vld [vmem:[#allocation2 + $0x1c] sm:$0xf]
    %v3247 = vld [vmem:[#allocation2 + $0x20] sm:$0xf]
    %v3248 = vld [vmem:[#allocation2 + $0x24] sm:$0xf]
    %v3249 = vld [vmem:[#allocation2 + $0x28] sm:$0xf]
    %v3250 = vld [vmem:[#allocation2 + $0x2c] sm:$0xf]
    %v3251 = vld [vmem:[#allocation2 + $0x30] sm:$0xf]
    %v3252 = vld [vmem:[#allocation2 + $0x34] sm:$0xf]
    %v3253 = vld [vmem:[#allocation2 + $0x38] sm:$0xf]
    %v3254 = vld [vmem:[#allocation2 + $0x3c] sm:$0xf]
    %v3255 = vld [vmem:[#allocation2 + $0x40] sm:$0xf]
    %v3256 = vld [vmem:[#allocation2 + $0x44] sm:$0xf]
    %v3257 = vld [vmem:[#allocation2 + $0x48] sm:$0xf]
    %v3258 = vld [vmem:[#allocation2 + $0x4c] sm:$0xf]
    %v3259 = vld [vmem:[#allocation2 + $0x50] sm:$0xf]
    %v3260 = vld [vmem:[#allocation2 + $0x54] sm:$0xf]
    %v3261 = vld [vmem:[#allocation2 + $0x58] sm:$0xf]
    %v3262 = vld [vmem:[#allocation2 + $0x5c] sm:$0xf]
    %v3263 = vld [vmem:[#allocation2 + $0x60] sm:$0xf]
    %v3264 = vld [vmem:[#allocation2 + $0x64] sm:$0x7]
    %v3265 = vld [vmem:[%s5] sm:$0xf]
    %v3266 = vld [vmem:[#allocation2] sm:$0x8]
    %v3267 = vld [vmem:[%s5 + $0x4] sm:$0xf]
    %v3294 = vunpack.c.l.b16 %v3266
    %v3295 = vunpack.c.l.b16 %v3240
    %v3296 = vunpack.c.l.b16 %v3241
    %v3297 = vunpack.c.l.b16 %v3242
    %v3298 = vunpack.c.l.b16 %v3243
    %v3299 = vunpack.c.l.b16 %v3244
    %v3300 = vunpack.c.l.b16 %v3245
    %v3301 = vunpack.c.l.b16 %v3246
    %v3302 = vunpack.c.l.b16 %v3247
    %v3303 = vunpack.c.l.b16 %v3248
    %v3304 = vunpack.c.l.b16 %v3249
    %v3305 = vunpack.c.l.b16 %v3250
    %v3306 = vunpack.c.l.b16 %v3251
    %v3307 = vunpack.c.l.b16 %v3252
    %v3308 = vunpack.c.l.b16 %v3253
    %v3309 = vunpack.c.l.b16 %v3254
    %v3310 = vunpack.c.l.b16 %v3255
    %v3311 = vunpack.c.l.b16 %v3256
    %v3312 = vunpack.c.l.b16 %v3257
    %v3313 = vunpack.c.l.b16 %v3258
    %v3314 = vunpack.c.l.b16 %v3259
    %v3315 = vunpack.c.l.b16 %v3260
    %v3316 = vunpack.c.l.b16 %v3261
    %v3317 = vunpack.c.l.b16 %v3262
    %v3318 = vunpack.c.l.b16 %v3263
    %v3319 = vunpack.c.l.b16 %v3264
    %v3320 = vpack.c.b16 %v3295, %v3294
    %v3321 = vpack.c.b16 %v3297, %v3296
    %v3322 = vpack.c.b16 %v3299, %v3298
    %v3323 = vpack.c.b16 %v3301, %v3300
    %v3324 = vpack.c.b16 %v3303, %v3302
    %v3325 = vpack.c.b16 %v3305, %v3304
    %v3326 = vpack.c.b16 %v3307, %v3306
    %v3327 = vpack.c.b16 %v3309, %v3308
    %v3328 = vpack.c.b16 %v3311, %v3310
    %v3329 = vpack.c.b16 %v3313, %v3312
    %v3330 = vpack.c.b16 %v3315, %v3314
    %v3331 = vpack.c.b16 %v3317, %v3316
    %v3332 = vpack.c.b16 %v3319, %v3318
    %v3333 = vrot.slane %v3320, 3
    %v3334 = vrot.slane %v3321, 3
    %v3335 = vsel %vm155, %v3333, %v3334
    %v3336 = vrot.slane %v3322, 3
    %v3337 = vsel %vm155, %v3334, %v3336
    %v3338 = vrot.slane %v3323, 3
    %v3339 = vsel %vm155, %v3336, %v3338
    %v3340 = vrot.slane %v3324, 3
    %v3341 = vsel %vm155, %v3338, %v3340
    %v3342 = vrot.slane %v3325, 3
    %v3343 = vsel %vm155, %v3340, %v3342
    %v3344 = vrot.slane %v3326, 3
    %v3345 = vsel %vm155, %v3342, %v3344
    %v3346 = vrot.slane %v3327, 3
    %v3347 = vsel %vm155, %v3344, %v3346
    %v3348 = vrot.slane %v3328, 3
    %v3349 = vsel %vm155, %v3346, %v3348
    %v3350 = vrot.slane %v3329, 3
    %v3351 = vsel %vm155, %v3348, %v3350
    %v3352 = vrot.slane %v3330, 3
    %v3353 = vsel %vm155, %v3350, %v3352
    %v3354 = vrot.slane %v3331, 3
    %v3355 = vsel %vm155, %v3352, %v3354
    %v3356 = vrot.slane %v3332, 3
    %v3357 = vsel %vm155, %v3354, %v3356
    %vm3358 = vcmask 64512
    %v3360 = vsel %vm3358, %v3335, 0
    %v3363 = vsel %vm3358, %v3337, 0
    %v3366 = vsel %vm3358, %v3339, 0
    %v3369 = vsel %vm3358, %v3341, 0
    %v3372 = vsel %vm3358, %v3343, 0
    %v3375 = vsel %vm3358, %v3345, 0
    %v3378 = vsel %vm3358, %v3347, 0
    %v3381 = vsel %vm3358, %v3349, 0
    %v3384 = vsel %vm3358, %v3351, 0
    %v3387 = vsel %vm3358, %v3353, 0
    %v3390 = vsel %vm3358, %v3355, 0
    %v3393 = vsel %vm3358, %v3357, 0
    %v3396 = vsel %vm3358, %v3356, 0
    %vm3398 = vcmask 1043456
    %v3400 = vsel %vm3398, %v3267, 0
    %3402 = vmatprep.subr.bf16.mxu0 0
    %3403 = vmatpush1.bf16.msra.mxu0 0
    %3404 = vmatprep.subr.bf16.mxu0 0
    %3405 = vmatpush1.bf16.msra.mxu0 0
    %3406 = vmatprep.subr.bf16.mxu0 0
    %3407 = vmatpush1.bf16.msra.mxu0 0
    %3408 = vmatprep.subr.bf16.mxu0 0
    %3409 = vmatpush1.bf16.msra.mxu0 0
    %3410 = vmatprep.subr.bf16.mxu0 0
    %3411 = vmatpush1.bf16.msra.mxu0 0
    %3412 = vmatprep.subr.bf16.mxu0 0
    %3413 = vmatpush1.bf16.msra.mxu0 0
    %3414 = vmatprep.subr.bf16.mxu0 0
    %3415 = vmatpush1.bf16.msra.mxu0 0
    %3416 = vmatprep.subr.bf16.mxu0 0
    %3417 = vmatpush1.bf16.msra.mxu0 %v3400
    %3418 = vmatprep.subr.bf16.mxu0 0
    %3419 = vmatpush2.bf16.msra.mxu0 0
    %3420 = vmatprep.subr.bf16.mxu0 0
    %3421 = vmatpush2.bf16.msra.mxu0 0
    %3422 = vmatprep.subr.bf16.mxu0 0
    %3423 = vmatpush2.bf16.msra.mxu0 0
    %3424 = vmatprep.subr.bf16.mxu0 0
    %3425 = vmatpush2.bf16.msra.mxu0 0
    %3426 = vmatprep.subr.bf16.mxu0 0
    %3427 = vmatpush2.bf16.msra.mxu0 0
    %3428 = vmatprep.subr.bf16.mxu0 0
    %3429 = vmatpush2.bf16.msra.mxu0 0
    %3430 = vmatprep.subr.bf16.mxu0 0
    %3431 = vmatpush2.bf16.msra.mxu0 0
    %3432 = vmatprep.subr.bf16.mxu0 0
    %3433 = vmatpush2.bf16.msra.mxu0 0
    %3434 = vmatprep.mubr.bf16.mxu0 0
    %3435 = vmatmul.mubr.bf16.gmra.mxu0 %v3360
    %v3436 = vpop.f32.mrf.mxu0
    %v3437 = vadd.f32 0.0, %v3436
    %v3438 = vpop.f32.mrf.mxu0
    %v3439 = vpop.f32.mrf.mxu0
    %v3440 = vadd.f32 0.0, %v3439
    %v3441 = vpop.f32.mrf.mxu0
    %3442 = vmatprep.mubr.bf16.mxu0 0
    %3443 = vmatmul.mubr.bf16.gmra.mxu0 %v3363
    %v3444 = vpop.f32.mrf.mxu0
    %v3445 = vadd.f32 0.0, %v3444
    %v3446 = vpop.f32.mrf.mxu0
    %v3447 = vpop.f32.mrf.mxu0
    %v3448 = vadd.f32 0.0, %v3447
    %v3449 = vpop.f32.mrf.mxu0
    %3450 = vmatprep.mubr.bf16.mxu0 0
    %3451 = vmatmul.mubr.bf16.gmra.mxu0 %v3366
    %v3452 = vpop.f32.mrf.mxu0
    %v3453 = vadd.f32 0.0, %v3452
    %v3454 = vpop.f32.mrf.mxu0
    %v3455 = vpop.f32.mrf.mxu0
    %v3456 = vadd.f32 0.0, %v3455
    %v3457 = vpop.f32.mrf.mxu0
    %3458 = vmatprep.mubr.bf16.mxu0 0
    %3459 = vmatmul.mubr.bf16.gmra.mxu0 %v3369
    %v3460 = vpop.f32.mrf.mxu0
    %v3461 = vadd.f32 0.0, %v3460
    %v3462 = vpop.f32.mrf.mxu0
    %v3463 = vpop.f32.mrf.mxu0
    %v3464 = vadd.f32 0.0, %v3463
    %v3465 = vpop.f32.mrf.mxu0
    %3466 = vmatprep.mubr.bf16.mxu0 0
    %3467 = vmatmul.mubr.bf16.gmra.mxu0 %v3372
    %v3468 = vpop.f32.mrf.mxu0
    %v3469 = vadd.f32 0.0, %v3468
    %v3470 = vpop.f32.mrf.mxu0
    %v3471 = vpop.f32.mrf.mxu0
    %v3472 = vadd.f32 0.0, %v3471
    %v3473 = vpop.f32.mrf.mxu0
    %3474 = vmatprep.mubr.bf16.mxu0 0
    %3475 = vmatmul.mubr.bf16.gmra.mxu0 %v3375
    %v3476 = vpop.f32.mrf.mxu0
    %v3477 = vadd.f32 0.0, %v3476
    %v3478 = vpop.f32.mrf.mxu0
    %v3479 = vpop.f32.mrf.mxu0
    %v3480 = vadd.f32 0.0, %v3479
    %v3481 = vpop.f32.mrf.mxu0
    %3482 = vmatprep.mubr.bf16.mxu0 0
    %3483 = vmatmul.mubr.bf16.gmra.mxu0 %v3378
    %v3484 = vpop.f32.mrf.mxu0
    %v3485 = vadd.f32 0.0, %v3484
    %v3486 = vpop.f32.mrf.mxu0
    %v3487 = vpop.f32.mrf.mxu0
    %v3488 = vadd.f32 0.0, %v3487
    %v3489 = vpop.f32.mrf.mxu0
    %3490 = vmatprep.mubr.bf16.mxu0 0
    %3491 = vmatmul.mubr.bf16.gmra.mxu0 %v3381
    %v3492 = vpop.f32.mrf.mxu0
    %v3493 = vadd.f32 0.0, %v3492
    %v3494 = vpop.f32.mrf.mxu0
    %v3495 = vpop.f32.mrf.mxu0
    %v3496 = vadd.f32 0.0, %v3495
    %v3497 = vpop.f32.mrf.mxu0
    %3498 = vmatprep.mubr.bf16.mxu0 0
    %3499 = vmatmul.mubr.bf16.gmra.mxu0 %v3384
    %v3500 = vpop.f32.mrf.mxu0
    %v3501 = vadd.f32 0.0, %v3500
    %v3502 = vpop.f32.mrf.mxu0
    %v3503 = vpop.f32.mrf.mxu0
    %v3504 = vadd.f32 0.0, %v3503
    %v3505 = vpop.f32.mrf.mxu0
    %3506 = vmatprep.mubr.bf16.mxu0 0
    %3507 = vmatmul.mubr.bf16.gmra.mxu0 %v3387
    %v3508 = vpop.f32.mrf.mxu0
    %v3509 = vadd.f32 0.0, %v3508
    %v3510 = vpop.f32.mrf.mxu0
    %v3511 = vpop.f32.mrf.mxu0
    %v3512 = vadd.f32 0.0, %v3511
    %v3513 = vpop.f32.mrf.mxu0
    %3514 = vmatprep.mubr.bf16.mxu0 0
    %3515 = vmatmul.mubr.bf16.gmra.mxu0 %v3390
    %v3516 = vpop.f32.mrf.mxu0
    %v3517 = vadd.f32 0.0, %v3516
    %v3518 = vpop.f32.mrf.mxu0
    %v3519 = vpop.f32.mrf.mxu0
    %v3520 = vadd.f32 0.0, %v3519
    %v3521 = vpop.f32.mrf.mxu0
    %3522 = vmatprep.mubr.bf16.mxu0 0
    %3523 = vmatmul.mubr.bf16.gmra.mxu0 %v3393
    %v3524 = vpop.f32.mrf.mxu0
    %v3525 = vadd.f32 0.0, %v3524
    %v3526 = vpop.f32.mrf.mxu0
    %v3527 = vpop.f32.mrf.mxu0
    %v3528 = vadd.f32 0.0, %v3527
    %v3529 = vpop.f32.mrf.mxu0
    %3530 = vmatprep.mubr.bf16.mxu0 0
    %3531 = vmatmul.mubr.bf16.gmra.mxu0 %v3396
    %v3532 = vpop.f32.mrf.mxu0
    %v3533 = vadd.f32 0.0, %v3532
    %v3534 = vpop.f32.mrf.mxu0
    %v3535 = vpop.f32.mrf.mxu0
    %v3536 = vpop.f32.mrf.mxu0
    %3537 = vdwg.mxu0
    %v3539 = vunpack.c.l.b16 %v3239
    %v3540 = vpack.c.b16 %v3295, %v3539
    %v3542 = vshrl.u32 %v3540, 16
    %v3544 = vrot.slane %v3542, 2
    %v3545 = vshll.u32 %v3540, 16
    %v3547 = vrot.slane %v3545, 3
    %v3548 = vor.u32 %v3544, %v3547
    %v3550 = vshrl.u32 %v3321, 16
    %v3552 = vrot.slane %v3550, 2
    %v3553 = vshll.u32 %v3321, 16
    %v3555 = vrot.slane %v3553, 3
    %v3556 = vor.u32 %v3552, %v3555
    %v3557 = vsel %vm368, %v3548, %v3556
    %v3559 = vshrl.u32 %v3322, 16
    %v3561 = vrot.slane %v3559, 2
    %v3562 = vshll.u32 %v3322, 16
    %v3564 = vrot.slane %v3562, 3
    %v3565 = vor.u32 %v3561, %v3564
    %v3566 = vsel %vm368, %v3556, %v3565
    %v3568 = vshrl.u32 %v3323, 16
    %v3570 = vrot.slane %v3568, 2
    %v3571 = vshll.u32 %v3323, 16
    %v3573 = vrot.slane %v3571, 3
    %v3574 = vor.u32 %v3570, %v3573
    %v3575 = vsel %vm368, %v3565, %v3574
    %v3577 = vshrl.u32 %v3324, 16
    %v3579 = vrot.slane %v3577, 2
    %v3580 = vshll.u32 %v3324, 16
    %v3582 = vrot.slane %v3580, 3
    %v3583 = vor.u32 %v3579, %v3582
    %v3584 = vsel %vm368, %v3574, %v3583
    %v3586 = vshrl.u32 %v3325, 16
    %v3588 = vrot.slane %v3586, 2
    %v3589 = vshll.u32 %v3325, 16
    %v3591 = vrot.slane %v3589, 3
    %v3592 = vor.u32 %v3588, %v3591
    %v3593 = vsel %vm368, %v3583, %v3592
    %v3595 = vshrl.u32 %v3326, 16
    %v3597 = vrot.slane %v3595, 2
    %v3598 = vshll.u32 %v3326, 16
    %v3600 = vrot.slane %v3598, 3
    %v3601 = vor.u32 %v3597, %v3600
    %v3602 = vsel %vm368, %v3592, %v3601
    %v3604 = vshrl.u32 %v3327, 16
    %v3606 = vrot.slane %v3604, 2
    %v3607 = vshll.u32 %v3327, 16
    %v3609 = vrot.slane %v3607, 3
    %v3610 = vor.u32 %v3606, %v3609
    %v3611 = vsel %vm368, %v3601, %v3610
    %v3613 = vshrl.u32 %v3328, 16
    %v3615 = vrot.slane %v3613, 2
    %v3616 = vshll.u32 %v3328, 16
    %v3618 = vrot.slane %v3616, 3
    %v3619 = vor.u32 %v3615, %v3618
    %v3620 = vsel %vm368, %v3610, %v3619
    %v3622 = vshrl.u32 %v3329, 16
    %v3624 = vrot.slane %v3622, 2
    %v3625 = vshll.u32 %v3329, 16
    %v3627 = vrot.slane %v3625, 3
    %v3628 = vor.u32 %v3624, %v3627
    %v3629 = vsel %vm368, %v3619, %v3628
    %v3631 = vshrl.u32 %v3330, 16
    %v3633 = vrot.slane %v3631, 2
    %v3634 = vshll.u32 %v3330, 16
    %v3636 = vrot.slane %v3634, 3
    %v3637 = vor.u32 %v3633, %v3636
    %v3638 = vsel %vm368, %v3628, %v3637
    %v3640 = vshrl.u32 %v3331, 16
    %v3642 = vrot.slane %v3640, 2
    %v3643 = vshll.u32 %v3331, 16
    %v3645 = vrot.slane %v3643, 3
    %v3646 = vor.u32 %v3642, %v3645
    %v3647 = vsel %vm368, %v3637, %v3646
    %v3649 = vshrl.u32 %v3332, 16
    %v3651 = vrot.slane %v3649, 2
    %v3652 = vshll.u32 %v3332, 16
    %v3654 = vrot.slane %v3652, 3
    %v3655 = vor.u32 %v3651, %v3654
    %v3656 = vsel %vm368, %v3646, %v3655
    %v3658 = vsel %vm3358, %v3557, 0
    %v3661 = vsel %vm3358, %v3566, 0
    %v3664 = vsel %vm3358, %v3575, 0
    %v3667 = vsel %vm3358, %v3584, 0
    %v3670 = vsel %vm3358, %v3593, 0
    %v3673 = vsel %vm3358, %v3602, 0
    %v3676 = vsel %vm3358, %v3611, 0
    %v3679 = vsel %vm3358, %v3620, 0
    %v3682 = vsel %vm3358, %v3629, 0
    %v3685 = vsel %vm3358, %v3638, 0
    %v3688 = vsel %vm3358, %v3647, 0
    %v3691 = vsel %vm3358, %v3656, 0
    %v3694 = vsel %vm3358, %v3655, 0
    %v3697 = vsel %vm3398, %v3265, 0
    %3699 = vmatprep.subr.bf16.mxu0 0
    %3700 = vmatpush1.bf16.msra.mxu0 0
    %3701 = vmatprep.subr.bf16.mxu0 0
    %3702 = vmatpush1.bf16.msra.mxu0 0
    %3703 = vmatprep.subr.bf16.mxu0 0
    %3704 = vmatpush1.bf16.msra.mxu0 0
    %3705 = vmatprep.subr.bf16.mxu0 0
    %3706 = vmatpush1.bf16.msra.mxu0 0
    %3707 = vmatprep.subr.bf16.mxu0 0
    %3708 = vmatpush1.bf16.msra.mxu0 0
    %3709 = vmatprep.subr.bf16.mxu0 0
    %3710 = vmatpush1.bf16.msra.mxu0 0
    %3711 = vmatprep.subr.bf16.mxu0 0
    %3712 = vmatpush1.bf16.msra.mxu0 0
    %3713 = vmatprep.subr.bf16.mxu0 0
    %3714 = vmatpush1.bf16.msra.mxu0 %v3697
    %3715 = vmatprep.subr.bf16.mxu0 0
    %3716 = vmatpush2.bf16.msra.mxu0 0
    %3717 = vmatprep.subr.bf16.mxu0 0
    %3718 = vmatpush2.bf16.msra.mxu0 0
    %3719 = vmatprep.subr.bf16.mxu0 0
    %3720 = vmatpush2.bf16.msra.mxu0 0
    %3721 = vmatprep.subr.bf16.mxu0 0
    %3722 = vmatpush2.bf16.msra.mxu0 0
    %3723 = vmatprep.subr.bf16.mxu0 0
    %3724 = vmatpush2.bf16.msra.mxu0 0
    %3725 = vmatprep.subr.bf16.mxu0 0
    %3726 = vmatpush2.bf16.msra.mxu0 0
    %3727 = vmatprep.subr.bf16.mxu0 0
    %3728 = vmatpush2.bf16.msra.mxu0 0
    %3729 = vmatprep.subr.bf16.mxu0 0
    %3730 = vmatpush2.bf16.msra.mxu0 0
    %3731 = vmatprep.mubr.bf16.mxu0 0
    %3732 = vmatmul.mubr.bf16.gmra.mxu0 %v3658
    %v3733 = vpop.f32.mrf.mxu0
    %v3734 = vadd.f32 %v3437, %v3733
    %v3735 = vpop.f32.mrf.mxu0
    %v3736 = vpop.f32.mrf.mxu0
    %v3737 = vadd.f32 %v3440, %v3736
    %v3738 = vpop.f32.mrf.mxu0
    %3739 = vmatprep.mubr.bf16.mxu0 0
    %3740 = vmatmul.mubr.bf16.gmra.mxu0 %v3661
    %v3741 = vpop.f32.mrf.mxu0
    %v3742 = vadd.f32 %v3445, %v3741
    %v3743 = vpop.f32.mrf.mxu0
    %v3744 = vpop.f32.mrf.mxu0
    %v3745 = vadd.f32 %v3448, %v3744
    %v3746 = vpop.f32.mrf.mxu0
    %3747 = vmatprep.mubr.bf16.mxu0 0
    %3748 = vmatmul.mubr.bf16.gmra.mxu0 %v3664
    %v3749 = vpop.f32.mrf.mxu0
    %v3750 = vadd.f32 %v3453, %v3749
    %v3751 = vpop.f32.mrf.mxu0
    %v3752 = vpop.f32.mrf.mxu0
    %v3753 = vadd.f32 %v3456, %v3752
    %v3754 = vpop.f32.mrf.mxu0
    %3755 = vmatprep.mubr.bf16.mxu0 0
    %3756 = vmatmul.mubr.bf16.gmra.mxu0 %v3667
    %v3757 = vpop.f32.mrf.mxu0
    %v3758 = vadd.f32 %v3461, %v3757
    %v3759 = vpop.f32.mrf.mxu0
    %v3760 = vpop.f32.mrf.mxu0
    %v3761 = vadd.f32 %v3464, %v3760
    %v3762 = vpop.f32.mrf.mxu0
    %3763 = vmatprep.mubr.bf16.mxu0 0
    %3764 = vmatmul.mubr.bf16.gmra.mxu0 %v3670
    %v3765 = vpop.f32.mrf.mxu0
    %v3766 = vadd.f32 %v3469, %v3765
    %v3767 = vpop.f32.mrf.mxu0
    %v3768 = vpop.f32.mrf.mxu0
    %v3769 = vadd.f32 %v3472, %v3768
    %v3770 = vpop.f32.mrf.mxu0
    %3771 = vmatprep.mubr.bf16.mxu0 0
    %3772 = vmatmul.mubr.bf16.gmra.mxu0 %v3673
    %v3773 = vpop.f32.mrf.mxu0
    %v3774 = vadd.f32 %v3477, %v3773
    %v3775 = vpop.f32.mrf.mxu0
    %v3776 = vpop.f32.mrf.mxu0
    %v3777 = vadd.f32 %v3480, %v3776
    %v3778 = vpop.f32.mrf.mxu0
    %3779 = vmatprep.mubr.bf16.mxu0 0
    %3780 = vmatmul.mubr.bf16.gmra.mxu0 %v3676
    %v3781 = vpop.f32.mrf.mxu0
    %v3782 = vadd.f32 %v3485, %v3781
    %v3783 = vpop.f32.mrf.mxu0
    %v3784 = vpop.f32.mrf.mxu0
    %v3785 = vadd.f32 %v3488, %v3784
    %v3786 = vpop.f32.mrf.mxu0
    %3787 = vmatprep.mubr.bf16.mxu0 0
    %3788 = vmatmul.mubr.bf16.gmra.mxu0 %v3679
    %v3789 = vpop.f32.mrf.mxu0
    %v3790 = vadd.f32 %v3493, %v3789
    %v3791 = vpop.f32.mrf.mxu0
    %v3792 = vpop.f32.mrf.mxu0
    %v3793 = vadd.f32 %v3496, %v3792
    %v3794 = vpop.f32.mrf.mxu0
    %3795 = vmatprep.mubr.bf16.mxu0 0
    %3796 = vmatmul.mubr.bf16.gmra.mxu0 %v3682
    %v3797 = vpop.f32.mrf.mxu0
    %v3798 = vadd.f32 %v3501, %v3797
    %v3799 = vpop.f32.mrf.mxu0
    %v3800 = vpop.f32.mrf.mxu0
    %v3801 = vadd.f32 %v3504, %v3800
    %v3802 = vpop.f32.mrf.mxu0
    %3803 = vmatprep.mubr.bf16.mxu0 0
    %3804 = vmatmul.mubr.bf16.gmra.mxu0 %v3685
    %v3805 = vpop.f32.mrf.mxu0
    %v3806 = vadd.f32 %v3509, %v3805
    %v3807 = vpop.f32.mrf.mxu0
    %v3808 = vpop.f32.mrf.mxu0
    %v3809 = vadd.f32 %v3512, %v3808
    %v3810 = vpop.f32.mrf.mxu0
    %3811 = vmatprep.mubr.bf16.mxu0 0
    %3812 = vmatmul.mubr.bf16.gmra.mxu0 %v3688
    %v3813 = vpop.f32.mrf.mxu0
    %v3814 = vadd.f32 %v3517, %v3813
    %v3815 = vpop.f32.mrf.mxu0
    %v3816 = vpop.f32.mrf.mxu0
    %v3817 = vadd.f32 %v3520, %v3816
    %v3818 = vpop.f32.mrf.mxu0
    %3819 = vmatprep.mubr.bf16.mxu0 0
    %3820 = vmatmul.mubr.bf16.gmra.mxu0 %v3691
    %v3821 = vpop.f32.mrf.mxu0
    %v3822 = vadd.f32 %v3525, %v3821
    %v3823 = vpop.f32.mrf.mxu0
    %v3824 = vpop.f32.mrf.mxu0
    %v3825 = vadd.f32 %v3528, %v3824
    %v3826 = vpop.f32.mrf.mxu0
    %3827 = vmatprep.mubr.bf16.mxu0 0
    %3828 = vmatmul.mubr.bf16.gmra.mxu0 %v3694
    %v3829 = vpop.f32.mrf.mxu0
    %v3830 = vadd.f32 %v3533, %v3829
    %v3831 = vpop.f32.mrf.mxu0
    %v3832 = vpop.f32.mrf.mxu0
    %v3833 = vpop.f32.mrf.mxu0
    %3834 = vdwg.mxu0
    %v3835 = vld [vmem:[#allocation2 + $0x64] sm:$0xf]
    %v3836 = vld [vmem:[%s5 + $0x8] sm:$0xf]
    %v3838 = vunpack.c.l.b16 %v3835
    %v3839 = vpack.c.b16 %v3838, %v3318
    %v3841 = vshrl.u32 %v3320, 16
    %v3843 = vrot.slane %v3841, 3
    %v3844 = vshll.u32 %v3320, 16
    %v3846 = vrot.slane %v3844, 4
    %v3847 = vor.u32 %v3843, %v3846
    %v3848 = vrot.slane %v3550, 3
    %v3849 = vrot.slane %v3553, 4
    %v3850 = vor.u32 %v3848, %v3849
    %v3851 = vsel %vm668, %v3847, %v3850
    %v3852 = vrot.slane %v3559, 3
    %v3853 = vrot.slane %v3562, 4
    %v3854 = vor.u32 %v3852, %v3853
    %v3855 = vsel %vm668, %v3850, %v3854
    %v3856 = vrot.slane %v3568, 3
    %v3857 = vrot.slane %v3571, 4
    %v3858 = vor.u32 %v3856, %v3857
    %v3859 = vsel %vm668, %v3854, %v3858
    %v3860 = vrot.slane %v3577, 3
    %v3861 = vrot.slane %v3580, 4
    %v3862 = vor.u32 %v3860, %v3861
    %v3863 = vsel %vm668, %v3858, %v3862
    %v3864 = vrot.slane %v3586, 3
    %v3865 = vrot.slane %v3589, 4
    %v3866 = vor.u32 %v3864, %v3865
    %v3867 = vsel %vm668, %v3862, %v3866
    %v3868 = vrot.slane %v3595, 3
    %v3869 = vrot.slane %v3598, 4
    %v3870 = vor.u32 %v3868, %v3869
    %v3871 = vsel %vm668, %v3866, %v3870
    %v3872 = vrot.slane %v3604, 3
    %v3873 = vrot.slane %v3607, 4
    %v3874 = vor.u32 %v3872, %v3873
    %v3875 = vsel %vm668, %v3870, %v3874
    %v3876 = vrot.slane %v3613, 3
    %v3877 = vrot.slane %v3616, 4
    %v3878 = vor.u32 %v3876, %v3877
    %v3879 = vsel %vm668, %v3874, %v3878
    %v3880 = vrot.slane %v3622, 3
    %v3881 = vrot.slane %v3625, 4
    %v3882 = vor.u32 %v3880, %v3881
    %v3883 = vsel %vm668, %v3878, %v3882
    %v3884 = vrot.slane %v3631, 3
    %v3885 = vrot.slane %v3634, 4
    %v3886 = vor.u32 %v3884, %v3885
    %v3887 = vsel %vm668, %v3882, %v3886
    %v3888 = vrot.slane %v3640, 3
    %v3889 = vrot.slane %v3643, 4
    %v3890 = vor.u32 %v3888, %v3889
    %v3891 = vsel %vm668, %v3886, %v3890
    %v3893 = vshrl.u32 %v3839, 16
    %v3895 = vrot.slane %v3893, 3
    %v3896 = vshll.u32 %v3839, 16
    %v3898 = vrot.slane %v3896, 4
    %v3899 = vor.u32 %v3895, %v3898
    %v3900 = vsel %vm668, %v3890, %v3899
    %v3902 = vsel %vm3358, %v3851, 0
    %v3905 = vsel %vm3358, %v3855, 0
    %v3908 = vsel %vm3358, %v3859, 0
    %v3911 = vsel %vm3358, %v3863, 0
    %v3914 = vsel %vm3358, %v3867, 0
    %v3917 = vsel %vm3358, %v3871, 0
    %v3920 = vsel %vm3358, %v3875, 0
    %v3923 = vsel %vm3358, %v3879, 0
    %v3926 = vsel %vm3358, %v3883, 0
    %v3929 = vsel %vm3358, %v3887, 0
    %v3932 = vsel %vm3358, %v3891, 0
    %v3935 = vsel %vm3358, %v3900, 0
    %v3938 = vsel %vm3358, %v3899, 0
    %v3941 = vsel %vm3398, %v3836, 0
    %3943 = vmatprep.subr.bf16.mxu0 0
    %3944 = vmatpush1.bf16.msra.mxu0 0
    %3945 = vmatprep.subr.bf16.mxu0 0
    %3946 = vmatpush1.bf16.msra.mxu0 0
    %3947 = vmatprep.subr.bf16.mxu0 0
    %3948 = vmatpush1.bf16.msra.mxu0 0
    %3949 = vmatprep.subr.bf16.mxu0 0
    %3950 = vmatpush1.bf16.msra.mxu0 0
    %3951 = vmatprep.subr.bf16.mxu0 0
    %3952 = vmatpush1.bf16.msra.mxu0 0
    %3953 = vmatprep.subr.bf16.mxu0 0
    %3954 = vmatpush1.bf16.msra.mxu0 0
    %3955 = vmatprep.subr.bf16.mxu0 0
    %3956 = vmatpush1.bf16.msra.mxu0 0
    %3957 = vmatprep.subr.bf16.mxu0 0
    %3958 = vmatpush1.bf16.msra.mxu0 %v3941
    %3959 = vmatprep.subr.bf16.mxu0 0
    %3960 = vmatpush2.bf16.msra.mxu0 0
    %3961 = vmatprep.subr.bf16.mxu0 0
    %3962 = vmatpush2.bf16.msra.mxu0 0
    %3963 = vmatprep.subr.bf16.mxu0 0
    %3964 = vmatpush2.bf16.msra.mxu0 0
    %3965 = vmatprep.subr.bf16.mxu0 0
    %3966 = vmatpush2.bf16.msra.mxu0 0
    %3967 = vmatprep.subr.bf16.mxu0 0
    %3968 = vmatpush2.bf16.msra.mxu0 0
    %3969 = vmatprep.subr.bf16.mxu0 0
    %3970 = vmatpush2.bf16.msra.mxu0 0
    %3971 = vmatprep.subr.bf16.mxu0 0
    %3972 = vmatpush2.bf16.msra.mxu0 0
    %3973 = vmatprep.subr.bf16.mxu0 0
    %3974 = vmatpush2.bf16.msra.mxu0 0
    %3975 = vmatprep.mubr.bf16.mxu0 0
    %3976 = vmatmul.mubr.bf16.gmra.mxu0 %v3902
    %v3977 = vpop.f32.mrf.mxu0
    %v3978 = vadd.f32 0.0, %v3977
    %v3979 = vpop.f32.mrf.mxu0
    %v3980 = vpop.f32.mrf.mxu0
    %v3981 = vadd.f32 0.0, %v3980
    %v3982 = vpop.f32.mrf.mxu0
    %3983 = vmatprep.mubr.bf16.mxu0 0
    %3984 = vmatmul.mubr.bf16.gmra.mxu0 %v3905
    %v3985 = vpop.f32.mrf.mxu0
    %v3986 = vadd.f32 0.0, %v3985
    %v3987 = vpop.f32.mrf.mxu0
    %v3988 = vpop.f32.mrf.mxu0
    %v3989 = vadd.f32 0.0, %v3988
    %v3990 = vpop.f32.mrf.mxu0
    %3991 = vmatprep.mubr.bf16.mxu0 0
    %3992 = vmatmul.mubr.bf16.gmra.mxu0 %v3908
    %v3993 = vpop.f32.mrf.mxu0
    %v3994 = vadd.f32 0.0, %v3993
    %v3995 = vpop.f32.mrf.mxu0
    %v3996 = vpop.f32.mrf.mxu0
    %v3997 = vadd.f32 0.0, %v3996
    %v3998 = vpop.f32.mrf.mxu0
    %3999 = vmatprep.mubr.bf16.mxu0 0
    %4000 = vmatmul.mubr.bf16.gmra.mxu0 %v3911
    %v4001 = vpop.f32.mrf.mxu0
    %v4002 = vadd.f32 0.0, %v4001
    %v4003 = vpop.f32.mrf.mxu0
    %v4004 = vpop.f32.mrf.mxu0
    %v4005 = vadd.f32 0.0, %v4004
    %v4006 = vpop.f32.mrf.mxu0
    %4007 = vmatprep.mubr.bf16.mxu0 0
    %4008 = vmatmul.mubr.bf16.gmra.mxu0 %v3914
    %v4009 = vpop.f32.mrf.mxu0
    %v4010 = vadd.f32 0.0, %v4009
    %v4011 = vpop.f32.mrf.mxu0
    %v4012 = vpop.f32.mrf.mxu0
    %v4013 = vadd.f32 0.0, %v4012
    %v4014 = vpop.f32.mrf.mxu0
    %4015 = vmatprep.mubr.bf16.mxu0 0
    %4016 = vmatmul.mubr.bf16.gmra.mxu0 %v3917
    %v4017 = vpop.f32.mrf.mxu0
    %v4018 = vadd.f32 0.0, %v4017
    %v4019 = vpop.f32.mrf.mxu0
    %v4020 = vpop.f32.mrf.mxu0
    %v4021 = vadd.f32 0.0, %v4020
    %v4022 = vpop.f32.mrf.mxu0
    %4023 = vmatprep.mubr.bf16.mxu0 0
    %4024 = vmatmul.mubr.bf16.gmra.mxu0 %v3920
    %v4025 = vpop.f32.mrf.mxu0
    %v4026 = vadd.f32 0.0, %v4025
    %v4027 = vpop.f32.mrf.mxu0
    %v4028 = vpop.f32.mrf.mxu0
    %v4029 = vadd.f32 0.0, %v4028
    %v4030 = vpop.f32.mrf.mxu0
    %4031 = vmatprep.mubr.bf16.mxu0 0
    %4032 = vmatmul.mubr.bf16.gmra.mxu0 %v3923
    %v4033 = vpop.f32.mrf.mxu0
    %v4034 = vadd.f32 0.0, %v4033
    %v4035 = vpop.f32.mrf.mxu0
    %v4036 = vpop.f32.mrf.mxu0
    %v4037 = vadd.f32 0.0, %v4036
    %v4038 = vpop.f32.mrf.mxu0
    %4039 = vmatprep.mubr.bf16.mxu0 0
    %4040 = vmatmul.mubr.bf16.gmra.mxu0 %v3926
    %v4041 = vpop.f32.mrf.mxu0
    %v4042 = vadd.f32 0.0, %v4041
    %v4043 = vpop.f32.mrf.mxu0
    %v4044 = vpop.f32.mrf.mxu0
    %v4045 = vadd.f32 0.0, %v4044
    %v4046 = vpop.f32.mrf.mxu0
    %4047 = vmatprep.mubr.bf16.mxu0 0
    %4048 = vmatmul.mubr.bf16.gmra.mxu0 %v3929
    %v4049 = vpop.f32.mrf.mxu0
    %v4050 = vadd.f32 0.0, %v4049
    %v4051 = vpop.f32.mrf.mxu0
    %v4052 = vpop.f32.mrf.mxu0
    %v4053 = vadd.f32 0.0, %v4052
    %v4054 = vpop.f32.mrf.mxu0
    %4055 = vmatprep.mubr.bf16.mxu0 0
    %4056 = vmatmul.mubr.bf16.gmra.mxu0 %v3932
    %v4057 = vpop.f32.mrf.mxu0
    %v4058 = vadd.f32 0.0, %v4057
    %v4059 = vpop.f32.mrf.mxu0
    %v4060 = vpop.f32.mrf.mxu0
    %v4061 = vadd.f32 0.0, %v4060
    %v4062 = vpop.f32.mrf.mxu0
    %4063 = vmatprep.mubr.bf16.mxu0 0
    %4064 = vmatmul.mubr.bf16.gmra.mxu0 %v3935
    %v4065 = vpop.f32.mrf.mxu0
    %v4066 = vadd.f32 0.0, %v4065
    %v4067 = vpop.f32.mrf.mxu0
    %v4068 = vpop.f32.mrf.mxu0
    %v4069 = vadd.f32 0.0, %v4068
    %v4070 = vpop.f32.mrf.mxu0
    %4071 = vmatprep.mubr.bf16.mxu0 0
    %4072 = vmatmul.mubr.bf16.gmra.mxu0 %v3938
    %v4073 = vpop.f32.mrf.mxu0
    %v4074 = vadd.f32 0.0, %v4073
    %v4075 = vpop.f32.mrf.mxu0
    %v4076 = vpop.f32.mrf.mxu0
    %v4077 = vpop.f32.mrf.mxu0
    %4078 = vdwg.mxu0
    %v4079 = vadd.f32 %v3734, %v3978
    %v4080 = vadd.f32 %v3737, %v3981
    %v4081 = vadd.f32 %v3742, %v3986
    %v4082 = vadd.f32 %v3745, %v3989
    %v4083 = vadd.f32 %v3750, %v3994
    %v4084 = vadd.f32 %v3753, %v3997
    %v4085 = vadd.f32 %v3758, %v4002
    %v4086 = vadd.f32 %v3761, %v4005
    %v4087 = vadd.f32 %v3766, %v4010
    %v4088 = vadd.f32 %v3769, %v4013
    %v4089 = vadd.f32 %v3774, %v4018
    %v4090 = vadd.f32 %v3777, %v4021
    %v4091 = vadd.f32 %v3782, %v4026
    %v4092 = vadd.f32 %v3785, %v4029
    %v4093 = vadd.f32 %v3790, %v4034
    %v4094 = vadd.f32 %v3793, %v4037
    %v4095 = vadd.f32 %v3798, %v4042
    %v4096 = vadd.f32 %v3801, %v4045
    %v4097 = vadd.f32 %v3806, %v4050
    %v4098 = vadd.f32 %v3809, %v4053
    %v4099 = vadd.f32 %v3814, %v4058
    %v4100 = vadd.f32 %v3817, %v4061
    %v4101 = vadd.f32 %v3822, %v4066
    %v4102 = vadd.f32 %v3825, %v4069
    %v4103 = vadd.f32 %v3830, %v4074
    %v4104 = vld [vmem:[#allocation2 + $0x4] sm:$0x8]
    %v4105 = vld [vmem:[#allocation2 + $0x8] sm:$0xf]
    %v4106 = vld [vmem:[#allocation2 + $0xc] sm:$0xf]
    %v4107 = vld [vmem:[#allocation2 + $0x10] sm:$0xf]
    %v4108 = vld [vmem:[#allocation2 + $0x14] sm:$0xf]
    %v4109 = vld [vmem:[#allocation2 + $0x18] sm:$0xf]
    %v4110 = vld [vmem:[#allocation2 + $0x1c] sm:$0xf]
    %v4111 = vld [vmem:[#allocation2 + $0x20] sm:$0xf]
    %v4112 = vld [vmem:[#allocation2 + $0x24] sm:$0xf]
    %v4113 = vld [vmem:[#allocation2 + $0x28] sm:$0xf]
    %v4114 = vld [vmem:[#allocation2 + $0x2c] sm:$0xf]
    %v4115 = vld [vmem:[#allocation2 + $0x30] sm:$0xf]
    %v4116 = vld [vmem:[#allocation2 + $0x34] sm:$0xf]
    %v4117 = vld [vmem:[#allocation2 + $0x38] sm:$0xf]
    %v4118 = vld [vmem:[#allocation2 + $0x3c] sm:$0xf]
    %v4119 = vld [vmem:[#allocation2 + $0x40] sm:$0xf]
    %v4120 = vld [vmem:[#allocation2 + $0x44] sm:$0xf]
    %v4121 = vld [vmem:[#allocation2 + $0x48] sm:$0xf]
    %v4122 = vld [vmem:[#allocation2 + $0x4c] sm:$0xf]
    %v4123 = vld [vmem:[#allocation2 + $0x50] sm:$0xf]
    %v4124 = vld [vmem:[#allocation2 + $0x54] sm:$0xf]
    %v4125 = vld [vmem:[#allocation2 + $0x58] sm:$0xf]
    %v4126 = vld [vmem:[#allocation2 + $0x5c] sm:$0xf]
    %v4127 = vld [vmem:[#allocation2 + $0x60] sm:$0xf]
    %v4128 = vld [vmem:[#allocation2 + $0x64] sm:$0xf]
    %v4129 = vld [vmem:[#allocation2 + $0x68] sm:$0xf]
    %v4130 = vld [vmem:[%s5 + $0xc] sm:$0xf]
    %v4157 = vunpack.c.l.b16 %v4104
    %v4158 = vunpack.c.l.b16 %v4105
    %v4159 = vunpack.c.l.b16 %v4106
    %v4160 = vunpack.c.l.b16 %v4107
    %v4161 = vunpack.c.l.b16 %v4108
    %v4162 = vunpack.c.l.b16 %v4109
    %v4163 = vunpack.c.l.b16 %v4110
    %v4164 = vunpack.c.l.b16 %v4111
    %v4165 = vunpack.c.l.b16 %v4112
    %v4166 = vunpack.c.l.b16 %v4113
    %v4167 = vunpack.c.l.b16 %v4114
    %v4168 = vunpack.c.l.b16 %v4115
    %v4169 = vunpack.c.l.b16 %v4116
    %v4170 = vunpack.c.l.b16 %v4117
    %v4171 = vunpack.c.l.b16 %v4118
    %v4172 = vunpack.c.l.b16 %v4119
    %v4173 = vunpack.c.l.b16 %v4120
    %v4174 = vunpack.c.l.b16 %v4121
    %v4175 = vunpack.c.l.b16 %v4122
    %v4176 = vunpack.c.l.b16 %v4123
    %v4177 = vunpack.c.l.b16 %v4124
    %v4178 = vunpack.c.l.b16 %v4125
    %v4179 = vunpack.c.l.b16 %v4126
    %v4180 = vunpack.c.l.b16 %v4127
    %v4181 = vunpack.c.l.b16 %v4128
    %v4182 = vunpack.c.l.b16 %v4129
    %v4183 = vpack.c.b16 %v4158, %v4157
    %v4184 = vpack.c.b16 %v4160, %v4159
    %v4185 = vpack.c.b16 %v4162, %v4161
    %v4186 = vpack.c.b16 %v4164, %v4163
    %v4187 = vpack.c.b16 %v4166, %v4165
    %v4188 = vpack.c.b16 %v4168, %v4167
    %v4189 = vpack.c.b16 %v4170, %v4169
    %v4190 = vpack.c.b16 %v4172, %v4171
    %v4191 = vpack.c.b16 %v4174, %v4173
    %v4192 = vpack.c.b16 %v4176, %v4175
    %v4193 = vpack.c.b16 %v4178, %v4177
    %v4194 = vpack.c.b16 %v4180, %v4179
    %v4195 = vpack.c.b16 %v4182, %v4181
    %v4197 = vshrl.u32 %v4183, 16
    %v4199 = vrot.slane %v4197, 3
    %v4200 = vshll.u32 %v4183, 16
    %v4202 = vrot.slane %v4200, 4
    %v4203 = vor.u32 %v4199, %v4202
    %v4205 = vshrl.u32 %v4184, 16
    %v4207 = vrot.slane %v4205, 3
    %v4208 = vshll.u32 %v4184, 16
    %v4210 = vrot.slane %v4208, 4
    %v4211 = vor.u32 %v4207, %v4210
    %v4212 = vsel %vm668, %v4203, %v4211
    %v4214 = vshrl.u32 %v4185, 16
    %v4216 = vrot.slane %v4214, 3
    %v4217 = vshll.u32 %v4185, 16
    %v4219 = vrot.slane %v4217, 4
    %v4220 = vor.u32 %v4216, %v4219
    %v4221 = vsel %vm668, %v4211, %v4220
    %v4223 = vshrl.u32 %v4186, 16
    %v4225 = vrot.slane %v4223, 3
    %v4226 = vshll.u32 %v4186, 16
    %v4228 = vrot.slane %v4226, 4
    %v4229 = vor.u32 %v4225, %v4228
    %v4230 = vsel %vm668, %v4220, %v4229
    %v4232 = vshrl.u32 %v4187, 16
    %v4234 = vrot.slane %v4232, 3
    %v4235 = vshll.u32 %v4187, 16
    %v4237 = vrot.slane %v4235, 4
    %v4238 = vor.u32 %v4234, %v4237
    %v4239 = vsel %vm668, %v4229, %v4238
    %v4241 = vshrl.u32 %v4188, 16
    %v4243 = vrot.slane %v4241, 3
    %v4244 = vshll.u32 %v4188, 16
    %v4246 = vrot.slane %v4244, 4
    %v4247 = vor.u32 %v4243, %v4246
    %v4248 = vsel %vm668, %v4238, %v4247
    %v4250 = vshrl.u32 %v4189, 16
    %v4252 = vrot.slane %v4250, 3
    %v4253 = vshll.u32 %v4189, 16
    %v4255 = vrot.slane %v4253, 4
    %v4256 = vor.u32 %v4252, %v4255
    %v4257 = vsel %vm668, %v4247, %v4256
    %v4259 = vshrl.u32 %v4190, 16
    %v4261 = vrot.slane %v4259, 3
    %v4262 = vshll.u32 %v4190, 16
    %v4264 = vrot.slane %v4262, 4
    %v4265 = vor.u32 %v4261, %v4264
    %v4266 = vsel %vm668, %v4256, %v4265
    %v4268 = vshrl.u32 %v4191, 16
    %v4270 = vrot.slane %v4268, 3
    %v4271 = vshll.u32 %v4191, 16
    %v4273 = vrot.slane %v4271, 4
    %v4274 = vor.u32 %v4270, %v4273
    %v4275 = vsel %vm668, %v4265, %v4274
    %v4277 = vshrl.u32 %v4192, 16
    %v4279 = vrot.slane %v4277, 3
    %v4280 = vshll.u32 %v4192, 16
    %v4282 = vrot.slane %v4280, 4
    %v4283 = vor.u32 %v4279, %v4282
    %v4284 = vsel %vm668, %v4274, %v4283
    %v4286 = vshrl.u32 %v4193, 16
    %v4288 = vrot.slane %v4286, 3
    %v4289 = vshll.u32 %v4193, 16
    %v4291 = vrot.slane %v4289, 4
    %v4292 = vor.u32 %v4288, %v4291
    %v4293 = vsel %vm668, %v4283, %v4292
    %v4295 = vshrl.u32 %v4194, 16
    %v4297 = vrot.slane %v4295, 3
    %v4298 = vshll.u32 %v4194, 16
    %v4300 = vrot.slane %v4298, 4
    %v4301 = vor.u32 %v4297, %v4300
    %v4302 = vsel %vm668, %v4292, %v4301
    %v4304 = vshrl.u32 %v4195, 16
    %v4306 = vrot.slane %v4304, 3
    %v4307 = vshll.u32 %v4195, 16
    %v4309 = vrot.slane %v4307, 4
    %v4310 = vor.u32 %v4306, %v4309
    %v4311 = vsel %vm668, %v4301, %v4310
    %v4313 = vsel %vm3358, %v4212, 0
    %v4316 = vsel %vm3358, %v4221, 0
    %v4319 = vsel %vm3358, %v4230, 0
    %v4322 = vsel %vm3358, %v4239, 0
    %v4325 = vsel %vm3358, %v4248, 0
    %v4328 = vsel %vm3358, %v4257, 0
    %v4331 = vsel %vm3358, %v4266, 0
    %v4334 = vsel %vm3358, %v4275, 0
    %v4337 = vsel %vm3358, %v4284, 0
    %v4340 = vsel %vm3358, %v4293, 0
    %v4343 = vsel %vm3358, %v4302, 0
    %v4346 = vsel %vm3358, %v4311, 0
    %v4349 = vsel %vm3358, %v4310, 0
    %v4352 = vsel %vm3398, %v4130, 0
    %4354 = vmatprep.subr.bf16.mxu0 0
    %4355 = vmatpush1.bf16.msra.mxu0 0
    %4356 = vmatprep.subr.bf16.mxu0 0
    %4357 = vmatpush1.bf16.msra.mxu0 0
    %4358 = vmatprep.subr.bf16.mxu0 0
    %4359 = vmatpush1.bf16.msra.mxu0 0
    %4360 = vmatprep.subr.bf16.mxu0 0
    %4361 = vmatpush1.bf16.msra.mxu0 0
    %4362 = vmatprep.subr.bf16.mxu0 0
    %4363 = vmatpush1.bf16.msra.mxu0 0
    %4364 = vmatprep.subr.bf16.mxu0 0
    %4365 = vmatpush1.bf16.msra.mxu0 0
    %4366 = vmatprep.subr.bf16.mxu0 0
    %4367 = vmatpush1.bf16.msra.mxu0 0
    %4368 = vmatprep.subr.bf16.mxu0 0
    %4369 = vmatpush1.bf16.msra.mxu0 %v4352
    %4370 = vmatprep.subr.bf16.mxu0 0
    %4371 = vmatpush2.bf16.msra.mxu0 0
    %4372 = vmatprep.subr.bf16.mxu0 0
    %4373 = vmatpush2.bf16.msra.mxu0 0
    %4374 = vmatprep.subr.bf16.mxu0 0
    %4375 = vmatpush2.bf16.msra.mxu0 0
    %4376 = vmatprep.subr.bf16.mxu0 0
    %4377 = vmatpush2.bf16.msra.mxu0 0
    %4378 = vmatprep.subr.bf16.mxu0 0
    %4379 = vmatpush2.bf16.msra.mxu0 0
    %4380 = vmatprep.subr.bf16.mxu0 0
    %4381 = vmatpush2.bf16.msra.mxu0 0
    %4382 = vmatprep.subr.bf16.mxu0 0
    %4383 = vmatpush2.bf16.msra.mxu0 0
    %4384 = vmatprep.subr.bf16.mxu0 0
    %4385 = vmatpush2.bf16.msra.mxu0 0
    %4386 = vmatprep.mubr.bf16.mxu0 0
    %4387 = vmatmul.mubr.bf16.gmra.mxu0 %v4313
    %v4388 = vpop.f32.mrf.mxu0
    %v4389 = vadd.f32 0.0, %v4388
    %v4390 = vpop.f32.mrf.mxu0
    %v4391 = vpop.f32.mrf.mxu0
    %v4392 = vadd.f32 0.0, %v4391
    %v4393 = vpop.f32.mrf.mxu0
    %4394 = vmatprep.mubr.bf16.mxu0 0
    %4395 = vmatmul.mubr.bf16.gmra.mxu0 %v4316
    %v4396 = vpop.f32.mrf.mxu0
    %v4397 = vadd.f32 0.0, %v4396
    %v4398 = vpop.f32.mrf.mxu0
    %v4399 = vpop.f32.mrf.mxu0
    %v4400 = vadd.f32 0.0, %v4399
    %v4401 = vpop.f32.mrf.mxu0
    %4402 = vmatprep.mubr.bf16.mxu0 0
    %4403 = vmatmul.mubr.bf16.gmra.mxu0 %v4319
    %v4404 = vpop.f32.mrf.mxu0
    %v4405 = vadd.f32 0.0, %v4404
    %v4406 = vpop.f32.mrf.mxu0
    %v4407 = vpop.f32.mrf.mxu0
    %v4408 = vadd.f32 0.0, %v4407
    %v4409 = vpop.f32.mrf.mxu0
    %4410 = vmatprep.mubr.bf16.mxu0 0
    %4411 = vmatmul.mubr.bf16.gmra.mxu0 %v4322
    %v4412 = vpop.f32.mrf.mxu0
    %v4413 = vadd.f32 0.0, %v4412
    %v4414 = vpop.f32.mrf.mxu0
    %v4415 = vpop.f32.mrf.mxu0
    %v4416 = vadd.f32 0.0, %v4415
    %v4417 = vpop.f32.mrf.mxu0
    %4418 = vmatprep.mubr.bf16.mxu0 0
    %4419 = vmatmul.mubr.bf16.gmra.mxu0 %v4325
    %v4420 = vpop.f32.mrf.mxu0
    %v4421 = vadd.f32 0.0, %v4420
    %v4422 = vpop.f32.mrf.mxu0
    %v4423 = vpop.f32.mrf.mxu0
    %v4424 = vadd.f32 0.0, %v4423
    %v4425 = vpop.f32.mrf.mxu0
    %4426 = vmatprep.mubr.bf16.mxu0 0
    %4427 = vmatmul.mubr.bf16.gmra.mxu0 %v4328
    %v4428 = vpop.f32.mrf.mxu0
    %v4429 = vadd.f32 0.0, %v4428
    %v4430 = vpop.f32.mrf.mxu0
    %v4431 = vpop.f32.mrf.mxu0
    %v4432 = vadd.f32 0.0, %v4431
    %v4433 = vpop.f32.mrf.mxu0
    %4434 = vmatprep.mubr.bf16.mxu0 0
    %4435 = vmatmul.mubr.bf16.gmra.mxu0 %v4331
    %v4436 = vpop.f32.mrf.mxu0
    %v4437 = vadd.f32 0.0, %v4436
    %v4438 = vpop.f32.mrf.mxu0
    %v4439 = vpop.f32.mrf.mxu0
    %v4440 = vadd.f32 0.0, %v4439
    %v4441 = vpop.f32.mrf.mxu0
    %4442 = vmatprep.mubr.bf16.mxu0 0
    %4443 = vmatmul.mubr.bf16.gmra.mxu0 %v4334
    %v4444 = vpop.f32.mrf.mxu0
    %v4445 = vadd.f32 0.0, %v4444
    %v4446 = vpop.f32.mrf.mxu0
    %v4447 = vpop.f32.mrf.mxu0
    %v4448 = vadd.f32 0.0, %v4447
    %v4449 = vpop.f32.mrf.mxu0
    %4450 = vmatprep.mubr.bf16.mxu0 0
    %4451 = vmatmul.mubr.bf16.gmra.mxu0 %v4337
    %v4452 = vpop.f32.mrf.mxu0
    %v4453 = vadd.f32 0.0, %v4452
    %v4454 = vpop.f32.mrf.mxu0
    %v4455 = vpop.f32.mrf.mxu0
    %v4456 = vadd.f32 0.0, %v4455
    %v4457 = vpop.f32.mrf.mxu0
    %4458 = vmatprep.mubr.bf16.mxu0 0
    %4459 = vmatmul.mubr.bf16.gmra.mxu0 %v4340
    %v4460 = vpop.f32.mrf.mxu0
    %v4461 = vadd.f32 0.0, %v4460
    %v4462 = vpop.f32.mrf.mxu0
    %v4463 = vpop.f32.mrf.mxu0
    %v4464 = vadd.f32 0.0, %v4463
    %v4465 = vpop.f32.mrf.mxu0
    %4466 = vmatprep.mubr.bf16.mxu0 0
    %4467 = vmatmul.mubr.bf16.gmra.mxu0 %v4343
    %v4468 = vpop.f32.mrf.mxu0
    %v4469 = vadd.f32 0.0, %v4468
    %v4470 = vpop.f32.mrf.mxu0
    %v4471 = vpop.f32.mrf.mxu0
    %v4472 = vadd.f32 0.0, %v4471
    %v4473 = vpop.f32.mrf.mxu0
    %4474 = vmatprep.mubr.bf16.mxu0 0
    %4475 = vmatmul.mubr.bf16.gmra.mxu0 %v4346
    %v4476 = vpop.f32.mrf.mxu0
    %v4477 = vadd.f32 0.0, %v4476
    %v4478 = vpop.f32.mrf.mxu0
    %v4479 = vpop.f32.mrf.mxu0
    %v4480 = vadd.f32 0.0, %v4479
    %v4481 = vpop.f32.mrf.mxu0
    %4482 = vmatprep.mubr.bf16.mxu0 0
    %4483 = vmatmul.mubr.bf16.gmra.mxu0 %v4349
    %v4484 = vpop.f32.mrf.mxu0
    %v4485 = vadd.f32 0.0, %v4484
    %v4486 = vpop.f32.mrf.mxu0
    %v4487 = vpop.f32.mrf.mxu0
    %v4488 = vpop.f32.mrf.mxu0
    %4489 = vdwg.mxu0
    %v4490 = vadd.f32 %v4079, %v4389
    %v4491 = vadd.f32 %v4080, %v4392
    %v4492 = vadd.f32 %v4081, %v4397
    %v4493 = vadd.f32 %v4082, %v4400
    %v4494 = vadd.f32 %v4083, %v4405
    %v4495 = vadd.f32 %v4084, %v4408
    %v4496 = vadd.f32 %v4085, %v4413
    %v4497 = vadd.f32 %v4086, %v4416
    %v4498 = vadd.f32 %v4087, %v4421
    %v4499 = vadd.f32 %v4088, %v4424
    %v4500 = vadd.f32 %v4089, %v4429
    %v4501 = vadd.f32 %v4090, %v4432
    %v4502 = vadd.f32 %v4091, %v4437
    %v4503 = vadd.f32 %v4092, %v4440
    %v4504 = vadd.f32 %v4093, %v4445
    %v4505 = vadd.f32 %v4094, %v4448
    %v4506 = vadd.f32 %v4095, %v4453
    %v4507 = vadd.f32 %v4096, %v4456
    %v4508 = vadd.f32 %v4097, %v4461
    %v4509 = vadd.f32 %v4098, %v4464
    %v4510 = vadd.f32 %v4099, %v4469
    %v4511 = vadd.f32 %v4100, %v4472
    %v4512 = vadd.f32 %v4101, %v4477
    %v4513 = vadd.f32 %v4102, %v4480
    %v4514 = vadd.f32 %v4103, %v4485
    %v4515 = vld [vmem:[%s5 + $0x10] sm:$0xf]
    %v4516 = vpack.c.b16 %v4159, %v4158
    %v4517 = vpack.c.b16 %v4161, %v4160
    %v4518 = vpack.c.b16 %v4163, %v4162
    %v4519 = vpack.c.b16 %v4165, %v4164
    %v4520 = vpack.c.b16 %v4167, %v4166
    %v4521 = vpack.c.b16 %v4169, %v4168
    %v4522 = vpack.c.b16 %v4171, %v4170
    %v4523 = vpack.c.b16 %v4173, %v4172
    %v4524 = vpack.c.b16 %v4175, %v4174
    %v4525 = vpack.c.b16 %v4177, %v4176
    %v4526 = vpack.c.b16 %v4179, %v4178
    %v4527 = vpack.c.b16 %v4181, %v4180
    %v4528 = vpack.c.b16 %v4182, %v4182
    %v4530 = vsel %vm3358, %v4516, 0
    %v4533 = vsel %vm3358, %v4517, 0
    %v4536 = vsel %vm3358, %v4518, 0
    %v4539 = vsel %vm3358, %v4519, 0
    %v4542 = vsel %vm3358, %v4520, 0
    %v4545 = vsel %vm3358, %v4521, 0
    %v4548 = vsel %vm3358, %v4522, 0
    %v4551 = vsel %vm3358, %v4523, 0
    %v4554 = vsel %vm3358, %v4524, 0
    %v4557 = vsel %vm3358, %v4525, 0
    %v4560 = vsel %vm3358, %v4526, 0
    %v4563 = vsel %vm3358, %v4527, 0
    %v4566 = vsel %vm3358, %v4528, 0
    %v4569 = vsel %vm3398, %v4515, 0
    %4571 = vmatprep.subr.bf16.mxu0 0
    %4572 = vmatpush1.bf16.msra.mxu0 0
    %4573 = vmatprep.subr.bf16.mxu0 0
    %4574 = vmatpush1.bf16.msra.mxu0 0
    %4575 = vmatprep.subr.bf16.mxu0 0
    %4576 = vmatpush1.bf16.msra.mxu0 0
    %4577 = vmatprep.subr.bf16.mxu0 0
    %4578 = vmatpush1.bf16.msra.mxu0 0
    %4579 = vmatprep.subr.bf16.mxu0 0
    %4580 = vmatpush1.bf16.msra.mxu0 0
    %4581 = vmatprep.subr.bf16.mxu0 0
    %4582 = vmatpush1.bf16.msra.mxu0 0
    %4583 = vmatprep.subr.bf16.mxu0 0
    %4584 = vmatpush1.bf16.msra.mxu0 0
    %4585 = vmatprep.subr.bf16.mxu0 0
    %4586 = vmatpush1.bf16.msra.mxu0 %v4569
    %4587 = vmatprep.subr.bf16.mxu0 0
    %4588 = vmatpush2.bf16.msra.mxu0 0
    %4589 = vmatprep.subr.bf16.mxu0 0
    %4590 = vmatpush2.bf16.msra.mxu0 0
    %4591 = vmatprep.subr.bf16.mxu0 0
    %4592 = vmatpush2.bf16.msra.mxu0 0
    %4593 = vmatprep.subr.bf16.mxu0 0
    %4594 = vmatpush2.bf16.msra.mxu0 0
    %4595 = vmatprep.subr.bf16.mxu0 0
    %4596 = vmatpush2.bf16.msra.mxu0 0
    %4597 = vmatprep.subr.bf16.mxu0 0
    %4598 = vmatpush2.bf16.msra.mxu0 0
    %4599 = vmatprep.subr.bf16.mxu0 0
    %4600 = vmatpush2.bf16.msra.mxu0 0
    %4601 = vmatprep.subr.bf16.mxu0 0
    %4602 = vmatpush2.bf16.msra.mxu0 0
    %4603 = vmatprep.mubr.bf16.mxu0 0
    %4604 = vmatmul.mubr.bf16.gmra.mxu0 %v4530
    %v4605 = vpop.f32.mrf.mxu0
    %v4606 = vadd.f32 0.0, %v4605
    %v4607 = vpop.f32.mrf.mxu0
    %v4608 = vpop.f32.mrf.mxu0
    %v4609 = vadd.f32 0.0, %v4608
    %v4610 = vpop.f32.mrf.mxu0
    %4611 = vmatprep.mubr.bf16.mxu0 0
    %4612 = vmatmul.mubr.bf16.gmra.mxu0 %v4533
    %v4613 = vpop.f32.mrf.mxu0
    %v4614 = vadd.f32 0.0, %v4613
    %v4615 = vpop.f32.mrf.mxu0
    %v4616 = vpop.f32.mrf.mxu0
    %v4617 = vadd.f32 0.0, %v4616
    %v4618 = vpop.f32.mrf.mxu0
    %4619 = vmatprep.mubr.bf16.mxu0 0
    %4620 = vmatmul.mubr.bf16.gmra.mxu0 %v4536
    %v4621 = vpop.f32.mrf.mxu0
    %v4622 = vadd.f32 0.0, %v4621
    %v4623 = vpop.f32.mrf.mxu0
    %v4624 = vpop.f32.mrf.mxu0
    %v4625 = vadd.f32 0.0, %v4624
    %v4626 = vpop.f32.mrf.mxu0
    %4627 = vmatprep.mubr.bf16.mxu0 0
    %4628 = vmatmul.mubr.bf16.gmra.mxu0 %v4539
    %v4629 = vpop.f32.mrf.mxu0
    %v4630 = vadd.f32 0.0, %v4629
    %v4631 = vpop.f32.mrf.mxu0
    %v4632 = vpop.f32.mrf.mxu0
    %v4633 = vadd.f32 0.0, %v4632
    %v4634 = vpop.f32.mrf.mxu0
    %4635 = vmatprep.mubr.bf16.mxu0 0
    %4636 = vmatmul.mubr.bf16.gmra.mxu0 %v4542
    %v4637 = vpop.f32.mrf.mxu0
    %v4638 = vadd.f32 0.0, %v4637
    %v4639 = vpop.f32.mrf.mxu0
    %v4640 = vpop.f32.mrf.mxu0
    %v4641 = vadd.f32 0.0, %v4640
    %v4642 = vpop.f32.mrf.mxu0
    %4643 = vmatprep.mubr.bf16.mxu0 0
    %4644 = vmatmul.mubr.bf16.gmra.mxu0 %v4545
    %v4645 = vpop.f32.mrf.mxu0
    %v4646 = vadd.f32 0.0, %v4645
    %v4647 = vpop.f32.mrf.mxu0
    %v4648 = vpop.f32.mrf.mxu0
    %v4649 = vadd.f32 0.0, %v4648
    %v4650 = vpop.f32.mrf.mxu0
    %4651 = vmatprep.mubr.bf16.mxu0 0
    %4652 = vmatmul.mubr.bf16.gmra.mxu0 %v4548
    %v4653 = vpop.f32.mrf.mxu0
    %v4654 = vadd.f32 0.0, %v4653
    %v4655 = vpop.f32.mrf.mxu0
    %v4656 = vpop.f32.mrf.mxu0
    %v4657 = vadd.f32 0.0, %v4656
    %v4658 = vpop.f32.mrf.mxu0
    %4659 = vmatprep.mubr.bf16.mxu0 0
    %4660 = vmatmul.mubr.bf16.gmra.mxu0 %v4551
    %v4661 = vpop.f32.mrf.mxu0
    %v4662 = vadd.f32 0.0, %v4661
    %v4663 = vpop.f32.mrf.mxu0
    %v4664 = vpop.f32.mrf.mxu0
    %v4665 = vadd.f32 0.0, %v4664
    %v4666 = vpop.f32.mrf.mxu0
    %4667 = vmatprep.mubr.bf16.mxu0 0
    %4668 = vmatmul.mubr.bf16.gmra.mxu0 %v4554
    %v4669 = vpop.f32.mrf.mxu0
    %v4670 = vadd.f32 0.0, %v4669
    %v4671 = vpop.f32.mrf.mxu0
    %v4672 = vpop.f32.mrf.mxu0
    %v4673 = vadd.f32 0.0, %v4672
    %v4674 = vpop.f32.mrf.mxu0
    %4675 = vmatprep.mubr.bf16.mxu0 0
    %4676 = vmatmul.mubr.bf16.gmra.mxu0 %v4557
    %v4677 = vpop.f32.mrf.mxu0
    %v4678 = vadd.f32 0.0, %v4677
    %v4679 = vpop.f32.mrf.mxu0
    %v4680 = vpop.f32.mrf.mxu0
    %v4681 = vadd.f32 0.0, %v4680
    %v4682 = vpop.f32.mrf.mxu0
    %4683 = vmatprep.mubr.bf16.mxu0 0
    %4684 = vmatmul.mubr.bf16.gmra.mxu0 %v4560
    %v4685 = vpop.f32.mrf.mxu0
    %v4686 = vadd.f32 0.0, %v4685
    %v4687 = vpop.f32.mrf.mxu0
    %v4688 = vpop.f32.mrf.mxu0
    %v4689 = vadd.f32 0.0, %v4688
    %v4690 = vpop.f32.mrf.mxu0
    %4691 = vmatprep.mubr.bf16.mxu0 0
    %4692 = vmatmul.mubr.bf16.gmra.mxu0 %v4563
    %v4693 = vpop.f32.mrf.mxu0
    %v4694 = vadd.f32 0.0, %v4693
    %v4695 = vpop.f32.mrf.mxu0
    %v4696 = vpop.f32.mrf.mxu0
    %v4697 = vadd.f32 0.0, %v4696
    %v4698 = vpop.f32.mrf.mxu0
    %4699 = vmatprep.mubr.bf16.mxu0 0
    %4700 = vmatmul.mubr.bf16.gmra.mxu0 %v4566
    %v4701 = vpop.f32.mrf.mxu0
    %v4702 = vadd.f32 0.0, %v4701
    %v4703 = vpop.f32.mrf.mxu0
    %v4704 = vpop.f32.mrf.mxu0
    %v4705 = vpop.f32.mrf.mxu0
    %4706 = vdwg.mxu0
    %v4707 = vadd.f32 %v4490, %v4606
    %v4708 = vadd.f32 %v4491, %v4609
    %v4709 = vadd.f32 %v4492, %v4614
    %v4710 = vadd.f32 %v4493, %v4617
    %v4711 = vadd.f32 %v4494, %v4622
    %v4712 = vadd.f32 %v4495, %v4625
    %v4713 = vadd.f32 %v4496, %v4630
    %v4714 = vadd.f32 %v4497, %v4633
    %v4715 = vadd.f32 %v4498, %v4638
    %v4716 = vadd.f32 %v4499, %v4641
    %v4717 = vadd.f32 %v4500, %v4646
    %v4718 = vadd.f32 %v4501, %v4649
    %v4719 = vadd.f32 %v4502, %v4654
    %v4720 = vadd.f32 %v4503, %v4657
    %v4721 = vadd.f32 %v4504, %v4662
    %v4722 = vadd.f32 %v4505, %v4665
    %v4723 = vadd.f32 %v4506, %v4670
    %v4724 = vadd.f32 %v4507, %v4673
    %v4725 = vadd.f32 %v4508, %v4678
    %v4726 = vadd.f32 %v4509, %v4681
    %v4727 = vadd.f32 %v4510, %v4686
    %v4728 = vadd.f32 %v4511, %v4689
    %v4729 = vadd.f32 %v4512, %v4694
    %v4730 = vadd.f32 %v4513, %v4697
    %v4731 = vadd.f32 %v4514, %v4702
    %v4732 = vld [vmem:[#allocation2 + $0x8] sm:$0xf]
    %v4733 = vld [vmem:[#allocation2 + $0xc] sm:$0xf]
    %v4734 = vld [vmem:[#allocation2 + $0x10] sm:$0xf]
    %v4735 = vld [vmem:[#allocation2 + $0x14] sm:$0xf]
    %v4736 = vld [vmem:[#allocation2 + $0x18] sm:$0xf]
    %v4737 = vld [vmem:[#allocation2 + $0x1c] sm:$0xf]
    %v4738 = vld [vmem:[#allocation2 + $0x20] sm:$0xf]
    %v4739 = vld [vmem:[#allocation2 + $0x24] sm:$0xf]
    %v4740 = vld [vmem:[#allocation2 + $0x28] sm:$0xf]
    %v4741 = vld [vmem:[#allocation2 + $0x2c] sm:$0xf]
    %v4742 = vld [vmem:[#allocation2 + $0x30] sm:$0xf]
    %v4743 = vld [vmem:[#allocation2 + $0x34] sm:$0xf]
    %v4744 = vld [vmem:[#allocation2 + $0x38] sm:$0xf]
    %v4745 = vld [vmem:[#allocation2 + $0x3c] sm:$0xf]
    %v4746 = vld [vmem:[#allocation2 + $0x40] sm:$0xf]
    %v4747 = vld [vmem:[#allocation2 + $0x44] sm:$0xf]
    %v4748 = vld [vmem:[#allocation2 + $0x48] sm:$0xf]
    %v4749 = vld [vmem:[#allocation2 + $0x4c] sm:$0xf]
    %v4750 = vld [vmem:[#allocation2 + $0x50] sm:$0xf]
    %v4751 = vld [vmem:[#allocation2 + $0x54] sm:$0xf]
    %v4752 = vld [vmem:[#allocation2 + $0x58] sm:$0xf]
    %v4753 = vld [vmem:[#allocation2 + $0x5c] sm:$0xf]
    %v4754 = vld [vmem:[#allocation2 + $0x60] sm:$0xf]
    %v4755 = vld [vmem:[#allocation2 + $0x64] sm:$0xf]
    %v4756 = vld [vmem:[#allocation2 + $0x68] sm:$0xf]
    %v4757 = vld [vmem:[#allocation2 + $0x6c] sm:$0x1]
    %v4758 = vld [vmem:[%s5 + $0x14] sm:$0xf]
    %v4785 = vunpack.c.l.b16 %v4732
    %v4786 = vunpack.c.l.b16 %v4733
    %v4787 = vunpack.c.l.b16 %v4734
    %v4788 = vunpack.c.l.b16 %v4735
    %v4789 = vunpack.c.l.b16 %v4736
    %v4790 = vunpack.c.l.b16 %v4737
    %v4791 = vunpack.c.l.b16 %v4738
    %v4792 = vunpack.c.l.b16 %v4739
    %v4793 = vunpack.c.l.b16 %v4740
    %v4794 = vunpack.c.l.b16 %v4741
    %v4795 = vunpack.c.l.b16 %v4742
    %v4796 = vunpack.c.l.b16 %v4743
    %v4797 = vunpack.c.l.b16 %v4744
    %v4798 = vunpack.c.l.b16 %v4745
    %v4799 = vunpack.c.l.b16 %v4746
    %v4800 = vunpack.c.l.b16 %v4747
    %v4801 = vunpack.c.l.b16 %v4748
    %v4802 = vunpack.c.l.b16 %v4749
    %v4803 = vunpack.c.l.b16 %v4750
    %v4804 = vunpack.c.l.b16 %v4751
    %v4805 = vunpack.c.l.b16 %v4752
    %v4806 = vunpack.c.l.b16 %v4753
    %v4807 = vunpack.c.l.b16 %v4754
    %v4808 = vunpack.c.l.b16 %v4755
    %v4809 = vunpack.c.l.b16 %v4756
    %v4810 = vunpack.c.l.b16 %v4757
    %v4811 = vpack.c.b16 %v4786, %v4785
    %v4812 = vpack.c.b16 %v4788, %v4787
    %v4813 = vpack.c.b16 %v4790, %v4789
    %v4814 = vpack.c.b16 %v4792, %v4791
    %v4815 = vpack.c.b16 %v4794, %v4793
    %v4816 = vpack.c.b16 %v4796, %v4795
    %v4817 = vpack.c.b16 %v4798, %v4797
    %v4818 = vpack.c.b16 %v4800, %v4799
    %v4819 = vpack.c.b16 %v4802, %v4801
    %v4820 = vpack.c.b16 %v4804, %v4803
    %v4821 = vpack.c.b16 %v4806, %v4805
    %v4822 = vpack.c.b16 %v4808, %v4807
    %v4823 = vpack.c.b16 %v4810, %v4809
    %v4825 = vshrl.u32 %v4811, 16
    %v4827 = vshll.u32 %v4811, 16
    %v4829 = vrot.slane %v4827, 1
    %v4830 = vor.u32 %v4825, %v4829
    %v4832 = vshll.u32 %v4812, 16
    %v4834 = vrot.slane %v4832, 1
    %v4835 = vsel %vm1657, %v4830, %v4834
    %v4836 = vshrl.u32 %v4812, 16
    %v4838 = vor.u32 %v4836, %v4834
    %v4840 = vshll.u32 %v4813, 16
    %v4842 = vrot.slane %v4840, 1
    %v4843 = vsel %vm1657, %v4838, %v4842
    %v4844 = vshrl.u32 %v4813, 16
    %v4846 = vor.u32 %v4844, %v4842
    %v4848 = vshll.u32 %v4814, 16
    %v4850 = vrot.slane %v4848, 1
    %v4851 = vsel %vm1657, %v4846, %v4850
    %v4852 = vshrl.u32 %v4814, 16
    %v4854 = vor.u32 %v4852, %v4850
    %v4856 = vshll.u32 %v4815, 16
    %v4858 = vrot.slane %v4856, 1
    %v4859 = vsel %vm1657, %v4854, %v4858
    %v4860 = vshrl.u32 %v4815, 16
    %v4862 = vor.u32 %v4860, %v4858
    %v4864 = vshll.u32 %v4816, 16
    %v4866 = vrot.slane %v4864, 1
    %v4867 = vsel %vm1657, %v4862, %v4866
    %v4868 = vshrl.u32 %v4816, 16
    %v4870 = vor.u32 %v4868, %v4866
    %v4872 = vshll.u32 %v4817, 16
    %v4874 = vrot.slane %v4872, 1
    %v4875 = vsel %vm1657, %v4870, %v4874
    %v4876 = vshrl.u32 %v4817, 16
    %v4878 = vor.u32 %v4876, %v4874
    %v4880 = vshll.u32 %v4818, 16
    %v4882 = vrot.slane %v4880, 1
    %v4883 = vsel %vm1657, %v4878, %v4882
    %v4884 = vshrl.u32 %v4818, 16
    %v4886 = vor.u32 %v4884, %v4882
    %v4888 = vshll.u32 %v4819, 16
    %v4890 = vrot.slane %v4888, 1
    %v4891 = vsel %vm1657, %v4886, %v4890
    %v4892 = vshrl.u32 %v4819, 16
    %v4894 = vor.u32 %v4892, %v4890
    %v4896 = vshll.u32 %v4820, 16
    %v4898 = vrot.slane %v4896, 1
    %v4899 = vsel %vm1657, %v4894, %v4898
    %v4900 = vshrl.u32 %v4820, 16
    %v4902 = vor.u32 %v4900, %v4898
    %v4904 = vshll.u32 %v4821, 16
    %v4906 = vrot.slane %v4904, 1
    %v4907 = vsel %vm1657, %v4902, %v4906
    %v4908 = vshrl.u32 %v4821, 16
    %v4910 = vor.u32 %v4908, %v4906
    %v4912 = vshll.u32 %v4822, 16
    %v4914 = vrot.slane %v4912, 1
    %v4915 = vsel %vm1657, %v4910, %v4914
    %v4916 = vshrl.u32 %v4822, 16
    %v4918 = vor.u32 %v4916, %v4914
    %v4920 = vshll.u32 %v4823, 16
    %v4922 = vrot.slane %v4920, 1
    %v4923 = vsel %vm1657, %v4918, %v4922
    %v4924 = vshrl.u32 %v4823, 16
    %v4926 = vor.u32 %v4924, %v4922
    %v4928 = vsel %vm3358, %v4835, 0
    %v4931 = vsel %vm3358, %v4843, 0
    %v4934 = vsel %vm3358, %v4851, 0
    %v4937 = vsel %vm3358, %v4859, 0
    %v4940 = vsel %vm3358, %v4867, 0
    %v4943 = vsel %vm3358, %v4875, 0
    %v4946 = vsel %vm3358, %v4883, 0
    %v4949 = vsel %vm3358, %v4891, 0
    %v4952 = vsel %vm3358, %v4899, 0
    %v4955 = vsel %vm3358, %v4907, 0
    %v4958 = vsel %vm3358, %v4915, 0
    %v4961 = vsel %vm3358, %v4923, 0
    %v4964 = vsel %vm3358, %v4926, 0
    %v4967 = vsel %vm3398, %v4758, 0
    %4969 = vmatprep.subr.bf16.mxu0 0
    %4970 = vmatpush1.bf16.msra.mxu0 0
    %4971 = vmatprep.subr.bf16.mxu0 0
    %4972 = vmatpush1.bf16.msra.mxu0 0
    %4973 = vmatprep.subr.bf16.mxu0 0
    %4974 = vmatpush1.bf16.msra.mxu0 0
    %4975 = vmatprep.subr.bf16.mxu0 0
    %4976 = vmatpush1.bf16.msra.mxu0 0
    %4977 = vmatprep.subr.bf16.mxu0 0
    %4978 = vmatpush1.bf16.msra.mxu0 0
    %4979 = vmatprep.subr.bf16.mxu0 0
    %4980 = vmatpush1.bf16.msra.mxu0 0
    %4981 = vmatprep.subr.bf16.mxu0 0
    %4982 = vmatpush1.bf16.msra.mxu0 0
    %4983 = vmatprep.subr.bf16.mxu0 0
    %4984 = vmatpush1.bf16.msra.mxu0 %v4967
    %4985 = vmatprep.subr.bf16.mxu0 0
    %4986 = vmatpush2.bf16.msra.mxu0 0
    %4987 = vmatprep.subr.bf16.mxu0 0
    %4988 = vmatpush2.bf16.msra.mxu0 0
    %4989 = vmatprep.subr.bf16.mxu0 0
    %4990 = vmatpush2.bf16.msra.mxu0 0
    %4991 = vmatprep.subr.bf16.mxu0 0
    %4992 = vmatpush2.bf16.msra.mxu0 0
    %4993 = vmatprep.subr.bf16.mxu0 0
    %4994 = vmatpush2.bf16.msra.mxu0 0
    %4995 = vmatprep.subr.bf16.mxu0 0
    %4996 = vmatpush2.bf16.msra.mxu0 0
    %4997 = vmatprep.subr.bf16.mxu0 0
    %4998 = vmatpush2.bf16.msra.mxu0 0
    %4999 = vmatprep.subr.bf16.mxu0 0
    %5000 = vmatpush2.bf16.msra.mxu0 0
    %5001 = vmatprep.mubr.bf16.mxu0 0
    %5002 = vmatmul.mubr.bf16.gmra.mxu0 %v4928
    %v5003 = vpop.f32.mrf.mxu0
    %v5004 = vadd.f32 0.0, %v5003
    %v5005 = vpop.f32.mrf.mxu0
    %v5006 = vpop.f32.mrf.mxu0
    %v5007 = vadd.f32 0.0, %v5006
    %v5008 = vpop.f32.mrf.mxu0
    %5009 = vmatprep.mubr.bf16.mxu0 0
    %5010 = vmatmul.mubr.bf16.gmra.mxu0 %v4931
    %v5011 = vpop.f32.mrf.mxu0
    %v5012 = vadd.f32 0.0, %v5011
    %v5013 = vpop.f32.mrf.mxu0
    %v5014 = vpop.f32.mrf.mxu0
    %v5015 = vadd.f32 0.0, %v5014
    %v5016 = vpop.f32.mrf.mxu0
    %5017 = vmatprep.mubr.bf16.mxu0 0
    %5018 = vmatmul.mubr.bf16.gmra.mxu0 %v4934
    %v5019 = vpop.f32.mrf.mxu0
    %v5020 = vadd.f32 0.0, %v5019
    %v5021 = vpop.f32.mrf.mxu0
    %v5022 = vpop.f32.mrf.mxu0
    %v5023 = vadd.f32 0.0, %v5022
    %v5024 = vpop.f32.mrf.mxu0
    %5025 = vmatprep.mubr.bf16.mxu0 0
    %5026 = vmatmul.mubr.bf16.gmra.mxu0 %v4937
    %v5027 = vpop.f32.mrf.mxu0
    %v5028 = vadd.f32 0.0, %v5027
    %v5029 = vpop.f32.mrf.mxu0
    %v5030 = vpop.f32.mrf.mxu0
    %v5031 = vadd.f32 0.0, %v5030
    %v5032 = vpop.f32.mrf.mxu0
    %5033 = vmatprep.mubr.bf16.mxu0 0
    %5034 = vmatmul.mubr.bf16.gmra.mxu0 %v4940
    %v5035 = vpop.f32.mrf.mxu0
    %v5036 = vadd.f32 0.0, %v5035
    %v5037 = vpop.f32.mrf.mxu0
    %v5038 = vpop.f32.mrf.mxu0
    %v5039 = vadd.f32 0.0, %v5038
    %v5040 = vpop.f32.mrf.mxu0
    %5041 = vmatprep.mubr.bf16.mxu0 0
    %5042 = vmatmul.mubr.bf16.gmra.mxu0 %v4943
    %v5043 = vpop.f32.mrf.mxu0
    %v5044 = vadd.f32 0.0, %v5043
    %v5045 = vpop.f32.mrf.mxu0
    %v5046 = vpop.f32.mrf.mxu0
    %v5047 = vadd.f32 0.0, %v5046
    %v5048 = vpop.f32.mrf.mxu0
    %5049 = vmatprep.mubr.bf16.mxu0 0
    %5050 = vmatmul.mubr.bf16.gmra.mxu0 %v4946
    %v5051 = vpop.f32.mrf.mxu0
    %v5052 = vadd.f32 0.0, %v5051
    %v5053 = vpop.f32.mrf.mxu0
    %v5054 = vpop.f32.mrf.mxu0
    %v5055 = vadd.f32 0.0, %v5054
    %v5056 = vpop.f32.mrf.mxu0
    %5057 = vmatprep.mubr.bf16.mxu0 0
    %5058 = vmatmul.mubr.bf16.gmra.mxu0 %v4949
    %v5059 = vpop.f32.mrf.mxu0
    %v5060 = vadd.f32 0.0, %v5059
    %v5061 = vpop.f32.mrf.mxu0
    %v5062 = vpop.f32.mrf.mxu0
    %v5063 = vadd.f32 0.0, %v5062
    %v5064 = vpop.f32.mrf.mxu0
    %5065 = vmatprep.mubr.bf16.mxu0 0
    %5066 = vmatmul.mubr.bf16.gmra.mxu0 %v4952
    %v5067 = vpop.f32.mrf.mxu0
    %v5068 = vadd.f32 0.0, %v5067
    %v5069 = vpop.f32.mrf.mxu0
    %v5070 = vpop.f32.mrf.mxu0
    %v5071 = vadd.f32 0.0, %v5070
    %v5072 = vpop.f32.mrf.mxu0
    %5073 = vmatprep.mubr.bf16.mxu0 0
    %5074 = vmatmul.mubr.bf16.gmra.mxu0 %v4955
    %v5075 = vpop.f32.mrf.mxu0
    %v5076 = vadd.f32 0.0, %v5075
    %v5077 = vpop.f32.mrf.mxu0
    %v5078 = vpop.f32.mrf.mxu0
    %v5079 = vadd.f32 0.0, %v5078
    %v5080 = vpop.f32.mrf.mxu0
    %5081 = vmatprep.mubr.bf16.mxu0 0
    %5082 = vmatmul.mubr.bf16.gmra.mxu0 %v4958
    %v5083 = vpop.f32.mrf.mxu0
    %v5084 = vadd.f32 0.0, %v5083
    %v5085 = vpop.f32.mrf.mxu0
    %v5086 = vpop.f32.mrf.mxu0
    %v5087 = vadd.f32 0.0, %v5086
    %v5088 = vpop.f32.mrf.mxu0
    %5089 = vmatprep.mubr.bf16.mxu0 0
    %5090 = vmatmul.mubr.bf16.gmra.mxu0 %v4961
    %v5091 = vpop.f32.mrf.mxu0
    %v5092 = vadd.f32 0.0, %v5091
    %v5093 = vpop.f32.mrf.mxu0
    %v5094 = vpop.f32.mrf.mxu0
    %v5095 = vadd.f32 0.0, %v5094
    %v5096 = vpop.f32.mrf.mxu0
    %5097 = vmatprep.mubr.bf16.mxu0 0
    %5098 = vmatmul.mubr.bf16.gmra.mxu0 %v4964
    %v5099 = vpop.f32.mrf.mxu0
    %v5100 = vadd.f32 0.0, %v5099
    %v5101 = vpop.f32.mrf.mxu0
    %v5102 = vpop.f32.mrf.mxu0
    %v5103 = vpop.f32.mrf.mxu0
    %5104 = vdwg.mxu0
    %v5105 = vadd.f32 %v4707, %v5004
    %v5106 = vadd.f32 %v4708, %v5007
    %v5107 = vadd.f32 %v4709, %v5012
    %v5108 = vadd.f32 %v4710, %v5015
    %v5109 = vadd.f32 %v4711, %v5020
    %v5110 = vadd.f32 %v4712, %v5023
    %v5111 = vadd.f32 %v4713, %v5028
    %v5112 = vadd.f32 %v4714, %v5031
    %v5113 = vadd.f32 %v4715, %v5036
    %v5114 = vadd.f32 %v4716, %v5039
    %v5115 = vadd.f32 %v4717, %v5044
    %v5116 = vadd.f32 %v4718, %v5047
    %v5117 = vadd.f32 %v4719, %v5052
    %v5118 = vadd.f32 %v4720, %v5055
    %v5119 = vadd.f32 %v4721, %v5060
    %v5120 = vadd.f32 %v4722, %v5063
    %v5121 = vadd.f32 %v4723, %v5068
    %v5122 = vadd.f32 %v4724, %v5071
    %v5123 = vadd.f32 %v4725, %v5076
    %v5124 = vadd.f32 %v4726, %v5079
    %v5125 = vadd.f32 %v4727, %v5084
    %v5126 = vadd.f32 %v4728, %v5087
    %v5127 = vadd.f32 %v4729, %v5092
    %v5128 = vadd.f32 %v4730, %v5095
    %v5129 = vadd.f32 %v4731, %v5100
    %v5130 = vld [vmem:[#allocation2 + $0xc] sm:$0xf]
    %v5131 = vld [vmem:[#allocation2 + $0x10] sm:$0xf]
    %v5132 = vld [vmem:[#allocation2 + $0x14] sm:$0xf]
    %v5133 = vld [vmem:[#allocation2 + $0x18] sm:$0xf]
    %v5134 = vld [vmem:[#allocation2 + $0x1c] sm:$0xf]
    %v5135 = vld [vmem:[#allocation2 + $0x20] sm:$0xf]
    %v5136 = vld [vmem:[#allocation2 + $0x24] sm:$0xf]
    %v5137 = vld [vmem:[#allocation2 + $0x28] sm:$0xf]
    %v5138 = vld [vmem:[#allocation2 + $0x2c] sm:$0xf]
    %v5139 = vld [vmem:[#allocation2 + $0x30] sm:$0xf]
    %v5140 = vld [vmem:[#allocation2 + $0x34] sm:$0xf]
    %v5141 = vld [vmem:[#allocation2 + $0x38] sm:$0xf]
    %v5142 = vld [vmem:[#allocation2 + $0x3c] sm:$0xf]
    %v5143 = vld [vmem:[#allocation2 + $0x40] sm:$0xf]
    %v5144 = vld [vmem:[#allocation2 + $0x44] sm:$0xf]
    %v5145 = vld [vmem:[#allocation2 + $0x48] sm:$0xf]
    %v5146 = vld [vmem:[#allocation2 + $0x4c] sm:$0xf]
    %v5147 = vld [vmem:[#allocation2 + $0x50] sm:$0xf]
    %v5148 = vld [vmem:[#allocation2 + $0x54] sm:$0xf]
    %v5149 = vld [vmem:[#allocation2 + $0x58] sm:$0xf]
    %v5150 = vld [vmem:[#allocation2 + $0x5c] sm:$0xf]
    %v5151 = vld [vmem:[#allocation2 + $0x60] sm:$0xf]
    %v5152 = vld [vmem:[#allocation2 + $0x64] sm:$0xf]
    %v5153 = vld [vmem:[#allocation2 + $0x68] sm:$0xf]
    %v5154 = vld [vmem:[#allocation2 + $0x6c] sm:$0xf]
    %v5155 = vld [vmem:[#allocation2 + $0x70] sm:$0x1]
    %v5156 = vld [vmem:[%s5 + $0x18] sm:$0xf]
    %v5183 = vunpack.c.l.b16 %v5130
    %v5184 = vunpack.c.l.b16 %v5131
    %v5185 = vunpack.c.l.b16 %v5132
    %v5186 = vunpack.c.l.b16 %v5133
    %v5187 = vunpack.c.l.b16 %v5134
    %v5188 = vunpack.c.l.b16 %v5135
    %v5189 = vunpack.c.l.b16 %v5136
    %v5190 = vunpack.c.l.b16 %v5137
    %v5191 = vunpack.c.l.b16 %v5138
    %v5192 = vunpack.c.l.b16 %v5139
    %v5193 = vunpack.c.l.b16 %v5140
    %v5194 = vunpack.c.l.b16 %v5141
    %v5195 = vunpack.c.l.b16 %v5142
    %v5196 = vunpack.c.l.b16 %v5143
    %v5197 = vunpack.c.l.b16 %v5144
    %v5198 = vunpack.c.l.b16 %v5145
    %v5199 = vunpack.c.l.b16 %v5146
    %v5200 = vunpack.c.l.b16 %v5147
    %v5201 = vunpack.c.l.b16 %v5148
    %v5202 = vunpack.c.l.b16 %v5149
    %v5203 = vunpack.c.l.b16 %v5150
    %v5204 = vunpack.c.l.b16 %v5151
    %v5205 = vunpack.c.l.b16 %v5152
    %v5206 = vunpack.c.l.b16 %v5153
    %v5207 = vunpack.c.l.b16 %v5154
    %v5208 = vunpack.c.l.b16 %v5155
    %v5209 = vpack.c.b16 %v5184, %v5183
    %v5210 = vpack.c.b16 %v5186, %v5185
    %v5211 = vpack.c.b16 %v5188, %v5187
    %v5212 = vpack.c.b16 %v5190, %v5189
    %v5213 = vpack.c.b16 %v5192, %v5191
    %v5214 = vpack.c.b16 %v5194, %v5193
    %v5215 = vpack.c.b16 %v5196, %v5195
    %v5216 = vpack.c.b16 %v5198, %v5197
    %v5217 = vpack.c.b16 %v5200, %v5199
    %v5218 = vpack.c.b16 %v5202, %v5201
    %v5219 = vpack.c.b16 %v5204, %v5203
    %v5220 = vpack.c.b16 %v5206, %v5205
    %v5221 = vpack.c.b16 %v5208, %v5207
    %v5223 = vshrl.u32 %v5209, 16
    %v5225 = vshll.u32 %v5209, 16
    %v5227 = vrot.slane %v5225, 1
    %v5228 = vor.u32 %v5223, %v5227
    %v5230 = vshll.u32 %v5210, 16
    %v5232 = vrot.slane %v5230, 1
    %v5233 = vsel %vm1657, %v5228, %v5232
    %v5234 = vshrl.u32 %v5210, 16
    %v5236 = vor.u32 %v5234, %v5232
    %v5238 = vshll.u32 %v5211, 16
    %v5240 = vrot.slane %v5238, 1
    %v5241 = vsel %vm1657, %v5236, %v5240
    %v5242 = vshrl.u32 %v5211, 16
    %v5244 = vor.u32 %v5242, %v5240
    %v5246 = vshll.u32 %v5212, 16
    %v5248 = vrot.slane %v5246, 1
    %v5249 = vsel %vm1657, %v5244, %v5248
    %v5250 = vshrl.u32 %v5212, 16
    %v5252 = vor.u32 %v5250, %v5248
    %v5254 = vshll.u32 %v5213, 16
    %v5256 = vrot.slane %v5254, 1
    %v5257 = vsel %vm1657, %v5252, %v5256
    %v5258 = vshrl.u32 %v5213, 16
    %v5260 = vor.u32 %v5258, %v5256
    %v5262 = vshll.u32 %v5214, 16
    %v5264 = vrot.slane %v5262, 1
    %v5265 = vsel %vm1657, %v5260, %v5264
    %v5266 = vshrl.u32 %v5214, 16
    %v5268 = vor.u32 %v5266, %v5264
    %v5270 = vshll.u32 %v5215, 16
    %v5272 = vrot.slane %v5270, 1
    %v5273 = vsel %vm1657, %v5268, %v5272
    %v5274 = vshrl.u32 %v5215, 16
    %v5276 = vor.u32 %v5274, %v5272
    %v5278 = vshll.u32 %v5216, 16
    %v5280 = vrot.slane %v5278, 1
    %v5281 = vsel %vm1657, %v5276, %v5280
    %v5282 = vshrl.u32 %v5216, 16
    %v5284 = vor.u32 %v5282, %v5280
    %v5286 = vshll.u32 %v5217, 16
    %v5288 = vrot.slane %v5286, 1
    %v5289 = vsel %vm1657, %v5284, %v5288
    %v5290 = vshrl.u32 %v5217, 16
    %v5292 = vor.u32 %v5290, %v5288
    %v5294 = vshll.u32 %v5218, 16
    %v5296 = vrot.slane %v5294, 1
    %v5297 = vsel %vm1657, %v5292, %v5296
    %v5298 = vshrl.u32 %v5218, 16
    %v5300 = vor.u32 %v5298, %v5296
    %v5302 = vshll.u32 %v5219, 16
    %v5304 = vrot.slane %v5302, 1
    %v5305 = vsel %vm1657, %v5300, %v5304
    %v5306 = vshrl.u32 %v5219, 16
    %v5308 = vor.u32 %v5306, %v5304
    %v5310 = vshll.u32 %v5220, 16
    %v5312 = vrot.slane %v5310, 1
    %v5313 = vsel %vm1657, %v5308, %v5312
    %v5314 = vshrl.u32 %v5220, 16
    %v5316 = vor.u32 %v5314, %v5312
    %v5318 = vshll.u32 %v5221, 16
    %v5320 = vrot.slane %v5318, 1
    %v5321 = vsel %vm1657, %v5316, %v5320
    %v5322 = vshrl.u32 %v5221, 16
    %v5324 = vor.u32 %v5322, %v5320
    %v5326 = vsel %vm3358, %v5233, 0
    %v5329 = vsel %vm3358, %v5241, 0
    %v5332 = vsel %vm3358, %v5249, 0
    %v5335 = vsel %vm3358, %v5257, 0
    %v5338 = vsel %vm3358, %v5265, 0
    %v5341 = vsel %vm3358, %v5273, 0
    %v5344 = vsel %vm3358, %v5281, 0
    %v5347 = vsel %vm3358, %v5289, 0
    %v5350 = vsel %vm3358, %v5297, 0
    %v5353 = vsel %vm3358, %v5305, 0
    %v5356 = vsel %vm3358, %v5313, 0
    %v5359 = vsel %vm3358, %v5321, 0
    %v5362 = vsel %vm3358, %v5324, 0
    %v5365 = vsel %vm3398, %v5156, 0
    %5367 = vmatprep.subr.bf16.mxu0 0
    %5368 = vmatpush1.bf16.msra.mxu0 0
    %5369 = vmatprep.subr.bf16.mxu0 0
    %5370 = vmatpush1.bf16.msra.mxu0 0
    %5371 = vmatprep.subr.bf16.mxu0 0
    %5372 = vmatpush1.bf16.msra.mxu0 0
    %5373 = vmatprep.subr.bf16.mxu0 0
    %5374 = vmatpush1.bf16.msra.mxu0 0
    %5375 = vmatprep.subr.bf16.mxu0 0
    %5376 = vmatpush1.bf16.msra.mxu0 0
    %5377 = vmatprep.subr.bf16.mxu0 0
    %5378 = vmatpush1.bf16.msra.mxu0 0
    %5379 = vmatprep.subr.bf16.mxu0 0
    %5380 = vmatpush1.bf16.msra.mxu0 0
    %5381 = vmatprep.subr.bf16.mxu0 0
    %5382 = vmatpush1.bf16.msra.mxu0 %v5365
    %5383 = vmatprep.subr.bf16.mxu0 0
    %5384 = vmatpush2.bf16.msra.mxu0 0
    %5385 = vmatprep.subr.bf16.mxu0 0
    %5386 = vmatpush2.bf16.msra.mxu0 0
    %5387 = vmatprep.subr.bf16.mxu0 0
    %5388 = vmatpush2.bf16.msra.mxu0 0
    %5389 = vmatprep.subr.bf16.mxu0 0
    %5390 = vmatpush2.bf16.msra.mxu0 0
    %5391 = vmatprep.subr.bf16.mxu0 0
    %5392 = vmatpush2.bf16.msra.mxu0 0
    %5393 = vmatprep.subr.bf16.mxu0 0
    %5394 = vmatpush2.bf16.msra.mxu0 0
    %5395 = vmatprep.subr.bf16.mxu0 0
    %5396 = vmatpush2.bf16.msra.mxu0 0
    %5397 = vmatprep.subr.bf16.mxu0 0
    %5398 = vmatpush2.bf16.msra.mxu0 0
    %5399 = vmatprep.mubr.bf16.mxu0 0
    %5400 = vmatmul.mubr.bf16.gmra.mxu0 %v5326
    %v5401 = vpop.f32.mrf.mxu0
    %v5402 = vadd.f32 0.0, %v5401
    %v5403 = vpop.f32.mrf.mxu0
    %v5404 = vpop.f32.mrf.mxu0
    %v5405 = vadd.f32 0.0, %v5404
    %v5406 = vpop.f32.mrf.mxu0
    %5407 = vmatprep.mubr.bf16.mxu0 0
    %5408 = vmatmul.mubr.bf16.gmra.mxu0 %v5329
    %v5409 = vpop.f32.mrf.mxu0
    %v5410 = vadd.f32 0.0, %v5409
    %v5411 = vpop.f32.mrf.mxu0
    %v5412 = vpop.f32.mrf.mxu0
    %v5413 = vadd.f32 0.0, %v5412
    %v5414 = vpop.f32.mrf.mxu0
    %5415 = vmatprep.mubr.bf16.mxu0 0
    %5416 = vmatmul.mubr.bf16.gmra.mxu0 %v5332
    %v5417 = vpop.f32.mrf.mxu0
    %v5418 = vadd.f32 0.0, %v5417
    %v5419 = vpop.f32.mrf.mxu0
    %v5420 = vpop.f32.mrf.mxu0
    %v5421 = vadd.f32 0.0, %v5420
    %v5422 = vpop.f32.mrf.mxu0
    %5423 = vmatprep.mubr.bf16.mxu0 0
    %5424 = vmatmul.mubr.bf16.gmra.mxu0 %v5335
    %v5425 = vpop.f32.mrf.mxu0
    %v5426 = vadd.f32 0.0, %v5425
    %v5427 = vpop.f32.mrf.mxu0
    %v5428 = vpop.f32.mrf.mxu0
    %v5429 = vadd.f32 0.0, %v5428
    %v5430 = vpop.f32.mrf.mxu0
    %5431 = vmatprep.mubr.bf16.mxu0 0
    %5432 = vmatmul.mubr.bf16.gmra.mxu0 %v5338
    %v5433 = vpop.f32.mrf.mxu0
    %v5434 = vadd.f32 0.0, %v5433
    %v5435 = vpop.f32.mrf.mxu0
    %v5436 = vpop.f32.mrf.mxu0
    %v5437 = vadd.f32 0.0, %v5436
    %v5438 = vpop.f32.mrf.mxu0
    %5439 = vmatprep.mubr.bf16.mxu0 0
    %5440 = vmatmul.mubr.bf16.gmra.mxu0 %v5341
    %v5441 = vpop.f32.mrf.mxu0
    %v5442 = vadd.f32 0.0, %v5441
    %v5443 = vpop.f32.mrf.mxu0
    %v5444 = vpop.f32.mrf.mxu0
    %v5445 = vadd.f32 0.0, %v5444
    %v5446 = vpop.f32.mrf.mxu0
    %5447 = vmatprep.mubr.bf16.mxu0 0
    %5448 = vmatmul.mubr.bf16.gmra.mxu0 %v5344
    %v5449 = vpop.f32.mrf.mxu0
    %v5450 = vadd.f32 0.0, %v5449
    %v5451 = vpop.f32.mrf.mxu0
    %v5452 = vpop.f32.mrf.mxu0
    %v5453 = vadd.f32 0.0, %v5452
    %v5454 = vpop.f32.mrf.mxu0
    %5455 = vmatprep.mubr.bf16.mxu0 0
    %5456 = vmatmul.mubr.bf16.gmra.mxu0 %v5347
    %v5457 = vpop.f32.mrf.mxu0
    %v5458 = vadd.f32 0.0, %v5457
    %v5459 = vpop.f32.mrf.mxu0
    %v5460 = vpop.f32.mrf.mxu0
    %v5461 = vadd.f32 0.0, %v5460
    %v5462 = vpop.f32.mrf.mxu0
    %5463 = vmatprep.mubr.bf16.mxu0 0
    %5464 = vmatmul.mubr.bf16.gmra.mxu0 %v5350
    %v5465 = vpop.f32.mrf.mxu0
    %v5466 = vadd.f32 0.0, %v5465
    %v5467 = vpop.f32.mrf.mxu0
    %v5468 = vpop.f32.mrf.mxu0
    %v5469 = vadd.f32 0.0, %v5468
    %v5470 = vpop.f32.mrf.mxu0
    %5471 = vmatprep.mubr.bf16.mxu0 0
    %5472 = vmatmul.mubr.bf16.gmra.mxu0 %v5353
    %v5473 = vpop.f32.mrf.mxu0
    %v5474 = vadd.f32 0.0, %v5473
    %v5475 = vpop.f32.mrf.mxu0
    %v5476 = vpop.f32.mrf.mxu0
    %v5477 = vadd.f32 0.0, %v5476
    %v5478 = vpop.f32.mrf.mxu0
    %5479 = vmatprep.mubr.bf16.mxu0 0
    %5480 = vmatmul.mubr.bf16.gmra.mxu0 %v5356
    %v5481 = vpop.f32.mrf.mxu0
    %v5482 = vadd.f32 0.0, %v5481
    %v5483 = vpop.f32.mrf.mxu0
    %v5484 = vpop.f32.mrf.mxu0
    %v5485 = vadd.f32 0.0, %v5484
    %v5486 = vpop.f32.mrf.mxu0
    %5487 = vmatprep.mubr.bf16.mxu0 0
    %5488 = vmatmul.mubr.bf16.gmra.mxu0 %v5359
    %v5489 = vpop.f32.mrf.mxu0
    %v5490 = vadd.f32 0.0, %v5489
    %v5491 = vpop.f32.mrf.mxu0
    %v5492 = vpop.f32.mrf.mxu0
    %v5493 = vadd.f32 0.0, %v5492
    %v5494 = vpop.f32.mrf.mxu0
    %5495 = vmatprep.mubr.bf16.mxu0 0
    %5496 = vmatmul.mubr.bf16.gmra.mxu0 %v5362
    %v5497 = vpop.f32.mrf.mxu0
    %v5498 = vadd.f32 0.0, %v5497
    %v5499 = vpop.f32.mrf.mxu0
    %v5500 = vpop.f32.mrf.mxu0
    %v5501 = vpop.f32.mrf.mxu0
    %5502 = vdwg.mxu0
    %v5503 = vadd.f32 %v5105, %v5402
    %v5504 = vadd.f32 %v5106, %v5405
    %v5505 = vadd.f32 %v5107, %v5410
    %v5506 = vadd.f32 %v5108, %v5413
    %v5507 = vadd.f32 %v5109, %v5418
    %v5508 = vadd.f32 %v5110, %v5421
    %v5509 = vadd.f32 %v5111, %v5426
    %v5510 = vadd.f32 %v5112, %v5429
    %v5511 = vadd.f32 %v5113, %v5434
    %v5512 = vadd.f32 %v5114, %v5437
    %v5513 = vadd.f32 %v5115, %v5442
    %v5514 = vadd.f32 %v5116, %v5445
    %v5515 = vadd.f32 %v5117, %v5450
    %v5516 = vadd.f32 %v5118, %v5453
    %v5517 = vadd.f32 %v5119, %v5458
    %v5518 = vadd.f32 %v5120, %v5461
    %v5519 = vadd.f32 %v5121, %v5466
    %v5520 = vadd.f32 %v5122, %v5469
    %v5521 = vadd.f32 %v5123, %v5474
    %v5522 = vadd.f32 %v5124, %v5477
    %v5523 = vadd.f32 %v5125, %v5482
    %v5524 = vadd.f32 %v5126, %v5485
    %v5525 = vadd.f32 %v5127, %v5490
    %v5526 = vadd.f32 %v5128, %v5493
    %v5527 = vadd.f32 %v5129, %v5498
    %v5528 = vld [vmem:[#allocation2 + $0xc] sm:$0xe]
    %v5529 = vld [vmem:[%s5 + $0x1c] sm:$0xf]
    %v5531 = vunpack.c.l.b16 %v5528
    %v5532 = vpack.c.b16 %v5184, %v5531
    %v5533 = vrot.slane %v5532, 1
    %v5534 = vrot.slane %v5210, 1
    %v5535 = vsel %vm2371, %v5533, %v5534
    %v5536 = vrot.slane %v5211, 1
    %v5537 = vsel %vm2371, %v5534, %v5536
    %v5538 = vrot.slane %v5212, 1
    %v5539 = vsel %vm2371, %v5536, %v5538
    %v5540 = vrot.slane %v5213, 1
    %v5541 = vsel %vm2371, %v5538, %v5540
    %v5542 = vrot.slane %v5214, 1
    %v5543 = vsel %vm2371, %v5540, %v5542
    %v5544 = vrot.slane %v5215, 1
    %v5545 = vsel %vm2371, %v5542, %v5544
    %v5546 = vrot.slane %v5216, 1
    %v5547 = vsel %vm2371, %v5544, %v5546
    %v5548 = vrot.slane %v5217, 1
    %v5549 = vsel %vm2371, %v5546, %v5548
    %v5550 = vrot.slane %v5218, 1
    %v5551 = vsel %vm2371, %v5548, %v5550
    %v5552 = vrot.slane %v5219, 1
    %v5553 = vsel %vm2371, %v5550, %v5552
    %v5554 = vrot.slane %v5220, 1
    %v5555 = vsel %vm2371, %v5552, %v5554
    %v5556 = vrot.slane %v5221, 1
    %v5557 = vsel %vm2371, %v5554, %v5556
    %v5559 = vsel %vm3358, %v5535, 0
    %v5562 = vsel %vm3358, %v5537, 0
    %v5565 = vsel %vm3358, %v5539, 0
    %v5568 = vsel %vm3358, %v5541, 0
    %v5571 = vsel %vm3358, %v5543, 0
    %v5574 = vsel %vm3358, %v5545, 0
    %v5577 = vsel %vm3358, %v5547, 0
    %v5580 = vsel %vm3358, %v5549, 0
    %v5583 = vsel %vm3358, %v5551, 0
    %v5586 = vsel %vm3358, %v5553, 0
    %v5589 = vsel %vm3358, %v5555, 0
    %v5592 = vsel %vm3358, %v5557, 0
    %v5595 = vsel %vm3358, %v5556, 0
    %v5598 = vsel %vm3398, %v5529, 0
    %5600 = vmatprep.subr.bf16.mxu0 0
    %5601 = vmatpush1.bf16.msra.mxu0 0
    %5602 = vmatprep.subr.bf16.mxu0 0
    %5603 = vmatpush1.bf16.msra.mxu0 0
    %5604 = vmatprep.subr.bf16.mxu0 0
    %5605 = vmatpush1.bf16.msra.mxu0 0
    %5606 = vmatprep.subr.bf16.mxu0 0
    %5607 = vmatpush1.bf16.msra.mxu0 0
    %5608 = vmatprep.subr.bf16.mxu0 0
    %5609 = vmatpush1.bf16.msra.mxu0 0
    %5610 = vmatprep.subr.bf16.mxu0 0
    %5611 = vmatpush1.bf16.msra.mxu0 0
    %5612 = vmatprep.subr.bf16.mxu0 0
    %5613 = vmatpush1.bf16.msra.mxu0 0
    %5614 = vmatprep.subr.bf16.mxu0 0
    %5615 = vmatpush1.bf16.msra.mxu0 %v5598
    %5616 = vmatprep.subr.bf16.mxu0 0
    %5617 = vmatpush2.bf16.msra.mxu0 0
    %5618 = vmatprep.subr.bf16.mxu0 0
    %5619 = vmatpush2.bf16.msra.mxu0 0
    %5620 = vmatprep.subr.bf16.mxu0 0
    %5621 = vmatpush2.bf16.msra.mxu0 0
    %5622 = vmatprep.subr.bf16.mxu0 0
    %5623 = vmatpush2.bf16.msra.mxu0 0
    %5624 = vmatprep.subr.bf16.mxu0 0
    %5625 = vmatpush2.bf16.msra.mxu0 0
    %5626 = vmatprep.subr.bf16.mxu0 0
    %5627 = vmatpush2.bf16.msra.mxu0 0
    %5628 = vmatprep.subr.bf16.mxu0 0
    %5629 = vmatpush2.bf16.msra.mxu0 0
    %5630 = vmatprep.subr.bf16.mxu0 0
    %5631 = vmatpush2.bf16.msra.mxu0 0
    %5632 = vmatprep.mubr.bf16.mxu0 0
    %5633 = vmatmul.mubr.bf16.gmra.mxu0 %v5559
    %v5634 = vpop.f32.mrf.mxu0
    %v5635 = vadd.f32 0.0, %v5634
    %v5636 = vpop.f32.mrf.mxu0
    %v5637 = vpop.f32.mrf.mxu0
    %v5638 = vadd.f32 0.0, %v5637
    %v5639 = vpop.f32.mrf.mxu0
    %5640 = vmatprep.mubr.bf16.mxu0 0
    %5641 = vmatmul.mubr.bf16.gmra.mxu0 %v5562
    %v5642 = vpop.f32.mrf.mxu0
    %v5643 = vadd.f32 0.0, %v5642
    %v5644 = vpop.f32.mrf.mxu0
    %v5645 = vpop.f32.mrf.mxu0
    %v5646 = vadd.f32 0.0, %v5645
    %v5647 = vpop.f32.mrf.mxu0
    %5648 = vmatprep.mubr.bf16.mxu0 0
    %5649 = vmatmul.mubr.bf16.gmra.mxu0 %v5565
    %v5650 = vpop.f32.mrf.mxu0
    %v5651 = vadd.f32 0.0, %v5650
    %v5652 = vpop.f32.mrf.mxu0
    %v5653 = vpop.f32.mrf.mxu0
    %v5654 = vadd.f32 0.0, %v5653
    %v5655 = vpop.f32.mrf.mxu0
    %5656 = vmatprep.mubr.bf16.mxu0 0
    %5657 = vmatmul.mubr.bf16.gmra.mxu0 %v5568
    %v5658 = vpop.f32.mrf.mxu0
    %v5659 = vadd.f32 0.0, %v5658
    %v5660 = vpop.f32.mrf.mxu0
    %v5661 = vpop.f32.mrf.mxu0
    %v5662 = vadd.f32 0.0, %v5661
    %v5663 = vpop.f32.mrf.mxu0
    %5664 = vmatprep.mubr.bf16.mxu0 0
    %5665 = vmatmul.mubr.bf16.gmra.mxu0 %v5571
    %v5666 = vpop.f32.mrf.mxu0
    %v5667 = vadd.f32 0.0, %v5666
    %v5668 = vpop.f32.mrf.mxu0
    %v5669 = vpop.f32.mrf.mxu0
    %v5670 = vadd.f32 0.0, %v5669
    %v5671 = vpop.f32.mrf.mxu0
    %5672 = vmatprep.mubr.bf16.mxu0 0
    %5673 = vmatmul.mubr.bf16.gmra.mxu0 %v5574
    %v5674 = vpop.f32.mrf.mxu0
    %v5675 = vadd.f32 0.0, %v5674
    %v5676 = vpop.f32.mrf.mxu0
    %v5677 = vpop.f32.mrf.mxu0
    %v5678 = vadd.f32 0.0, %v5677
    %v5679 = vpop.f32.mrf.mxu0
    %5680 = vmatprep.mubr.bf16.mxu0 0
    %5681 = vmatmul.mubr.bf16.gmra.mxu0 %v5577
    %v5682 = vpop.f32.mrf.mxu0
    %v5683 = vadd.f32 0.0, %v5682
    %v5684 = vpop.f32.mrf.mxu0
    %v5685 = vpop.f32.mrf.mxu0
    %v5686 = vadd.f32 0.0, %v5685
    %v5687 = vpop.f32.mrf.mxu0
    %5688 = vmatprep.mubr.bf16.mxu0 0
    %5689 = vmatmul.mubr.bf16.gmra.mxu0 %v5580
    %v5690 = vpop.f32.mrf.mxu0
    %v5691 = vadd.f32 0.0, %v5690
    %v5692 = vpop.f32.mrf.mxu0
    %v5693 = vpop.f32.mrf.mxu0
    %v5694 = vadd.f32 0.0, %v5693
    %v5695 = vpop.f32.mrf.mxu0
    %5696 = vmatprep.mubr.bf16.mxu0 0
    %5697 = vmatmul.mubr.bf16.gmra.mxu0 %v5583
    %v5698 = vpop.f32.mrf.mxu0
    %v5699 = vadd.f32 0.0, %v5698
    %v5700 = vpop.f32.mrf.mxu0
    %v5701 = vpop.f32.mrf.mxu0
    %v5702 = vadd.f32 0.0, %v5701
    %v5703 = vpop.f32.mrf.mxu0
    %5704 = vmatprep.mubr.bf16.mxu0 0
    %5705 = vmatmul.mubr.bf16.gmra.mxu0 %v5586
    %v5706 = vpop.f32.mrf.mxu0
    %v5707 = vadd.f32 0.0, %v5706
    %v5708 = vpop.f32.mrf.mxu0
    %v5709 = vpop.f32.mrf.mxu0
    %v5710 = vadd.f32 0.0, %v5709
    %v5711 = vpop.f32.mrf.mxu0
    %5712 = vmatprep.mubr.bf16.mxu0 0
    %5713 = vmatmul.mubr.bf16.gmra.mxu0 %v5589
    %v5714 = vpop.f32.mrf.mxu0
    %v5715 = vadd.f32 0.0, %v5714
    %v5716 = vpop.f32.mrf.mxu0
    %v5717 = vpop.f32.mrf.mxu0
    %v5718 = vadd.f32 0.0, %v5717
    %v5719 = vpop.f32.mrf.mxu0
    %5720 = vmatprep.mubr.bf16.mxu0 0
    %5721 = vmatmul.mubr.bf16.gmra.mxu0 %v5592
    %v5722 = vpop.f32.mrf.mxu0
    %v5723 = vadd.f32 0.0, %v5722
    %v5724 = vpop.f32.mrf.mxu0
    %v5725 = vpop.f32.mrf.mxu0
    %v5726 = vadd.f32 0.0, %v5725
    %v5727 = vpop.f32.mrf.mxu0
    %5728 = vmatprep.mubr.bf16.mxu0 0
    %5729 = vmatmul.mubr.bf16.gmra.mxu0 %v5595
    %v5730 = vpop.f32.mrf.mxu0
    %v5731 = vadd.f32 0.0, %v5730
    %v5732 = vpop.f32.mrf.mxu0
    %v5733 = vpop.f32.mrf.mxu0
    %v5734 = vpop.f32.mrf.mxu0
    %5735 = vdwg.mxu0
    %v5736 = vadd.f32 %v5503, %v5635
    %v5737 = vadd.f32 %v5504, %v5638
    %v5738 = vadd.f32 %v5505, %v5643
    %v5739 = vadd.f32 %v5506, %v5646
    %v5740 = vadd.f32 %v5507, %v5651
    %v5741 = vadd.f32 %v5508, %v5654
    %v5742 = vadd.f32 %v5509, %v5659
    %v5743 = vadd.f32 %v5510, %v5662
    %v5744 = vadd.f32 %v5511, %v5667
    %v5745 = vadd.f32 %v5512, %v5670
    %v5746 = vadd.f32 %v5513, %v5675
    %v5747 = vadd.f32 %v5514, %v5678
    %v5748 = vadd.f32 %v5515, %v5683
    %v5749 = vadd.f32 %v5516, %v5686
    %v5750 = vadd.f32 %v5517, %v5691
    %v5751 = vadd.f32 %v5518, %v5694
    %v5752 = vadd.f32 %v5519, %v5699
    %v5753 = vadd.f32 %v5520, %v5702
    %v5754 = vadd.f32 %v5521, %v5707
    %v5755 = vadd.f32 %v5522, %v5710
    %v5756 = vadd.f32 %v5523, %v5715
    %v5757 = vadd.f32 %v5524, %v5718
    %v5758 = vadd.f32 %v5525, %v5723
    %v5759 = vadd.f32 %v5526, %v5726
    %v5760 = vadd.f32 %v5527, %v5731
    %v5761 = vld [vmem:[#allocation2 + $0x70] sm:$0x3]
    %v5762 = vld [vmem:[%s5 + $0x20] sm:$0xf]
    %v5764 = vunpack.c.l.b16 %v5761
    %v5765 = vpack.c.b16 %v5764, %v5207
    %v5767 = vshrl.u32 %v5532, 16
    %v5769 = vrot.slane %v5767, 1
    %v5770 = vshll.u32 %v5532, 16
    %v5772 = vrot.slane %v5770, 2
    %v5773 = vor.u32 %v5769, %v5772
    %v5774 = vrot.slane %v5234, 1
    %v5775 = vrot.slane %v5230, 2
    %v5776 = vor.u32 %v5774, %v5775
    %v5777 = vsel %vm2609, %v5773, %v5776
    %v5778 = vrot.slane %v5242, 1
    %v5779 = vrot.slane %v5238, 2
    %v5780 = vor.u32 %v5778, %v5779
    %v5781 = vsel %vm2609, %v5776, %v5780
    %v5782 = vrot.slane %v5250, 1
    %v5783 = vrot.slane %v5246, 2
    %v5784 = vor.u32 %v5782, %v5783
    %v5785 = vsel %vm2609, %v5780, %v5784
    %v5786 = vrot.slane %v5258, 1
    %v5787 = vrot.slane %v5254, 2
    %v5788 = vor.u32 %v5786, %v5787
    %v5789 = vsel %vm2609, %v5784, %v5788
    %v5790 = vrot.slane %v5266, 1
    %v5791 = vrot.slane %v5262, 2
    %v5792 = vor.u32 %v5790, %v5791
    %v5793 = vsel %vm2609, %v5788, %v5792
    %v5794 = vrot.slane %v5274, 1
    %v5795 = vrot.slane %v5270, 2
    %v5796 = vor.u32 %v5794, %v5795
    %v5797 = vsel %vm2609, %v5792, %v5796
    %v5798 = vrot.slane %v5282, 1
    %v5799 = vrot.slane %v5278, 2
    %v5800 = vor.u32 %v5798, %v5799
    %v5801 = vsel %vm2609, %v5796, %v5800
    %v5802 = vrot.slane %v5290, 1
    %v5803 = vrot.slane %v5286, 2
    %v5804 = vor.u32 %v5802, %v5803
    %v5805 = vsel %vm2609, %v5800, %v5804
    %v5806 = vrot.slane %v5298, 1
    %v5807 = vrot.slane %v5294, 2
    %v5808 = vor.u32 %v5806, %v5807
    %v5809 = vsel %vm2609, %v5804, %v5808
    %v5810 = vrot.slane %v5306, 1
    %v5811 = vrot.slane %v5302, 2
    %v5812 = vor.u32 %v5810, %v5811
    %v5813 = vsel %vm2609, %v5808, %v5812
    %v5814 = vrot.slane %v5314, 1
    %v5815 = vrot.slane %v5310, 2
    %v5816 = vor.u32 %v5814, %v5815
    %v5817 = vsel %vm2609, %v5812, %v5816
    %v5819 = vshrl.u32 %v5765, 16
    %v5821 = vrot.slane %v5819, 1
    %v5822 = vshll.u32 %v5765, 16
    %v5824 = vrot.slane %v5822, 2
    %v5825 = vor.u32 %v5821, %v5824
    %v5826 = vsel %vm2609, %v5816, %v5825
    %v5828 = vsel %vm3358, %v5777, 0
    %v5831 = vsel %vm3358, %v5781, 0
    %v5834 = vsel %vm3358, %v5785, 0
    %v5837 = vsel %vm3358, %v5789, 0
    %v5840 = vsel %vm3358, %v5793, 0
    %v5843 = vsel %vm3358, %v5797, 0
    %v5846 = vsel %vm3358, %v5801, 0
    %v5849 = vsel %vm3358, %v5805, 0
    %v5852 = vsel %vm3358, %v5809, 0
    %v5855 = vsel %vm3358, %v5813, 0
    %v5858 = vsel %vm3358, %v5817, 0
    %v5861 = vsel %vm3358, %v5826, 0
    %v5864 = vsel %vm3358, %v5825, 0
    %v5867 = vsel %vm3398, %v5762, 0
    %5869 = vmatprep.subr.bf16.mxu0 0
    %5870 = vmatpush1.bf16.msra.mxu0 0
    %5871 = vmatprep.subr.bf16.mxu0 0
    %5872 = vmatpush1.bf16.msra.mxu0 0
    %5873 = vmatprep.subr.bf16.mxu0 0
    %5874 = vmatpush1.bf16.msra.mxu0 0
    %5875 = vmatprep.subr.bf16.mxu0 0
    %5876 = vmatpush1.bf16.msra.mxu0 0
    %5877 = vmatprep.subr.bf16.mxu0 0
    %5878 = vmatpush1.bf16.msra.mxu0 0
    %5879 = vmatprep.subr.bf16.mxu0 0
    %5880 = vmatpush1.bf16.msra.mxu0 0
    %5881 = vmatprep.subr.bf16.mxu0 0
    %5882 = vmatpush1.bf16.msra.mxu0 0
    %5883 = vmatprep.subr.bf16.mxu0 0
    %5884 = vmatpush1.bf16.msra.mxu0 %v5867
    %5885 = vmatprep.subr.bf16.mxu0 0
    %5886 = vmatpush2.bf16.msra.mxu0 0
    %5887 = vmatprep.subr.bf16.mxu0 0
    %5888 = vmatpush2.bf16.msra.mxu0 0
    %5889 = vmatprep.subr.bf16.mxu0 0
    %5890 = vmatpush2.bf16.msra.mxu0 0
    %5891 = vmatprep.subr.bf16.mxu0 0
    %5892 = vmatpush2.bf16.msra.mxu0 0
    %5893 = vmatprep.subr.bf16.mxu0 0
    %5894 = vmatpush2.bf16.msra.mxu0 0
    %5895 = vmatprep.subr.bf16.mxu0 0
    %5896 = vmatpush2.bf16.msra.mxu0 0
    %5897 = vmatprep.subr.bf16.mxu0 0
    %5898 = vmatpush2.bf16.msra.mxu0 0
    %5899 = vmatprep.subr.bf16.mxu0 0
    %5900 = vmatpush2.bf16.msra.mxu0 0
    %5901 = vmatprep.mubr.bf16.mxu0 0
    %5902 = vmatmul.mubr.bf16.gmra.mxu0 %v5828
    %v5903 = vpop.f32.mrf.mxu0
    %v5904 = vadd.f32 0.0, %v5903
    %v5905 = vpop.f32.mrf.mxu0
    %v5906 = vpop.f32.mrf.mxu0
    %v5907 = vadd.f32 0.0, %v5906
    %v5908 = vpop.f32.mrf.mxu0
    %5909 = vmatprep.mubr.bf16.mxu0 0
    %5910 = vmatmul.mubr.bf16.gmra.mxu0 %v5831
    %v5911 = vpop.f32.mrf.mxu0
    %v5912 = vadd.f32 0.0, %v5911
    %v5913 = vpop.f32.mrf.mxu0
    %v5914 = vpop.f32.mrf.mxu0
    %v5915 = vadd.f32 0.0, %v5914
    %v5916 = vpop.f32.mrf.mxu0
    %5917 = vmatprep.mubr.bf16.mxu0 0
    %5918 = vmatmul.mubr.bf16.gmra.mxu0 %v5834
    %v5919 = vpop.f32.mrf.mxu0
    %v5920 = vadd.f32 0.0, %v5919
    %v5921 = vpop.f32.mrf.mxu0
    %v5922 = vpop.f32.mrf.mxu0
    %v5923 = vadd.f32 0.0, %v5922
    %v5924 = vpop.f32.mrf.mxu0
    %5925 = vmatprep.mubr.bf16.mxu0 0
    %5926 = vmatmul.mubr.bf16.gmra.mxu0 %v5837
    %v5927 = vpop.f32.mrf.mxu0
    %v5928 = vadd.f32 0.0, %v5927
    %v5929 = vpop.f32.mrf.mxu0
    %v5930 = vpop.f32.mrf.mxu0
    %v5931 = vadd.f32 0.0, %v5930
    %v5932 = vpop.f32.mrf.mxu0
    %5933 = vmatprep.mubr.bf16.mxu0 0
    %5934 = vmatmul.mubr.bf16.gmra.mxu0 %v5840
    %v5935 = vpop.f32.mrf.mxu0
    %v5936 = vadd.f32 0.0, %v5935
    %v5937 = vpop.f32.mrf.mxu0
    %v5938 = vpop.f32.mrf.mxu0
    %v5939 = vadd.f32 0.0, %v5938
    %v5940 = vpop.f32.mrf.mxu0
    %5941 = vmatprep.mubr.bf16.mxu0 0
    %5942 = vmatmul.mubr.bf16.gmra.mxu0 %v5843
    %v5943 = vpop.f32.mrf.mxu0
    %v5944 = vadd.f32 0.0, %v5943
    %v5945 = vpop.f32.mrf.mxu0
    %v5946 = vpop.f32.mrf.mxu0
    %v5947 = vadd.f32 0.0, %v5946
    %v5948 = vpop.f32.mrf.mxu0
    %5949 = vmatprep.mubr.bf16.mxu0 0
    %5950 = vmatmul.mubr.bf16.gmra.mxu0 %v5846
    %v5951 = vpop.f32.mrf.mxu0
    %v5952 = vadd.f32 0.0, %v5951
    %v5953 = vpop.f32.mrf.mxu0
    %v5954 = vpop.f32.mrf.mxu0
    %v5955 = vadd.f32 0.0, %v5954
    %v5956 = vpop.f32.mrf.mxu0
    %5957 = vmatprep.mubr.bf16.mxu0 0
    %5958 = vmatmul.mubr.bf16.gmra.mxu0 %v5849
    %v5959 = vpop.f32.mrf.mxu0
    %v5960 = vadd.f32 0.0, %v5959
    %v5961 = vpop.f32.mrf.mxu0
    %v5962 = vpop.f32.mrf.mxu0
    %v5963 = vadd.f32 0.0, %v5962
    %v5964 = vpop.f32.mrf.mxu0
    %5965 = vmatprep.mubr.bf16.mxu0 0
    %5966 = vmatmul.mubr.bf16.gmra.mxu0 %v5852
    %v5967 = vpop.f32.mrf.mxu0
    %v5968 = vadd.f32 0.0, %v5967
    %v5969 = vpop.f32.mrf.mxu0
    %v5970 = vpop.f32.mrf.mxu0
    %v5971 = vadd.f32 0.0, %v5970
    %v5972 = vpop.f32.mrf.mxu0
    %5973 = vmatprep.mubr.bf16.mxu0 0
    %5974 = vmatmul.mubr.bf16.gmra.mxu0 %v5855
    %v5975 = vpop.f32.mrf.mxu0
    %v5976 = vadd.f32 0.0, %v5975
    %v5977 = vpop.f32.mrf.mxu0
    %v5978 = vpop.f32.mrf.mxu0
    %v5979 = vadd.f32 0.0, %v5978
    %v5980 = vpop.f32.mrf.mxu0
    %5981 = vmatprep.mubr.bf16.mxu0 0
    %5982 = vmatmul.mubr.bf16.gmra.mxu0 %v5858
    %v5983 = vpop.f32.mrf.mxu0
    %v5984 = vadd.f32 0.0, %v5983
    %v5985 = vpop.f32.mrf.mxu0
    %v5986 = vpop.f32.mrf.mxu0
    %v5987 = vadd.f32 0.0, %v5986
    %v5988 = vpop.f32.mrf.mxu0
    %5989 = vmatprep.mubr.bf16.mxu0 0
    %5990 = vmatmul.mubr.bf16.gmra.mxu0 %v5861
    %v5991 = vpop.f32.mrf.mxu0
    %v5992 = vadd.f32 0.0, %v5991
    %v5993 = vpop.f32.mrf.mxu0
    %v5994 = vpop.f32.mrf.mxu0
    %v5995 = vadd.f32 0.0, %v5994
    %v5996 = vpop.f32.mrf.mxu0
    %5997 = vmatprep.mubr.bf16.mxu0 0
    %5998 = vmatmul.mubr.bf16.gmra.mxu0 %v5864
    %v5999 = vpop.f32.mrf.mxu0
    %v6000 = vadd.f32 0.0, %v5999
    %v6001 = vpop.f32.mrf.mxu0
    %v6002 = vpop.f32.mrf.mxu0
    %v6003 = vpop.f32.mrf.mxu0
    %6004 = vdwg.mxu0
    %v6005 = vadd.f32 %v5736, %v5904
    %v6006 = vadd.f32 %v5737, %v5907
    %v6007 = vadd.f32 %v5738, %v5912
    %v6008 = vadd.f32 %v5739, %v5915
    %v6009 = vadd.f32 %v5740, %v5920
    %v6010 = vadd.f32 %v5741, %v5923
    %v6011 = vadd.f32 %v5742, %v5928
    %v6012 = vadd.f32 %v5743, %v5931
    %v6013 = vadd.f32 %v5744, %v5936
    %v6014 = vadd.f32 %v5745, %v5939
    %v6015 = vadd.f32 %v5746, %v5944
    %v6016 = vadd.f32 %v5747, %v5947
    %v6017 = vadd.f32 %v5748, %v5952
    %v6018 = vadd.f32 %v5749, %v5955
    %v6019 = vadd.f32 %v5750, %v5960
    %v6020 = vadd.f32 %v5751, %v5963
    %v6021 = vadd.f32 %v5752, %v5968
    %v6022 = vadd.f32 %v5753, %v5971
    %v6023 = vadd.f32 %v5754, %v5976
    %v6024 = vadd.f32 %v5755, %v5979
    %v6025 = vadd.f32 %v5756, %v5984
    %v6026 = vadd.f32 %v5757, %v5987
    %v6027 = vadd.f32 %v5758, %v5992
    %v6028 = vadd.f32 %v5759, %v5995
    %v6029 = vadd.f32 %v5760, %v6000
    %v6030 = vld [vmem:[%s6] sm:$0x1]
    %v6032 = vlaneseq
    %v6033 = vshrl.u32 %v6032, 7
    %v6034 = vsub.s32 0, %v6033
    %v6035 = vrot.slane %v6030, %v6034
    %v6037 = vmul.f32 %v6005, %v6035
    %v6038 = vmul.f32 %v6006, %v6035
    %v6039 = vmul.f32 %v6007, %v6035
    %v6040 = vmul.f32 %v6008, %v6035
    %v6041 = vmul.f32 %v6009, %v6035
    %v6042 = vmul.f32 %v6010, %v6035
    %v6043 = vmul.f32 %v6011, %v6035
    %v6044 = vmul.f32 %v6012, %v6035
    %v6045 = vmul.f32 %v6013, %v6035
    %v6046 = vmul.f32 %v6014, %v6035
    %v6047 = vmul.f32 %v6015, %v6035
    %v6048 = vmul.f32 %v6016, %v6035
    %v6049 = vmul.f32 %v6017, %v6035
    %v6050 = vmul.f32 %v6018, %v6035
    %v6051 = vmul.f32 %v6019, %v6035
    %v6052 = vmul.f32 %v6020, %v6035
    %v6053 = vmul.f32 %v6021, %v6035
    %v6054 = vmul.f32 %v6022, %v6035
    %v6055 = vmul.f32 %v6023, %v6035
    %v6056 = vmul.f32 %v6024, %v6035
    %v6057 = vmul.f32 %v6025, %v6035
    %v6058 = vmul.f32 %v6026, %v6035
    %v6059 = vmul.f32 %v6027, %v6035
    %v6060 = vmul.f32 %v6028, %v6035
    %v6061 = vmul.f32 %v6029, %v6035
    %v6062 = vld [vmem:[%s7] sm:$0x1]
    %v6064 = vlaneseq
    %v6065 = vshrl.u32 %v6064, 7
    %v6066 = vsub.s32 0, %v6065
    %v6067 = vrot.slane %v6062, %v6066
    %v6069 = vadd.f32 %v6037, %v6067
    %v6070 = vadd.f32 %v6038, %v6067
    %v6071 = vadd.f32 %v6039, %v6067
    %v6072 = vadd.f32 %v6040, %v6067
    %v6073 = vadd.f32 %v6041, %v6067
    %v6074 = vadd.f32 %v6042, %v6067
    %v6075 = vadd.f32 %v6043, %v6067
    %v6076 = vadd.f32 %v6044, %v6067
    %v6077 = vadd.f32 %v6045, %v6067
    %v6078 = vadd.f32 %v6046, %v6067
    %v6079 = vadd.f32 %v6047, %v6067
    %v6080 = vadd.f32 %v6048, %v6067
    %v6081 = vadd.f32 %v6049, %v6067
    %v6082 = vadd.f32 %v6050, %v6067
    %v6083 = vadd.f32 %v6051, %v6067
    %v6084 = vadd.f32 %v6052, %v6067
    %v6085 = vadd.f32 %v6053, %v6067
    %v6086 = vadd.f32 %v6054, %v6067
    %v6087 = vadd.f32 %v6055, %v6067
    %v6088 = vadd.f32 %v6056, %v6067
    %v6089 = vadd.f32 %v6057, %v6067
    %v6090 = vadd.f32 %v6058, %v6067
    %v6091 = vadd.f32 %v6059, %v6067
    %v6092 = vadd.f32 %v6060, %v6067
    %v6093 = vadd.f32 %v6061, %v6067
    %v6094 = vmax.f32 %v6069, 0.0
    %v6095 = vmax.f32 %v6070, 0.0
    %v6096 = vmax.f32 %v6071, 0.0
    %v6097 = vmax.f32 %v6072, 0.0
    %v6098 = vmax.f32 %v6073, 0.0
    %v6099 = vmax.f32 %v6074, 0.0
    %v6100 = vmax.f32 %v6075, 0.0
    %v6101 = vmax.f32 %v6076, 0.0
    %v6102 = vmax.f32 %v6077, 0.0
    %v6103 = vmax.f32 %v6078, 0.0
    %v6104 = vmax.f32 %v6079, 0.0
    %v6105 = vmax.f32 %v6080, 0.0
    %v6106 = vmax.f32 %v6081, 0.0
    %v6107 = vmax.f32 %v6082, 0.0
    %v6108 = vmax.f32 %v6083, 0.0
    %v6109 = vmax.f32 %v6084, 0.0
    %v6110 = vmax.f32 %v6085, 0.0
    %v6111 = vmax.f32 %v6086, 0.0
    %v6112 = vmax.f32 %v6087, 0.0
    %v6113 = vmax.f32 %v6088, 0.0
    %v6114 = vmax.f32 %v6089, 0.0
    %v6115 = vmax.f32 %v6090, 0.0
    %v6116 = vmax.f32 %v6091, 0.0
    %v6117 = vmax.f32 %v6092, 0.0
    %v6118 = vmax.f32 %v6093, 0.0
    %6119 = vst [vmem:[#allocation3] sm:$0xff] %v6094
    %6120 = vst [vmem:[#allocation3 + $0x8] sm:$0xff] %v6095
    %6121 = vst [vmem:[#allocation3 + $0x10] sm:$0xff] %v6096
    %6122 = vst [vmem:[#allocation3 + $0x18] sm:$0xff] %v6097
    %6123 = vst [vmem:[#allocation3 + $0x20] sm:$0xff] %v6098
    %6124 = vst [vmem:[#allocation3 + $0x28] sm:$0xff] %v6099
    %6125 = vst [vmem:[#allocation3 + $0x30] sm:$0xff] %v6100
    %6126 = vst [vmem:[#allocation3 + $0x38] sm:$0xff] %v6101
    %6127 = vst [vmem:[#allocation3 + $0x40] sm:$0xff] %v6102
    %6128 = vst [vmem:[#allocation3 + $0x48] sm:$0xff] %v6103
    %6129 = vst [vmem:[#allocation3 + $0x50] sm:$0xff] %v6104
    %6130 = vst [vmem:[#allocation3 + $0x58] sm:$0xff] %v6105
    %6131 = vst [vmem:[#allocation3 + $0x60] sm:$0xff] %v6106
    %6132 = vst [vmem:[#allocation3 + $0x68] sm:$0xff] %v6107
    %6133 = vst [vmem:[#allocation3 + $0x70] sm:$0xff] %v6108
    %6134 = vst [vmem:[#allocation3 + $0x78] sm:$0xff] %v6109
    %6135 = vst [vmem:[#allocation3 + $0x80] sm:$0xff] %v6110
    %6136 = vst [vmem:[#allocation3 + $0x88] sm:$0xff] %v6111
    %6137 = vst [vmem:[#allocation3 + $0x90] sm:$0xff] %v6112
    %6138 = vst [vmem:[#allocation3 + $0x98] sm:$0xff] %v6113
    %6139 = vst [vmem:[#allocation3 + $0xa0] sm:$0xff] %v6114
    %6140 = vst [vmem:[#allocation3 + $0xa8] sm:$0xff] %v6115
    %6141 = vst [vmem:[#allocation3 + $0xb0] sm:$0xff] %v6116
    %6142 = vst [vmem:[#allocation3 + $0xb8] sm:$0xff] %v6117
    %6143 = vst [vmem:[#allocation3 + $0xc0] sm:$0xff] %v6118
    // Predicated region
    $region34: #{tpu_custom_call.1} parent=1 // pred_check
      _
    $region35: #{tpu_custom_call.1} parent=1 // pred_check_branch
      %6145 = sbr.rel (0) target = $region37
    $region36: #{tpu_custom_call.1} parent=1 // pred_region
      %s6147 = ssub.s32 3200, 3200
      %6148 = vsyncadd [#allocation4], %s6147
      %s6149 = sshll.u32 [#allocation3], 4
      %s6150 = int_to_ptr.vmem [resolvable:$true] %s6149
      %6155 = dma.vmem_to_hbm [thread:$0]  %s6150, 3200, %s8, [#allocation4], 128, 128, 8
    $region37: #{tpu_custom_call.1} parent=1 // pred_fallthru
      _
    // Predicated region
    $region38: #{tpu_custom_call.1} parent=1 // pred_check
      _
    $region39: #{tpu_custom_call.1} parent=1 // pred_check_branch
      %6157 = sbr.rel (0) target = $region41
    $region40: #{tpu_custom_call.1} parent=1 // pred_region
      %6158 = dma.done [#allocation4], 3200
    $region41: #{tpu_custom_call.1} parent=1 // pred_fallthru
      _
    %6159 = vsyncpa [#allocation4], 1

</llo_original>
